<compile_context>
chip_gen: v7x
topology: tpu7x:2x2x1
jax: 0.10.0
libtpu: 0.0.40
codegen_flags: <defaults>
</compile_context>

<pallas_src>
import jax
import jax.numpy as jnp
from jax.experimental import pallas as pl
from jax.experimental.pallas import tpu as pltpu


# ------------------------------ Pallas kernel -------------------------------

def _make_dense_block_kernel(n_layers, c_in, c_out, c_mid, H, W):
    HW = H * W

    def kernel(*refs):
        # refs = [x, edge_masks, (s1, b1, w1sT, b2, w2) * n_layers, out]
        x_ref = refs[0]
        m_ref = refs[1]
        w_refs = refs[2:-1]
        out_ref = refs[-1]

        # The output block IS the resident concatenated feature slab
        # (c_total, HW) in VMEM; channels [0, c_in) come straight from x.
        out_ref[0, 0:c_in, :] = x_ref[0]

        # 0/1 edge-validity masks, (1, HW) each, hoisted out of the layer loop.
        m = m_ref[...]
        m_left = m[0:1, :]     # column j-1 exists
        m_right = m[1:2, :]    # column j+1 exists
        m_up = m[2:3, :]       # row i-1 exists
        m_down = m[3:4, :]     # row i+1 exists

        for l in range(n_layers):
            s1_ref, b1_ref, w1_ref, b2_ref, w2_ref = w_refs[5 * l:5 * l + 5]
            c_act = c_in + l * c_out          # active channels, static per layer

            # ---- bottleneck: BN1 -> ReLU -> 1x1 conv (BN2 scale folded) ----
            xs = out_ref[0, 0:c_act, :]                          # (c_act, HW)
            h = jnp.maximum(xs * s1_ref[...] + b1_ref[...], 0.0)
            a = jnp.maximum(
                jnp.dot(w1_ref[...], h, preferred_element_type=jnp.float32)
                + b2_ref[...], 0.0)                              # (c_mid, HW)

            # ---- 3x3 conv, padding=1: rolled taps + 9 accumulated matmuls --
            # a_l(:, p) = a(:, j-1), a_r(:, p) = a(:, j+1); zero at the edges.
            a_l = pltpu.roll(a, 1, axis=1) * m_left
            a_r = pltpu.roll(a, HW - 1, axis=1) * m_right

            rows = []
            for kh in range(3):
                # Sum of the three horizontal taps of kernel row kh, evaluated
                # at every spatial row.  w2_ref[kh, kw] is (c_out, c_mid).
                rows.append(
                    jnp.dot(w2_ref[kh, 0], a_l,
                            preferred_element_type=jnp.float32)
                    + jnp.dot(w2_ref[kh, 1], a,
                              preferred_element_type=jnp.float32)
                    + jnp.dot(w2_ref[kh, 2], a_r,
                              preferred_element_type=jnp.float32))

            # Vertical taps: output row i reads rows i-1 / i / i+1.
            y = (pltpu.roll(rows[0], W, axis=1) * m_up
                 + rows[1]
                 + pltpu.roll(rows[2], HW - W, axis=1) * m_down)

            # Append this layer's features to the resident slab (in VMEM; the
            # final HBM store of the full slab is lane-dense).
            out_ref[0, c_act:c_act + c_out, :] = y

    return kernel


# ---------------------------- pallas_call wrapper ----------------------------

def _full_spec(shape):
    nd = len(shape)

    def index_map(n):
        return (0,) * nd

    return pl.BlockSpec(shape, index_map)


def dense_block_apply(x_nchw, params):
    N, c_in, H, W = x_nchw.shape
    HW = H * W
    n_layers = len(params)
    c_out = params[0]["w2_k"].shape[2]
    c_mid = params[0]["w2_k"].shape[3]
    c_total = c_in + n_layers * c_out

    # Channel-major, flattened spatial: free reshape, no transpose.
    x_flat = x_nchw.reshape(N, c_in, HW).astype(jnp.float32)

    # 0/1 edge masks for the 3x3 halo taps, built once outside the kernel.
    pos = jnp.arange(HW, dtype=jnp.int32)
    col = pos % W
    edge_masks = jnp.stack([col >= 1,          # column j-1 exists
                            col <= W - 2,      # column j+1 exists
                            pos >= W,          # row i-1 exists
                            pos < HW - W],     # row i+1 exists
                           axis=0).astype(jnp.float32)          # (4, HW)

    args = [x_flat, edge_masks]
    in_specs = [pl.BlockSpec((1, c_in, HW), lambda n: (n, 0, 0)),
                _full_spec(edge_masks.shape)]
    for p in params:
        for name in ("s1_col", "b1_col", "w1sT", "b2_col", "w2_k"):
            arr = p[name]
            args.append(arr)
            in_specs.append(_full_spec(arr.shape))

    kernel = _make_dense_block_kernel(n_layers, c_in, c_out, c_mid, H, W)
    out = pl.pallas_call(
        kernel,
        out_shape=jax.ShapeDtypeStruct((N, c_total, HW), jnp.float32),
        grid=(N,),
        in_specs=in_specs,
        out_specs=pl.BlockSpec((1, c_total, HW), lambda n: (n, 0, 0)),
        compiler_params=pltpu.CompilerParams(
            dimension_semantics=("parallel",),
            vmem_limit_bytes=48 * 1024 * 1024),
    )(*args)
    return out.reshape(N, c_total, H, W)          # NCHW, free reshape


# ------------------------------- model glue ----------------------------------

def _fold_bn(gamma, beta, mean, var, eps=1e-5):
    s = gamma / jnp.sqrt(var + eps)
    return s, beta - mean * s


def _weight_norm(v, g):
    # v: (Cout, Cin, kh, kw), g: (Cout,) -> g * v / ||v||_(1,2,3)
    norm = jnp.sqrt(jnp.sum(v * v, axis=(1, 2, 3), keepdims=True))
    return v * (g.reshape(-1, 1, 1, 1) / norm)


def init_dense_layer_params(key, in_channels, out_channels):
    mid = 4 * out_channels
    ks = jax.random.split(key, 12)
    # BatchNorm2d(in_channels), eval mode, folded
    g1 = jax.random.uniform(ks[0], (in_channels,), minval=0.5, maxval=1.5)
    beta1 = 0.1 * jax.random.normal(ks[1], (in_channels,))
    mean1 = 0.1 * jax.random.normal(ks[2], (in_channels,))
    var1 = jax.random.uniform(ks[3], (in_channels,), minval=0.5, maxval=1.5)
    s1, b1 = _fold_bn(g1, beta1, mean1, var1)
    # WeightNormConv2d(in_channels, mid, 1x1, bias=False)
    v1 = 0.2 * jax.random.normal(ks[4], (mid, in_channels, 1, 1))
    gg1 = jax.random.uniform(ks[5], (mid,), minval=0.5, maxval=1.5)
    w1_oi = _weight_norm(v1, gg1)[:, :, 0, 0]                   # (mid, Cin)
    # BatchNorm2d(mid), eval mode, folded
    g2 = jax.random.uniform(ks[6], (mid,), minval=0.5, maxval=1.5)
    beta2 = 0.1 * jax.random.normal(ks[7], (mid,))
    mean2 = 0.1 * jax.random.normal(ks[8], (mid,))
    var2 = jax.random.uniform(ks[9], (mid,), minval=0.5, maxval=1.5)
    s2, b2 = _fold_bn(g2, beta2, mean2, var2)
    # WeightNormConv2d(mid, out_channels, 3x3, pad=1, bias=False)
    v2 = 0.2 * jax.random.normal(ks[10], (out_channels, mid, 3, 3))
    gg2 = jax.random.uniform(ks[11], (out_channels,), minval=0.5, maxval=1.5)
    w2_oihw = _weight_norm(v2, gg2)                             # (Cout, mid, 3, 3)

    f32 = jnp.float32
    return {
        # reference (unfolded) params, NHWC conventions
        "s1": s1.astype(f32), "b1": b1.astype(f32),
        "w1": jnp.transpose(w1_oi, (1, 0)).astype(f32),         # (Cin, mid)
        "s2": s2.astype(f32), "b2": b2.astype(f32),
        "w2_hwio": jnp.transpose(w2_oihw, (2, 3, 1, 0)).astype(f32),
        # kernel params, channel-major; BN2 scale folded into the 1x1 rows
        "s1_col": s1.reshape(-1, 1).astype(f32),                # (Cin, 1)
        "b1_col": b1.reshape(-1, 1).astype(f32),                # (Cin, 1)
        "w1sT": (w1_oi * s2[:, None]).astype(f32),              # (mid, Cin)
        "b2_col": b2.reshape(-1, 1).astype(f32),                # (mid, 1)
        "w2_k": jnp.transpose(w2_oihw, (2, 3, 0, 1)).astype(f32),  # (3,3,Cout,mid)
    }


def init_dense_block_params(key, n_layers, in_channels, out_channels):
    keys = jax.random.split(key, n_layers)
    return [init_dense_layer_params(keys[i], in_channels + i * out_channels,
                                    out_channels)
            for i in range(n_layers)]


# ----------------------------- pure-JAX reference ----------------------------

def _dense_layer_ref(x_nhwc, p):
    h = jnp.maximum(x_nhwc * p["s1"] + p["b1"], 0.0)
    t = jnp.einsum("nhwc,co->nhwo", h, p["w1"],
                   precision=jax.lax.Precision.HIGHEST)
    a = jnp.maximum(t * p["s2"] + p["b2"], 0.0)
    return jax.lax.conv_general_dilated(
        a, p["w2_hwio"], window_strides=(1, 1), padding=((1, 1), (1, 1)),
        dimension_numbers=("NHWC", "HWIO", "NHWC"),
        precision=jax.lax.Precision.HIGHEST)


def dense_block_ref(x_nchw, params):
    x = jnp.transpose(x_nchw, (0, 2, 3, 1))
    outputs = [x]
    for p in params:
        outputs.append(_dense_layer_ref(jnp.concatenate(outputs, axis=-1), p))
    return jnp.transpose(jnp.concatenate(outputs, axis=-1), (0, 3, 1, 2))


# ------------------------------------ main ------------------------------------

if __name__ == "__main__":
    n_layers, in_channels, out_channels = 3, 4, 4
    N, H, W = 2, 16, 16

    key = jax.random.PRNGKey(0)
    kx, kp = jax.random.split(key)
    x = jax.random.normal(kx, (N, in_channels, H, W), dtype=jnp.float32)
    params = init_dense_block_params(kp, n_layers, in_channels, out_channels)

    out = jax.jit(dense_block_apply)(x, params)
    out = jax.block_until_ready(out)

    expected_c = in_channels + n_layers * out_channels
    assert out.shape == (N, expected_c, H, W), out.shape

    # Tolerance note: the kernel uses the MXU's default f32 matmul path while
    # the reference uses Precision.HIGHEST; 2e-3 absorbs the difference (same
    # as the previously validated version).
    ref = jax.block_until_ready(dense_block_ref(x, params))
    assert jnp.allclose(out, ref, atol=2e-3, rtol=2e-3), (
        float(jnp.max(jnp.abs(out - ref))))

    print("KERNEL_OK")
</pallas_src>

<mosaic_0001>
module attributes {stable_mosaic.version = 11 : i64} {
  func.func @kernel(%arg0: i32, %arg1: memref<1x4x256xf32, #tpu.memory_space<vmem>>, %arg2: memref<4x256xf32, #tpu.memory_space<vmem>>, %arg3: memref<4x1xf32, #tpu.memory_space<vmem>>, %arg4: memref<4x1xf32, #tpu.memory_space<vmem>>, %arg5: memref<16x4xf32, #tpu.memory_space<vmem>>, %arg6: memref<16x1xf32, #tpu.memory_space<vmem>>, %arg7: memref<3x3x4x16xf32, #tpu.memory_space<vmem>>, %arg8: memref<8x1xf32, #tpu.memory_space<vmem>>, %arg9: memref<8x1xf32, #tpu.memory_space<vmem>>, %arg10: memref<16x8xf32, #tpu.memory_space<vmem>>, %arg11: memref<16x1xf32, #tpu.memory_space<vmem>>, %arg12: memref<3x3x4x16xf32, #tpu.memory_space<vmem>>, %arg13: memref<12x1xf32, #tpu.memory_space<vmem>>, %arg14: memref<12x1xf32, #tpu.memory_space<vmem>>, %arg15: memref<16x12xf32, #tpu.memory_space<vmem>>, %arg16: memref<16x1xf32, #tpu.memory_space<vmem>>, %arg17: memref<3x3x4x16xf32, #tpu.memory_space<vmem>>, %arg18: memref<1x16x256xf32, #tpu.memory_space<vmem>>) attributes {dimension_semantics = [#tpu.dimension_semantics<parallel>], iteration_bounds = array<i64: 2>, scalar_prefetch = 0 : i64, scratch_operands = 0 : i64, tpu.core_type = #tpu.core_type<tc>, window_params = [{transform_indices = @transform_0, window_bounds = array<i64: 1, 4, 256>}, {pipeline_mode = #tpu.pipeline_mode<synchronous>, transform_indices = @transform_1, window_bounds = array<i64: 4, 256>}, {pipeline_mode = #tpu.pipeline_mode<synchronous>, transform_indices = @transform_2, window_bounds = array<i64: 4, 1>}, {pipeline_mode = #tpu.pipeline_mode<synchronous>, transform_indices = @transform_3, window_bounds = array<i64: 4, 1>}, {pipeline_mode = #tpu.pipeline_mode<synchronous>, transform_indices = @transform_4, window_bounds = array<i64: 16, 4>}, {pipeline_mode = #tpu.pipeline_mode<synchronous>, transform_indices = @transform_5, window_bounds = array<i64: 16, 1>}, {pipeline_mode = #tpu.pipeline_mode<synchronous>, transform_indices = @transform_6, window_bounds = array<i64: 3, 3, 4, 16>}, {pipeline_mode = #tpu.pipeline_mode<synchronous>, transform_indices = @transform_7, window_bounds = array<i64: 8, 1>}, {pipeline_mode = #tpu.pipeline_mode<synchronous>, transform_indices = @transform_8, window_bounds = array<i64: 8, 1>}, {pipeline_mode = #tpu.pipeline_mode<synchronous>, transform_indices = @transform_9, window_bounds = array<i64: 16, 8>}, {pipeline_mode = #tpu.pipeline_mode<synchronous>, transform_indices = @transform_10, window_bounds = array<i64: 16, 1>}, {pipeline_mode = #tpu.pipeline_mode<synchronous>, transform_indices = @transform_11, window_bounds = array<i64: 3, 3, 4, 16>}, {pipeline_mode = #tpu.pipeline_mode<synchronous>, transform_indices = @transform_12, window_bounds = array<i64: 12, 1>}, {pipeline_mode = #tpu.pipeline_mode<synchronous>, transform_indices = @transform_13, window_bounds = array<i64: 12, 1>}, {pipeline_mode = #tpu.pipeline_mode<synchronous>, transform_indices = @transform_14, window_bounds = array<i64: 16, 12>}, {pipeline_mode = #tpu.pipeline_mode<synchronous>, transform_indices = @transform_15, window_bounds = array<i64: 16, 1>}, {pipeline_mode = #tpu.pipeline_mode<synchronous>, transform_indices = @transform_16, window_bounds = array<i64: 3, 3, 4, 16>}, {transform_indices = @transform_17, window_bounds = array<i64: 1, 16, 256>}]} {
    %c0 = arith.constant 0 : index
    %c0_0 = arith.constant 0 : index
    %c0_1 = arith.constant 0 : index
    %0 = vector.load %arg1[%c0, %c0_0, %c0_1] : memref<1x4x256xf32, #tpu.memory_space<vmem>>, vector<1x4x256xf32>
    %1 = vector.shape_cast %0 : vector<1x4x256xf32> to vector<4x256xf32>
    %c0_2 = arith.constant 0 : index
    %c0_3 = arith.constant 0 : index
    %c0_4 = arith.constant 0 : index
    %2 = vector.load %arg18[%c0_2, %c0_3, %c0_4] : memref<1x16x256xf32, #tpu.memory_space<vmem>>, vector<1x4x256xf32>
    %3 = vector.shape_cast %2 : vector<1x4x256xf32> to vector<4x256xf32>
    %4 = vector.shape_cast %1 : vector<4x256xf32> to vector<1x4x256xf32>
    tpu.vector_store %arg18[%c0_2, %c0_3, %c0_4], %4 {strides = array<i32>} : memref<1x16x256xf32, #tpu.memory_space<vmem>>, vector<1x4x256xf32>,
    %c0_5 = arith.constant 0 : index
    %c0_6 = arith.constant 0 : index
    %5 = vector.load %arg2[%c0_5, %c0_6] : memref<4x256xf32, #tpu.memory_space<vmem>>, vector<4x256xf32>
    %6 = vector.extract_strided_slice %5 {offsets = [0, 0], sizes = [1, 256], strides = [1, 1]} : vector<4x256xf32> to vector<1x256xf32>
    %7 = vector.extract_strided_slice %5 {offsets = [1, 0], sizes = [1, 256], strides = [1, 1]} : vector<4x256xf32> to vector<1x256xf32>
    %8 = vector.extract_strided_slice %5 {offsets = [2, 0], sizes = [1, 256], strides = [1, 1]} : vector<4x256xf32> to vector<1x256xf32>
    %9 = vector.extract_strided_slice %5 {offsets = [3, 0], sizes = [1, 256], strides = [1, 1]} : vector<4x256xf32> to vector<1x256xf32>
    %c0_7 = arith.constant 0 : index
    %c0_8 = arith.constant 0 : index
    %c0_9 = arith.constant 0 : index
    %10 = vector.load %arg18[%c0_7, %c0_8, %c0_9] : memref<1x16x256xf32, #tpu.memory_space<vmem>>, vector<1x4x256xf32>
    %11 = vector.shape_cast %10 : vector<1x4x256xf32> to vector<4x256xf32>
    %c0_10 = arith.constant 0 : index
    %c0_11 = arith.constant 0 : index
    %12 = vector.load %arg3[%c0_10, %c0_11] : memref<4x1xf32, #tpu.memory_space<vmem>>, vector<4x1xf32>
    %13 = vector.broadcast %12 : vector<4x1xf32> to vector<4x256xf32>
    %14 = arith.mulf %11, %13 : vector<4x256xf32>
    %c0_12 = arith.constant 0 : index
    %c0_13 = arith.constant 0 : index
    %15 = vector.load %arg4[%c0_12, %c0_13] : memref<4x1xf32, #tpu.memory_space<vmem>>, vector<4x1xf32>
    %16 = vector.broadcast %15 : vector<4x1xf32> to vector<4x256xf32>
    %17 = arith.addf %14, %16 : vector<4x256xf32>
    %cst = arith.constant 0.000000e+00 : f32
    %18 = vector.broadcast %cst : f32 to vector<4x256xf32>
    %19 = arith.maximumf %17, %18 : vector<4x256xf32>
    %c0_14 = arith.constant 0 : index
    %c0_15 = arith.constant 0 : index
    %20 = vector.load %arg5[%c0_14, %c0_15] : memref<16x4xf32, #tpu.memory_space<vmem>>, vector<16x4xf32>
    %cst_16 = arith.constant dense<0.000000e+00> : vector<16x256xf32>
    %21 = tpu.matmul %20, %19, %cst_16 {dimension_numbers = #tpu.dot_dimension_numbers<[1], [0], [0], [1], [0, 0, 1, 1], [], []>} : vector<16x4xf32>, vector<4x256xf32>, vector<16x256xf32> -> vector<16x256xf32>
    %c0_17 = arith.constant 0 : index
    %c0_18 = arith.constant 0 : index
    %22 = vector.load %arg6[%c0_17, %c0_18] : memref<16x1xf32, #tpu.memory_space<vmem>>, vector<16x1xf32>
    %23 = vector.broadcast %22 : vector<16x1xf32> to vector<16x256xf32>
    %24 = arith.addf %21, %23 : vector<16x256xf32>
    %cst_19 = arith.constant 0.000000e+00 : f32
    %25 = vector.broadcast %cst_19 : f32 to vector<16x256xf32>
    %26 = arith.maximumf %24, %25 : vector<16x256xf32>
    %c1_i32 = arith.constant 1 : i32
    %27 = tpu.dynamic_rotate %26 by %c1_i32 dim 1 : vector<16x256xf32>, i32 -> vector<16x256xf32>
    %28 = vector.broadcast %6 : vector<1x256xf32> to vector<16x256xf32>
    %29 = arith.mulf %27, %28 : vector<16x256xf32>
    %c255_i32 = arith.constant 255 : i32
    %30 = tpu.dynamic_rotate %26 by %c255_i32 dim 1 : vector<16x256xf32>, i32 -> vector<16x256xf32>
    %31 = vector.broadcast %7 : vector<1x256xf32> to vector<16x256xf32>
    %32 = arith.mulf %30, %31 : vector<16x256xf32>
    %c0_20 = arith.constant 0 : index
    %c0_21 = arith.constant 0 : index
    %c0_22 = arith.constant 0 : index
    %c0_23 = arith.constant 0 : index
    %33 = vector.load %arg7[%c0_20, %c0_21, %c0_22, %c0_23] : memref<3x3x4x16xf32, #tpu.memory_space<vmem>>, vector<1x1x4x16xf32>
    %34 = vector.shape_cast %33 : vector<1x1x4x16xf32> to vector<4x16xf32>
    %cst_24 = arith.constant dense<0.000000e+00> : vector<4x256xf32>
    %35 = tpu.matmul %34, %29, %cst_24 {dimension_numbers = #tpu.dot_dimension_numbers<[1], [0], [0], [1], [0, 0, 1, 1], [], []>} : vector<4x16xf32>, vector<16x256xf32>, vector<4x256xf32> -> vector<4x256xf32>
    %c0_25 = arith.constant 0 : index
    %c1 = arith.constant 1 : index
    %c0_26 = arith.constant 0 : index
    %c0_27 = arith.constant 0 : index
    %36 = vector.load %arg7[%c0_25, %c1, %c0_26, %c0_27] : memref<3x3x4x16xf32, #tpu.memory_space<vmem>>, vector<1x1x4x16xf32>
    %37 = vector.shape_cast %36 : vector<1x1x4x16xf32> to vector<4x16xf32>
    %cst_28 = arith.constant dense<0.000000e+00> : vector<4x256xf32>
    %38 = tpu.matmul %37, %26, %cst_28 {dimension_numbers = #tpu.dot_dimension_numbers<[1], [0], [0], [1], [0, 0, 1, 1], [], []>} : vector<4x16xf32>, vector<16x256xf32>, vector<4x256xf32> -> vector<4x256xf32>
    %39 = arith.addf %35, %38 : vector<4x256xf32>
    %c0_29 = arith.constant 0 : index
    %c2 = arith.constant 2 : index
    %c0_30 = arith.constant 0 : index
    %c0_31 = arith.constant 0 : index
    %40 = vector.load %arg7[%c0_29, %c2, %c0_30, %c0_31] : memref<3x3x4x16xf32, #tpu.memory_space<vmem>>, vector<1x1x4x16xf32>
    %41 = vector.shape_cast %40 : vector<1x1x4x16xf32> to vector<4x16xf32>
    %cst_32 = arith.constant dense<0.000000e+00> : vector<4x256xf32>
    %42 = tpu.matmul %41, %32, %cst_32 {dimension_numbers = #tpu.dot_dimension_numbers<[1], [0], [0], [1], [0, 0, 1, 1], [], []>} : vector<4x16xf32>, vector<16x256xf32>, vector<4x256xf32> -> vector<4x256xf32>
    %43 = arith.addf %39, %42 : vector<4x256xf32>
    %c1_33 = arith.constant 1 : index
    %c0_34 = arith.constant 0 : index
    %c0_35 = arith.constant 0 : index
    %c0_36 = arith.constant 0 : index
    %44 = vector.load %arg7[%c1_33, %c0_34, %c0_35, %c0_36] : memref<3x3x4x16xf32, #tpu.memory_space<vmem>>, vector<1x1x4x16xf32>
    %45 = vector.shape_cast %44 : vector<1x1x4x16xf32> to vector<4x16xf32>
    %cst_37 = arith.constant dense<0.000000e+00> : vector<4x256xf32>
    %46 = tpu.matmul %45, %29, %cst_37 {dimension_numbers = #tpu.dot_dimension_numbers<[1], [0], [0], [1], [0, 0, 1, 1], [], []>} : vector<4x16xf32>, vector<16x256xf32>, vector<4x256xf32> -> vector<4x256xf32>
    %c1_38 = arith.constant 1 : index
    %c1_39 = arith.constant 1 : index
    %c0_40 = arith.constant 0 : index
    %c0_41 = arith.constant 0 : index
    %47 = vector.load %arg7[%c1_38, %c1_39, %c0_40, %c0_41] : memref<3x3x4x16xf32, #tpu.memory_space<vmem>>, vector<1x1x4x16xf32>
    %48 = vector.shape_cast %47 : vector<1x1x4x16xf32> to vector<4x16xf32>
    %cst_42 = arith.constant dense<0.000000e+00> : vector<4x256xf32>
    %49 = tpu.matmul %48, %26, %cst_42 {dimension_numbers = #tpu.dot_dimension_numbers<[1], [0], [0], [1], [0, 0, 1, 1], [], []>} : vector<4x16xf32>, vector<16x256xf32>, vector<4x256xf32> -> vector<4x256xf32>
    %50 = arith.addf %46, %49 : vector<4x256xf32>
    %c1_43 = arith.constant 1 : index
    %c2_44 = arith.constant 2 : index
    %c0_45 = arith.constant 0 : index
    %c0_46 = arith.constant 0 : index
    %51 = vector.load %arg7[%c1_43, %c2_44, %c0_45, %c0_46] : memref<3x3x4x16xf32, #tpu.memory_space<vmem>>, vector<1x1x4x16xf32>
    %52 = vector.shape_cast %51 : vector<1x1x4x16xf32> to vector<4x16xf32>
    %cst_47 = arith.constant dense<0.000000e+00> : vector<4x256xf32>
    %53 = tpu.matmul %52, %32, %cst_47 {dimension_numbers = #tpu.dot_dimension_numbers<[1], [0], [0], [1], [0, 0, 1, 1], [], []>} : vector<4x16xf32>, vector<16x256xf32>, vector<4x256xf32> -> vector<4x256xf32>
    %54 = arith.addf %50, %53 : vector<4x256xf32>
    %c2_48 = arith.constant 2 : index
    %c0_49 = arith.constant 0 : index
    %c0_50 = arith.constant 0 : index
    %c0_51 = arith.constant 0 : index
    %55 = vector.load %arg7[%c2_48, %c0_49, %c0_50, %c0_51] : memref<3x3x4x16xf32, #tpu.memory_space<vmem>>, vector<1x1x4x16xf32>
    %56 = vector.shape_cast %55 : vector<1x1x4x16xf32> to vector<4x16xf32>
    %cst_52 = arith.constant dense<0.000000e+00> : vector<4x256xf32>
    %57 = tpu.matmul %56, %29, %cst_52 {dimension_numbers = #tpu.dot_dimension_numbers<[1], [0], [0], [1], [0, 0, 1, 1], [], []>} : vector<4x16xf32>, vector<16x256xf32>, vector<4x256xf32> -> vector<4x256xf32>
    %c2_53 = arith.constant 2 : index
    %c1_54 = arith.constant 1 : index
    %c0_55 = arith.constant 0 : index
    %c0_56 = arith.constant 0 : index
    %58 = vector.load %arg7[%c2_53, %c1_54, %c0_55, %c0_56] : memref<3x3x4x16xf32, #tpu.memory_space<vmem>>, vector<1x1x4x16xf32>
    %59 = vector.shape_cast %58 : vector<1x1x4x16xf32> to vector<4x16xf32>
    %cst_57 = arith.constant dense<0.000000e+00> : vector<4x256xf32>
    %60 = tpu.matmul %59, %26, %cst_57 {dimension_numbers = #tpu.dot_dimension_numbers<[1], [0], [0], [1], [0, 0, 1, 1], [], []>} : vector<4x16xf32>, vector<16x256xf32>, vector<4x256xf32> -> vector<4x256xf32>
    %61 = arith.addf %57, %60 : vector<4x256xf32>
    %c2_58 = arith.constant 2 : index
    %c2_59 = arith.constant 2 : index
    %c0_60 = arith.constant 0 : index
    %c0_61 = arith.constant 0 : index
    %62 = vector.load %arg7[%c2_58, %c2_59, %c0_60, %c0_61] : memref<3x3x4x16xf32, #tpu.memory_space<vmem>>, vector<1x1x4x16xf32>
    %63 = vector.shape_cast %62 : vector<1x1x4x16xf32> to vector<4x16xf32>
    %cst_62 = arith.constant dense<0.000000e+00> : vector<4x256xf32>
    %64 = tpu.matmul %63, %32, %cst_62 {dimension_numbers = #tpu.dot_dimension_numbers<[1], [0], [0], [1], [0, 0, 1, 1], [], []>} : vector<4x16xf32>, vector<16x256xf32>, vector<4x256xf32> -> vector<4x256xf32>
    %65 = arith.addf %61, %64 : vector<4x256xf32>
    %c16_i32 = arith.constant 16 : i32
    %66 = tpu.dynamic_rotate %43 by %c16_i32 dim 1 : vector<4x256xf32>, i32 -> vector<4x256xf32>
    %67 = vector.broadcast %8 : vector<1x256xf32> to vector<4x256xf32>
    %68 = arith.mulf %66, %67 : vector<4x256xf32>
    %69 = arith.addf %68, %54 : vector<4x256xf32>
    %c240_i32 = arith.constant 240 : i32
    %70 = tpu.dynamic_rotate %65 by %c240_i32 dim 1 : vector<4x256xf32>, i32 -> vector<4x256xf32>
    %71 = vector.broadcast %9 : vector<1x256xf32> to vector<4x256xf32>
    %72 = arith.mulf %70, %71 : vector<4x256xf32>
    %73 = arith.addf %69, %72 : vector<4x256xf32>
    %c0_63 = arith.constant 0 : index
    %c4 = arith.constant 4 : index
    %c0_64 = arith.constant 0 : index
    %74 = vector.load %arg18[%c0_63, %c4, %c0_64] : memref<1x16x256xf32, #tpu.memory_space<vmem>>, vector<1x4x256xf32>
    %75 = vector.shape_cast %74 : vector<1x4x256xf32> to vector<4x256xf32>
    %76 = vector.shape_cast %73 : vector<4x256xf32> to vector<1x4x256xf32>
    tpu.vector_store %arg18[%c0_63, %c4, %c0_64], %76 {strides = array<i32>} : memref<1x16x256xf32, #tpu.memory_space<vmem>>, vector<1x4x256xf32>,
    %c0_65 = arith.constant 0 : index
    %c0_66 = arith.constant 0 : index
    %c0_67 = arith.constant 0 : index
    %77 = vector.load %arg18[%c0_65, %c0_66, %c0_67] : memref<1x16x256xf32, #tpu.memory_space<vmem>>, vector<1x8x256xf32>
    %78 = vector.shape_cast %77 : vector<1x8x256xf32> to vector<8x256xf32>
    %c0_68 = arith.constant 0 : index
    %c0_69 = arith.constant 0 : index
    %79 = vector.load %arg8[%c0_68, %c0_69] : memref<8x1xf32, #tpu.memory_space<vmem>>, vector<8x1xf32>
    %80 = vector.broadcast %79 : vector<8x1xf32> to vector<8x256xf32>
    %81 = arith.mulf %78, %80 : vector<8x256xf32>
    %c0_70 = arith.constant 0 : index
    %c0_71 = arith.constant 0 : index
    %82 = vector.load %arg9[%c0_70, %c0_71] : memref<8x1xf32, #tpu.memory_space<vmem>>, vector<8x1xf32>
    %83 = vector.broadcast %82 : vector<8x1xf32> to vector<8x256xf32>
    %84 = arith.addf %81, %83 : vector<8x256xf32>
    %cst_72 = arith.constant 0.000000e+00 : f32
    %85 = vector.broadcast %cst_72 : f32 to vector<8x256xf32>
    %86 = arith.maximumf %84, %85 : vector<8x256xf32>
    %c0_73 = arith.constant 0 : index
    %c0_74 = arith.constant 0 : index
    %87 = vector.load %arg10[%c0_73, %c0_74] : memref<16x8xf32, #tpu.memory_space<vmem>>, vector<16x8xf32>
    %cst_75 = arith.constant dense<0.000000e+00> : vector<16x256xf32>
    %88 = tpu.matmul %87, %86, %cst_75 {dimension_numbers = #tpu.dot_dimension_numbers<[1], [0], [0], [1], [0, 0, 1, 1], [], []>} : vector<16x8xf32>, vector<8x256xf32>, vector<16x256xf32> -> vector<16x256xf32>
    %c0_76 = arith.constant 0 : index
    %c0_77 = arith.constant 0 : index
    %89 = vector.load %arg11[%c0_76, %c0_77] : memref<16x1xf32, #tpu.memory_space<vmem>>, vector<16x1xf32>
    %90 = vector.broadcast %89 : vector<16x1xf32> to vector<16x256xf32>
    %91 = arith.addf %88, %90 : vector<16x256xf32>
    %cst_78 = arith.constant 0.000000e+00 : f32
    %92 = vector.broadcast %cst_78 : f32 to vector<16x256xf32>
    %93 = arith.maximumf %91, %92 : vector<16x256xf32>
    %c1_i32_79 = arith.constant 1 : i32
    %94 = tpu.dynamic_rotate %93 by %c1_i32_79 dim 1 : vector<16x256xf32>, i32 -> vector<16x256xf32>
    %95 = vector.broadcast %6 : vector<1x256xf32> to vector<16x256xf32>
    %96 = arith.mulf %94, %95 : vector<16x256xf32>
    %c255_i32_80 = arith.constant 255 : i32
    %97 = tpu.dynamic_rotate %93 by %c255_i32_80 dim 1 : vector<16x256xf32>, i32 -> vector<16x256xf32>
    %98 = vector.broadcast %7 : vector<1x256xf32> to vector<16x256xf32>
    %99 = arith.mulf %97, %98 : vector<16x256xf32>
    %c0_81 = arith.constant 0 : index
    %c0_82 = arith.constant 0 : index
    %c0_83 = arith.constant 0 : index
    %c0_84 = arith.constant 0 : index
    %100 = vector.load %arg12[%c0_81, %c0_82, %c0_83, %c0_84] : memref<3x3x4x16xf32, #tpu.memory_space<vmem>>, vector<1x1x4x16xf32>
    %101 = vector.shape_cast %100 : vector<1x1x4x16xf32> to vector<4x16xf32>
    %cst_85 = arith.constant dense<0.000000e+00> : vector<4x256xf32>
    %102 = tpu.matmul %101, %96, %cst_85 {dimension_numbers = #tpu.dot_dimension_numbers<[1], [0], [0], [1], [0, 0, 1, 1], [], []>} : vector<4x16xf32>, vector<16x256xf32>, vector<4x256xf32> -> vector<4x256xf32>
    %c0_86 = arith.constant 0 : index
    %c1_87 = arith.constant 1 : index
    %c0_88 = arith.constant 0 : index
    %c0_89 = arith.constant 0 : index
    %103 = vector.load %arg12[%c0_86, %c1_87, %c0_88, %c0_89] : memref<3x3x4x16xf32, #tpu.memory_space<vmem>>, vector<1x1x4x16xf32>
    %104 = vector.shape_cast %103 : vector<1x1x4x16xf32> to vector<4x16xf32>
    %cst_90 = arith.constant dense<0.000000e+00> : vector<4x256xf32>
    %105 = tpu.matmul %104, %93, %cst_90 {dimension_numbers = #tpu.dot_dimension_numbers<[1], [0], [0], [1], [0, 0, 1, 1], [], []>} : vector<4x16xf32>, vector<16x256xf32>, vector<4x256xf32> -> vector<4x256xf32>
    %106 = arith.addf %102, %105 : vector<4x256xf32>
    %c0_91 = arith.constant 0 : index
    %c2_92 = arith.constant 2 : index
    %c0_93 = arith.constant 0 : index
    %c0_94 = arith.constant 0 : index
    %107 = vector.load %arg12[%c0_91, %c2_92, %c0_93, %c0_94] : memref<3x3x4x16xf32, #tpu.memory_space<vmem>>, vector<1x1x4x16xf32>
    %108 = vector.shape_cast %107 : vector<1x1x4x16xf32> to vector<4x16xf32>
    %cst_95 = arith.constant dense<0.000000e+00> : vector<4x256xf32>
    %109 = tpu.matmul %108, %99, %cst_95 {dimension_numbers = #tpu.dot_dimension_numbers<[1], [0], [0], [1], [0, 0, 1, 1], [], []>} : vector<4x16xf32>, vector<16x256xf32>, vector<4x256xf32> -> vector<4x256xf32>
    %110 = arith.addf %106, %109 : vector<4x256xf32>
    %c1_96 = arith.constant 1 : index
    %c0_97 = arith.constant 0 : index
    %c0_98 = arith.constant 0 : index
    %c0_99 = arith.constant 0 : index
    %111 = vector.load %arg12[%c1_96, %c0_97, %c0_98, %c0_99] : memref<3x3x4x16xf32, #tpu.memory_space<vmem>>, vector<1x1x4x16xf32>
    %112 = vector.shape_cast %111 : vector<1x1x4x16xf32> to vector<4x16xf32>
    %cst_100 = arith.constant dense<0.000000e+00> : vector<4x256xf32>
    %113 = tpu.matmul %112, %96, %cst_100 {dimension_numbers = #tpu.dot_dimension_numbers<[1], [0], [0], [1], [0, 0, 1, 1], [], []>} : vector<4x16xf32>, vector<16x256xf32>, vector<4x256xf32> -> vector<4x256xf32>
    %c1_101 = arith.constant 1 : index
    %c1_102 = arith.constant 1 : index
    %c0_103 = arith.constant 0 : index
    %c0_104 = arith.constant 0 : index
    %114 = vector.load %arg12[%c1_101, %c1_102, %c0_103, %c0_104] : memref<3x3x4x16xf32, #tpu.memory_space<vmem>>, vector<1x1x4x16xf32>
    %115 = vector.shape_cast %114 : vector<1x1x4x16xf32> to vector<4x16xf32>
    %cst_105 = arith.constant dense<0.000000e+00> : vector<4x256xf32>
    %116 = tpu.matmul %115, %93, %cst_105 {dimension_numbers = #tpu.dot_dimension_numbers<[1], [0], [0], [1], [0, 0, 1, 1], [], []>} : vector<4x16xf32>, vector<16x256xf32>, vector<4x256xf32> -> vector<4x256xf32>
    %117 = arith.addf %113, %116 : vector<4x256xf32>
    %c1_106 = arith.constant 1 : index
    %c2_107 = arith.constant 2 : index
    %c0_108 = arith.constant 0 : index
    %c0_109 = arith.constant 0 : index
    %118 = vector.load %arg12[%c1_106, %c2_107, %c0_108, %c0_109] : memref<3x3x4x16xf32, #tpu.memory_space<vmem>>, vector<1x1x4x16xf32>
    %119 = vector.shape_cast %118 : vector<1x1x4x16xf32> to vector<4x16xf32>
    %cst_110 = arith.constant dense<0.000000e+00> : vector<4x256xf32>
    %120 = tpu.matmul %119, %99, %cst_110 {dimension_numbers = #tpu.dot_dimension_numbers<[1], [0], [0], [1], [0, 0, 1, 1], [], []>} : vector<4x16xf32>, vector<16x256xf32>, vector<4x256xf32> -> vector<4x256xf32>
    %121 = arith.addf %117, %120 : vector<4x256xf32>
    %c2_111 = arith.constant 2 : index
    %c0_112 = arith.constant 0 : index
    %c0_113 = arith.constant 0 : index
    %c0_114 = arith.constant 0 : index
    %122 = vector.load %arg12[%c2_111, %c0_112, %c0_113, %c0_114] : memref<3x3x4x16xf32, #tpu.memory_space<vmem>>, vector<1x1x4x16xf32>
    %123 = vector.shape_cast %122 : vector<1x1x4x16xf32> to vector<4x16xf32>
    %cst_115 = arith.constant dense<0.000000e+00> : vector<4x256xf32>
    %124 = tpu.matmul %123, %96, %cst_115 {dimension_numbers = #tpu.dot_dimension_numbers<[1], [0], [0], [1], [0, 0, 1, 1], [], []>} : vector<4x16xf32>, vector<16x256xf32>, vector<4x256xf32> -> vector<4x256xf32>
    %c2_116 = arith.constant 2 : index
    %c1_117 = arith.constant 1 : index
    %c0_118 = arith.constant 0 : index
    %c0_119 = arith.constant 0 : index
    %125 = vector.load %arg12[%c2_116, %c1_117, %c0_118, %c0_119] : memref<3x3x4x16xf32, #tpu.memory_space<vmem>>, vector<1x1x4x16xf32>
    %126 = vector.shape_cast %125 : vector<1x1x4x16xf32> to vector<4x16xf32>
    %cst_120 = arith.constant dense<0.000000e+00> : vector<4x256xf32>
    %127 = tpu.matmul %126, %93, %cst_120 {dimension_numbers = #tpu.dot_dimension_numbers<[1], [0], [0], [1], [0, 0, 1, 1], [], []>} : vector<4x16xf32>, vector<16x256xf32>, vector<4x256xf32> -> vector<4x256xf32>
    %128 = arith.addf %124, %127 : vector<4x256xf32>
    %c2_121 = arith.constant 2 : index
    %c2_122 = arith.constant 2 : index
    %c0_123 = arith.constant 0 : index
    %c0_124 = arith.constant 0 : index
    %129 = vector.load %arg12[%c2_121, %c2_122, %c0_123, %c0_124] : memref<3x3x4x16xf32, #tpu.memory_space<vmem>>, vector<1x1x4x16xf32>
    %130 = vector.shape_cast %129 : vector<1x1x4x16xf32> to vector<4x16xf32>
    %cst_125 = arith.constant dense<0.000000e+00> : vector<4x256xf32>
    %131 = tpu.matmul %130, %99, %cst_125 {dimension_numbers = #tpu.dot_dimension_numbers<[1], [0], [0], [1], [0, 0, 1, 1], [], []>} : vector<4x16xf32>, vector<16x256xf32>, vector<4x256xf32> -> vector<4x256xf32>
    %132 = arith.addf %128, %131 : vector<4x256xf32>
    %c16_i32_126 = arith.constant 16 : i32
    %133 = tpu.dynamic_rotate %110 by %c16_i32_126 dim 1 : vector<4x256xf32>, i32 -> vector<4x256xf32>
    %134 = vector.broadcast %8 : vector<1x256xf32> to vector<4x256xf32>
    %135 = arith.mulf %133, %134 : vector<4x256xf32>
    %136 = arith.addf %135, %121 : vector<4x256xf32>
    %c240_i32_127 = arith.constant 240 : i32
    %137 = tpu.dynamic_rotate %132 by %c240_i32_127 dim 1 : vector<4x256xf32>, i32 -> vector<4x256xf32>
    %138 = vector.broadcast %9 : vector<1x256xf32> to vector<4x256xf32>
    %139 = arith.mulf %137, %138 : vector<4x256xf32>
    %140 = arith.addf %136, %139 : vector<4x256xf32>
    %c0_128 = arith.constant 0 : index
    %c8 = arith.constant 8 : index
    %c0_129 = arith.constant 0 : index
    %141 = vector.load %arg18[%c0_128, %c8, %c0_129] : memref<1x16x256xf32, #tpu.memory_space<vmem>>, vector<1x4x256xf32>
    %142 = vector.shape_cast %141 : vector<1x4x256xf32> to vector<4x256xf32>
    %143 = vector.shape_cast %140 : vector<4x256xf32> to vector<1x4x256xf32>
    tpu.vector_store %arg18[%c0_128, %c8, %c0_129], %143 {strides = array<i32>} : memref<1x16x256xf32, #tpu.memory_space<vmem>>, vector<1x4x256xf32>,
    %c0_130 = arith.constant 0 : index
    %c0_131 = arith.constant 0 : index
    %c0_132 = arith.constant 0 : index
    %144 = vector.load %arg18[%c0_130, %c0_131, %c0_132] : memref<1x16x256xf32, #tpu.memory_space<vmem>>, vector<1x12x256xf32>
    %145 = vector.shape_cast %144 : vector<1x12x256xf32> to vector<12x256xf32>
    %c0_133 = arith.constant 0 : index
    %c0_134 = arith.constant 0 : index
    %146 = vector.load %arg13[%c0_133, %c0_134] : memref<12x1xf32, #tpu.memory_space<vmem>>, vector<12x1xf32>
    %147 = vector.broadcast %146 : vector<12x1xf32> to vector<12x256xf32>
    %148 = arith.mulf %145, %147 : vector<12x256xf32>
    %c0_135 = arith.constant 0 : index
    %c0_136 = arith.constant 0 : index
    %149 = vector.load %arg14[%c0_135, %c0_136] : memref<12x1xf32, #tpu.memory_space<vmem>>, vector<12x1xf32>
    %150 = vector.broadcast %149 : vector<12x1xf32> to vector<12x256xf32>
    %151 = arith.addf %148, %150 : vector<12x256xf32>
    %cst_137 = arith.constant 0.000000e+00 : f32
    %152 = vector.broadcast %cst_137 : f32 to vector<12x256xf32>
    %153 = arith.maximumf %151, %152 : vector<12x256xf32>
    %c0_138 = arith.constant 0 : index
    %c0_139 = arith.constant 0 : index
    %154 = vector.load %arg15[%c0_138, %c0_139] : memref<16x12xf32, #tpu.memory_space<vmem>>, vector<16x12xf32>
    %cst_140 = arith.constant dense<0.000000e+00> : vector<16x256xf32>
    %155 = tpu.matmul %154, %153, %cst_140 {dimension_numbers = #tpu.dot_dimension_numbers<[1], [0], [0], [1], [0, 0, 1, 1], [], []>} : vector<16x12xf32>, vector<12x256xf32>, vector<16x256xf32> -> vector<16x256xf32>
    %c0_141 = arith.constant 0 : index
    %c0_142 = arith.constant 0 : index
    %156 = vector.load %arg16[%c0_141, %c0_142] : memref<16x1xf32, #tpu.memory_space<vmem>>, vector<16x1xf32>
    %157 = vector.broadcast %156 : vector<16x1xf32> to vector<16x256xf32>
    %158 = arith.addf %155, %157 : vector<16x256xf32>
    %cst_143 = arith.constant 0.000000e+00 : f32
    %159 = vector.broadcast %cst_143 : f32 to vector<16x256xf32>
    %160 = arith.maximumf %158, %159 : vector<16x256xf32>
    %c1_i32_144 = arith.constant 1 : i32
    %161 = tpu.dynamic_rotate %160 by %c1_i32_144 dim 1 : vector<16x256xf32>, i32 -> vector<16x256xf32>
    %162 = vector.broadcast %6 : vector<1x256xf32> to vector<16x256xf32>
    %163 = arith.mulf %161, %162 : vector<16x256xf32>
    %c255_i32_145 = arith.constant 255 : i32
    %164 = tpu.dynamic_rotate %160 by %c255_i32_145 dim 1 : vector<16x256xf32>, i32 -> vector<16x256xf32>
    %165 = vector.broadcast %7 : vector<1x256xf32> to vector<16x256xf32>
    %166 = arith.mulf %164, %165 : vector<16x256xf32>
    %c0_146 = arith.constant 0 : index
    %c0_147 = arith.constant 0 : index
    %c0_148 = arith.constant 0 : index
    %c0_149 = arith.constant 0 : index
    %167 = vector.load %arg17[%c0_146, %c0_147, %c0_148, %c0_149] : memref<3x3x4x16xf32, #tpu.memory_space<vmem>>, vector<1x1x4x16xf32>
    %168 = vector.shape_cast %167 : vector<1x1x4x16xf32> to vector<4x16xf32>
    %cst_150 = arith.constant dense<0.000000e+00> : vector<4x256xf32>
    %169 = tpu.matmul %168, %163, %cst_150 {dimension_numbers = #tpu.dot_dimension_numbers<[1], [0], [0], [1], [0, 0, 1, 1], [], []>} : vector<4x16xf32>, vector<16x256xf32>, vector<4x256xf32> -> vector<4x256xf32>
    %c0_151 = arith.constant 0 : index
    %c1_152 = arith.constant 1 : index
    %c0_153 = arith.constant 0 : index
    %c0_154 = arith.constant 0 : index
    %170 = vector.load %arg17[%c0_151, %c1_152, %c0_153, %c0_154] : memref<3x3x4x16xf32, #tpu.memory_space<vmem>>, vector<1x1x4x16xf32>
    %171 = vector.shape_cast %170 : vector<1x1x4x16xf32> to vector<4x16xf32>
    %cst_155 = arith.constant dense<0.000000e+00> : vector<4x256xf32>
    %172 = tpu.matmul %171, %160, %cst_155 {dimension_numbers = #tpu.dot_dimension_numbers<[1], [0], [0], [1], [0, 0, 1, 1], [], []>} : vector<4x16xf32>, vector<16x256xf32>, vector<4x256xf32> -> vector<4x256xf32>
    %173 = arith.addf %169, %172 : vector<4x256xf32>
    %c0_156 = arith.constant 0 : index
    %c2_157 = arith.constant 2 : index
    %c0_158 = arith.constant 0 : index
    %c0_159 = arith.constant 0 : index
    %174 = vector.load %arg17[%c0_156, %c2_157, %c0_158, %c0_159] : memref<3x3x4x16xf32, #tpu.memory_space<vmem>>, vector<1x1x4x16xf32>
    %175 = vector.shape_cast %174 : vector<1x1x4x16xf32> to vector<4x16xf32>
    %cst_160 = arith.constant dense<0.000000e+00> : vector<4x256xf32>
    %176 = tpu.matmul %175, %166, %cst_160 {dimension_numbers = #tpu.dot_dimension_numbers<[1], [0], [0], [1], [0, 0, 1, 1], [], []>} : vector<4x16xf32>, vector<16x256xf32>, vector<4x256xf32> -> vector<4x256xf32>
    %177 = arith.addf %173, %176 : vector<4x256xf32>
    %c1_161 = arith.constant 1 : index
    %c0_162 = arith.constant 0 : index
    %c0_163 = arith.constant 0 : index
    %c0_164 = arith.constant 0 : index
    %178 = vector.load %arg17[%c1_161, %c0_162, %c0_163, %c0_164] : memref<3x3x4x16xf32, #tpu.memory_space<vmem>>, vector<1x1x4x16xf32>
    %179 = vector.shape_cast %178 : vector<1x1x4x16xf32> to vector<4x16xf32>
    %cst_165 = arith.constant dense<0.000000e+00> : vector<4x256xf32>
    %180 = tpu.matmul %179, %163, %cst_165 {dimension_numbers = #tpu.dot_dimension_numbers<[1], [0], [0], [1], [0, 0, 1, 1], [], []>} : vector<4x16xf32>, vector<16x256xf32>, vector<4x256xf32> -> vector<4x256xf32>
    %c1_166 = arith.constant 1 : index
    %c1_167 = arith.constant 1 : index
    %c0_168 = arith.constant 0 : index
    %c0_169 = arith.constant 0 : index
    %181 = vector.load %arg17[%c1_166, %c1_167, %c0_168, %c0_169] : memref<3x3x4x16xf32, #tpu.memory_space<vmem>>, vector<1x1x4x16xf32>
    %182 = vector.shape_cast %181 : vector<1x1x4x16xf32> to vector<4x16xf32>
    %cst_170 = arith.constant dense<0.000000e+00> : vector<4x256xf32>
    %183 = tpu.matmul %182, %160, %cst_170 {dimension_numbers = #tpu.dot_dimension_numbers<[1], [0], [0], [1], [0, 0, 1, 1], [], []>} : vector<4x16xf32>, vector<16x256xf32>, vector<4x256xf32> -> vector<4x256xf32>
    %184 = arith.addf %180, %183 : vector<4x256xf32>
    %c1_171 = arith.constant 1 : index
    %c2_172 = arith.constant 2 : index
    %c0_173 = arith.constant 0 : index
    %c0_174 = arith.constant 0 : index
    %185 = vector.load %arg17[%c1_171, %c2_172, %c0_173, %c0_174] : memref<3x3x4x16xf32, #tpu.memory_space<vmem>>, vector<1x1x4x16xf32>
    %186 = vector.shape_cast %185 : vector<1x1x4x16xf32> to vector<4x16xf32>
    %cst_175 = arith.constant dense<0.000000e+00> : vector<4x256xf32>
    %187 = tpu.matmul %186, %166, %cst_175 {dimension_numbers = #tpu.dot_dimension_numbers<[1], [0], [0], [1], [0, 0, 1, 1], [], []>} : vector<4x16xf32>, vector<16x256xf32>, vector<4x256xf32> -> vector<4x256xf32>
    %188 = arith.addf %184, %187 : vector<4x256xf32>
    %c2_176 = arith.constant 2 : index
    %c0_177 = arith.constant 0 : index
    %c0_178 = arith.constant 0 : index
    %c0_179 = arith.constant 0 : index
    %189 = vector.load %arg17[%c2_176, %c0_177, %c0_178, %c0_179] : memref<3x3x4x16xf32, #tpu.memory_space<vmem>>, vector<1x1x4x16xf32>
    %190 = vector.shape_cast %189 : vector<1x1x4x16xf32> to vector<4x16xf32>
    %cst_180 = arith.constant dense<0.000000e+00> : vector<4x256xf32>
    %191 = tpu.matmul %190, %163, %cst_180 {dimension_numbers = #tpu.dot_dimension_numbers<[1], [0], [0], [1], [0, 0, 1, 1], [], []>} : vector<4x16xf32>, vector<16x256xf32>, vector<4x256xf32> -> vector<4x256xf32>
    %c2_181 = arith.constant 2 : index
    %c1_182 = arith.constant 1 : index
    %c0_183 = arith.constant 0 : index
    %c0_184 = arith.constant 0 : index
    %192 = vector.load %arg17[%c2_181, %c1_182, %c0_183, %c0_184] : memref<3x3x4x16xf32, #tpu.memory_space<vmem>>, vector<1x1x4x16xf32>
    %193 = vector.shape_cast %192 : vector<1x1x4x16xf32> to vector<4x16xf32>
    %cst_185 = arith.constant dense<0.000000e+00> : vector<4x256xf32>
    %194 = tpu.matmul %193, %160, %cst_185 {dimension_numbers = #tpu.dot_dimension_numbers<[1], [0], [0], [1], [0, 0, 1, 1], [], []>} : vector<4x16xf32>, vector<16x256xf32>, vector<4x256xf32> -> vector<4x256xf32>
    %195 = arith.addf %191, %194 : vector<4x256xf32>
    %c2_186 = arith.constant 2 : index
    %c2_187 = arith.constant 2 : index
    %c0_188 = arith.constant 0 : index
    %c0_189 = arith.constant 0 : index
    %196 = vector.load %arg17[%c2_186, %c2_187, %c0_188, %c0_189] : memref<3x3x4x16xf32, #tpu.memory_space<vmem>>, vector<1x1x4x16xf32>
    %197 = vector.shape_cast %196 : vector<1x1x4x16xf32> to vector<4x16xf32>
    %cst_190 = arith.constant dense<0.000000e+00> : vector<4x256xf32>
    %198 = tpu.matmul %197, %166, %cst_190 {dimension_numbers = #tpu.dot_dimension_numbers<[1], [0], [0], [1], [0, 0, 1, 1], [], []>} : vector<4x16xf32>, vector<16x256xf32>, vector<4x256xf32> -> vector<4x256xf32>
    %199 = arith.addf %195, %198 : vector<4x256xf32>
    %c16_i32_191 = arith.constant 16 : i32
    %200 = tpu.dynamic_rotate %177 by %c16_i32_191 dim 1 : vector<4x256xf32>, i32 -> vector<4x256xf32>
    %201 = vector.broadcast %8 : vector<1x256xf32> to vector<4x256xf32>
    %202 = arith.mulf %200, %201 : vector<4x256xf32>
    %203 = arith.addf %202, %188 : vector<4x256xf32>
    %c240_i32_192 = arith.constant 240 : i32
    %204 = tpu.dynamic_rotate %199 by %c240_i32_192 dim 1 : vector<4x256xf32>, i32 -> vector<4x256xf32>
    %205 = vector.broadcast %9 : vector<1x256xf32> to vector<4x256xf32>
    %206 = arith.mulf %204, %205 : vector<4x256xf32>
    %207 = arith.addf %203, %206 : vector<4x256xf32>
    %c0_193 = arith.constant 0 : index
    %c12 = arith.constant 12 : index
    %c0_194 = arith.constant 0 : index
    %208 = vector.load %arg18[%c0_193, %c12, %c0_194] : memref<1x16x256xf32, #tpu.memory_space<vmem>>, vector<1x4x256xf32>
    %209 = vector.shape_cast %208 : vector<1x4x256xf32> to vector<4x256xf32>
    %210 = vector.shape_cast %207 : vector<4x256xf32> to vector<1x4x256xf32>
    tpu.vector_store %arg18[%c0_193, %c12, %c0_194], %210 {strides = array<i32>} : memref<1x16x256xf32, #tpu.memory_space<vmem>>, vector<1x4x256xf32>,
    return
  }
  func.func @transform_0(%arg0: i32) -> (i32, i32, i32) {
    %c0_i32 = arith.constant 0 : i32
    %c0_i32_0 = arith.constant 0 : i32
    %c0_i32_1 = arith.constant 0 : i32
    return %arg0, %c0_i32, %c0_i32_0 : i32, i32, i32
  }
  func.func @transform_1(%arg0: i32) -> (i32, i32) {
    %c0_i32 = arith.constant 0 : i32
    %c0_i32_0 = arith.constant 0 : i32
    %c0_i32_1 = arith.constant 0 : i32
    return %c0_i32, %c0_i32_0 : i32, i32
  }
  func.func @transform_2(%arg0: i32) -> (i32, i32) {
    %c0_i32 = arith.constant 0 : i32
    %c0_i32_0 = arith.constant 0 : i32
    %c0_i32_1 = arith.constant 0 : i32
    return %c0_i32, %c0_i32_0 : i32, i32
  }
  func.func @transform_3(%arg0: i32) -> (i32, i32) {
    %c0_i32 = arith.constant 0 : i32
    %c0_i32_0 = arith.constant 0 : i32
    %c0_i32_1 = arith.constant 0 : i32
    return %c0_i32, %c0_i32_0 : i32, i32
  }
  func.func @transform_4(%arg0: i32) -> (i32, i32) {
    %c0_i32 = arith.constant 0 : i32
    %c0_i32_0 = arith.constant 0 : i32
    %c0_i32_1 = arith.constant 0 : i32
    return %c0_i32, %c0_i32_0 : i32, i32
  }
  func.func @transform_5(%arg0: i32) -> (i32, i32) {
    %c0_i32 = arith.constant 0 : i32
    %c0_i32_0 = arith.constant 0 : i32
    %c0_i32_1 = arith.constant 0 : i32
    return %c0_i32, %c0_i32_0 : i32, i32
  }
  func.func @transform_6(%arg0: i32) -> (i32, i32, i32, i32) {
    %c0_i32 = arith.constant 0 : i32
    %c0_i32_0 = arith.constant 0 : i32
    %c0_i32_1 = arith.constant 0 : i32
    %c0_i32_2 = arith.constant 0 : i32
    %c0_i32_3 = arith.constant 0 : i32
    return %c0_i32, %c0_i32_0, %c0_i32_1, %c0_i32_2 : i32, i32, i32, i32
  }
  func.func @transform_7(%arg0: i32) -> (i32, i32) {
    %c0_i32 = arith.constant 0 : i32
    %c0_i32_0 = arith.constant 0 : i32
    %c0_i32_1 = arith.constant 0 : i32
    return %c0_i32, %c0_i32_0 : i32, i32
  }
  func.func @transform_8(%arg0: i32) -> (i32, i32) {
    %c0_i32 = arith.constant 0 : i32
    %c0_i32_0 = arith.constant 0 : i32
    %c0_i32_1 = arith.constant 0 : i32
    return %c0_i32, %c0_i32_0 : i32, i32
  }
  func.func @transform_9(%arg0: i32) -> (i32, i32) {
    %c0_i32 = arith.constant 0 : i32
    %c0_i32_0 = arith.constant 0 : i32
    %c0_i32_1 = arith.constant 0 : i32
    return %c0_i32, %c0_i32_0 : i32, i32
  }
  func.func @transform_10(%arg0: i32) -> (i32, i32) {
    %c0_i32 = arith.constant 0 : i32
    %c0_i32_0 = arith.constant 0 : i32
    %c0_i32_1 = arith.constant 0 : i32
    return %c0_i32, %c0_i32_0 : i32, i32
  }
  func.func @transform_11(%arg0: i32) -> (i32, i32, i32, i32) {
    %c0_i32 = arith.constant 0 : i32
    %c0_i32_0 = arith.constant 0 : i32
    %c0_i32_1 = arith.constant 0 : i32
    %c0_i32_2 = arith.constant 0 : i32
    %c0_i32_3 = arith.constant 0 : i32
    return %c0_i32, %c0_i32_0, %c0_i32_1, %c0_i32_2 : i32, i32, i32, i32
  }
  func.func @transform_12(%arg0: i32) -> (i32, i32) {
    %c0_i32 = arith.constant 0 : i32
    %c0_i32_0 = arith.constant 0 : i32
    %c0_i32_1 = arith.constant 0 : i32
    return %c0_i32, %c0_i32_0 : i32, i32
  }
  func.func @transform_13(%arg0: i32) -> (i32, i32) {
    %c0_i32 = arith.constant 0 : i32
    %c0_i32_0 = arith.constant 0 : i32
    %c0_i32_1 = arith.constant 0 : i32
    return %c0_i32, %c0_i32_0 : i32, i32
  }
  func.func @transform_14(%arg0: i32) -> (i32, i32) {
    %c0_i32 = arith.constant 0 : i32
    %c0_i32_0 = arith.constant 0 : i32
    %c0_i32_1 = arith.constant 0 : i32
    return %c0_i32, %c0_i32_0 : i32, i32
  }
  func.func @transform_15(%arg0: i32) -> (i32, i32) {
    %c0_i32 = arith.constant 0 : i32
    %c0_i32_0 = arith.constant 0 : i32
    %c0_i32_1 = arith.constant 0 : i32
    return %c0_i32, %c0_i32_0 : i32, i32
  }
  func.func @transform_16(%arg0: i32) -> (i32, i32, i32, i32) {
    %c0_i32 = arith.constant 0 : i32
    %c0_i32_0 = arith.constant 0 : i32
    %c0_i32_1 = arith.constant 0 : i32
    %c0_i32_2 = arith.constant 0 : i32
    %c0_i32_3 = arith.constant 0 : i32
    return %c0_i32, %c0_i32_0, %c0_i32_1, %c0_i32_2 : i32, i32, i32, i32
  }
  func.func @transform_17(%arg0: i32) -> (i32, i32, i32) {
    %c0_i32 = arith.constant 0 : i32
    %c0_i32_0 = arith.constant 0 : i32
    %c0_i32_1 = arith.constant 0 : i32
    return %arg0, %c0_i32, %c0_i32_0 : i32, i32, i32
  }
}

</mosaic_0001>

<llo_original>
// kernel: dense_block_apply.1
$region0: #{dense_block_apply.1}
  #allocation0 [shape = 'u32[]', space=smem, size = 0x4, offset = 0x4, fixed_abs, tag = 'smem constant byte address 0x4 - core index']
  #allocation1 [shape = 'u32[144,128]{1,0:T(1,128)}', space=vmem, size = 0x12000, scoped, tag = 'internal scratch']
  %s0 = inlined_call_operand.vmem [shape: f32[2,4,256], index: 0, kind: input, shape index: {}]
  %s1 = inlined_call_operand.vmem [shape: f32[4,256], index: 1, kind: input, shape index: {}]
  %s2 = inlined_call_operand.vmem [shape: f32[4,1], index: 2, kind: input, shape index: {}]
  %s3 = inlined_call_operand.vmem [shape: f32[4,1], index: 3, kind: input, shape index: {}]
  %s4 = inlined_call_operand.vmem [shape: f32[16,4], index: 4, kind: input, shape index: {}]
  %s5 = inlined_call_operand.vmem [shape: f32[16,1], index: 5, kind: input, shape index: {}]
  %s6 = inlined_call_operand.vmem [shape: f32[3,3,4,16], index: 6, kind: input, shape index: {}]
  %s7 = inlined_call_operand.vmem [shape: f32[8,1], index: 7, kind: input, shape index: {}]
  %s8 = inlined_call_operand.vmem [shape: f32[8,1], index: 8, kind: input, shape index: {}]
  %s9 = inlined_call_operand.vmem [shape: f32[16,8], index: 9, kind: input, shape index: {}]
  %s10 = inlined_call_operand.vmem [shape: f32[16,1], index: 10, kind: input, shape index: {}]
  %s11 = inlined_call_operand.vmem [shape: f32[3,3,4,16], index: 11, kind: input, shape index: {}]
  %s12 = inlined_call_operand.vmem [shape: f32[12,1], index: 12, kind: input, shape index: {}]
  %s13 = inlined_call_operand.vmem [shape: f32[12,1], index: 13, kind: input, shape index: {}]
  %s14 = inlined_call_operand.vmem [shape: f32[16,12], index: 14, kind: input, shape index: {}]
  %s15 = inlined_call_operand.vmem [shape: f32[16,1], index: 15, kind: input, shape index: {}]
  %s16 = inlined_call_operand.vmem [shape: f32[3,3,4,16], index: 16, kind: input, shape index: {}]
  %s17 = inlined_call_operand.vmem [shape: f32[2,16,256], index: 17, kind: output, shape index: {}]
  %s18 = sld [smem:[#allocation0]]
  $region101: #{dense_block_apply.1} parent=0
    _
  %s20 = ssub.s32 1, %s18
  %s21 = scalar_select 0, %s20, %s18
  loop: start=0, step=1, limit=4
  $region2: #{dense_block_apply.1} parent=0 // loop_pre_header
    _
  $region3: #{dense_block_apply.1} parent=0 // loop_header
    %s23 = sphi 0, %s27
    %p24 = scmp.ge.s32.totalorder %s23, 4
    %s33 = sphi 0, %s35
    %s36 = sphi 0, %s33
    %s37 = sphi 0, %s36
    %s53 = sphi 0, %s37
    %s57 = sphi 0, %s57
    %s59 = sphi 0, %s57
    %s60 = sphi 0, %s59
    %s74 = sphi 0, %s60
    %s78 = sphi 0, %s78
    %s80 = sphi 0, %s78
    %s81 = sphi 0, %s80
    %s95 = sphi 0, %s81
    %s99 = sphi 0, %s99
    %s101 = sphi 0, %s99
    %s102 = sphi 0, %s101
    %s116 = sphi 0, %s102
    %s120 = sphi 0, %s120
    %s122 = sphi 0, %s120
    %s123 = sphi 0, %s122
    %s137 = sphi 0, %s123
    %s141 = sphi 0, %s141
    %s143 = sphi 0, %s141
    %s144 = sphi 0, %s143
    %s158 = sphi 0, %s144
    %s162 = sphi 0, %s162
    %s164 = sphi 0, %s162
    %s165 = sphi 0, %s164
    %s179 = sphi 0, %s165
    %s183 = sphi 0, %s183
    %s185 = sphi 0, %s183
    %s186 = sphi 0, %s185
    %s200 = sphi 0, %s186
    %s204 = sphi 0, %s204
    %s206 = sphi 0, %s204
    %s207 = sphi 0, %s206
    %s221 = sphi 0, %s207
    %s225 = sphi 0, %s225
    %s227 = sphi 0, %s225
    %s228 = sphi 0, %s227
    %s242 = sphi 0, %s228
    %s246 = sphi 0, %s246
    %s248 = sphi 0, %s246
    %s249 = sphi 0, %s248
    %s263 = sphi 0, %s249
    %s267 = sphi 0, %s267
    %s269 = sphi 0, %s267
    %s270 = sphi 0, %s269
    %s284 = sphi 0, %s270
    %s288 = sphi 0, %s288
    %s290 = sphi 0, %s288
    %s291 = sphi 0, %s290
    %s305 = sphi 0, %s291
    %s309 = sphi 0, %s309
    %s311 = sphi 0, %s309
    %s312 = sphi 0, %s311
    %s326 = sphi 0, %s312
    %s330 = sphi 0, %s330
    %s332 = sphi 0, %s330
    %s333 = sphi 0, %s332
    %s347 = sphi 0, %s333
    %s351 = sphi 0, %s351
    %s353 = sphi 0, %s351
    %s354 = sphi 0, %s353
    %s368 = sphi 0, %s354
    %s372 = sphi 0, %s372
    %s374 = sphi 0, %s372
    %s375 = sphi 0, %s374
    %s389 = sphi 0, %s375
    %s395 = sphi 0, %s397
    %s398 = sphi 0, %s395
    %s399 = sphi 0, %s398
    %s415 = sphi 0, %s399
  $region4: #{dense_block_apply.1} parent=0 // loop_header_branch
    %26 = sbr.rel (%p24) target = $region8
  $region5: #{dense_block_apply.1} parent=0 // loop_body
    %s28 = ssub.s32 %s23, 1
    %s29 = ssub.s32 %s23, 2
    %s30 = sadd.s32 %s23, 1
    %s31 = ssub.s32 %s23, %s30
    %p32 = scmp.eq.s32.totalorder %s31, 0
    %s34 = sadd.s32 %s33, 1
    %s35 = scalar_select %p32, %s33, %s34
    %p38 = pneg %p32
    %p39 = scmp.eq.s32.totalorder %s23, 1
    %p40 = por %p38, %p39
    %p41 = scmp.ne.s32.totalorder %s33, %s36
    %p42 = scmp.eq.s32.totalorder %s23, 0
    %p43 = por %p41, %p42
    %p44 = scmp.ne.s32.totalorder %s33, %s36
    %p45 = scmp.eq.s32.totalorder %s28, 1
    %p46 = por %p44, %p45
    %p47 = scmp.ne.s32.totalorder %s36, %s37
    %p48 = scmp.eq.s32.totalorder %s28, 0
    %p49 = por %p47, %p48
    %p50 = scmp.ne.s32.totalorder %s36, %s37
    %p51 = scmp.eq.s32.totalorder %s29, 1
    %p52 = por %p50, %p51
    %p54 = scmp.ne.s32.totalorder %s37, %s53
    %p55 = scmp.eq.s32.totalorder %s29, 0
    %p56 = por %p54, %p55
    %s58 = sadd.s32 %s57, 1
    %p61 = scmp.eq.s32.totalorder %s23, 1
    %p62 = scmp.ne.s32.totalorder %s57, %s59
    %p63 = scmp.eq.s32.totalorder %s23, 0
    %p64 = por %p62, %p63
    %p65 = scmp.ne.s32.totalorder %s57, %s59
    %p66 = scmp.eq.s32.totalorder %s28, 1
    %p67 = por %p65, %p66
    %p68 = scmp.ne.s32.totalorder %s59, %s60
    %p69 = scmp.eq.s32.totalorder %s28, 0
    %p70 = por %p68, %p69
    %p71 = scmp.ne.s32.totalorder %s59, %s60
    %p72 = scmp.eq.s32.totalorder %s29, 1
    %p73 = por %p71, %p72
    %p75 = scmp.ne.s32.totalorder %s60, %s74
    %p76 = scmp.eq.s32.totalorder %s29, 0
    %p77 = por %p75, %p76
    %s79 = sadd.s32 %s78, 1
    %p82 = scmp.eq.s32.totalorder %s23, 1
    %p83 = scmp.ne.s32.totalorder %s78, %s80
    %p84 = scmp.eq.s32.totalorder %s23, 0
    %p85 = por %p83, %p84
    %p86 = scmp.ne.s32.totalorder %s78, %s80
    %p87 = scmp.eq.s32.totalorder %s28, 1
    %p88 = por %p86, %p87
    %p89 = scmp.ne.s32.totalorder %s80, %s81
    %p90 = scmp.eq.s32.totalorder %s28, 0
    %p91 = por %p89, %p90
    %p92 = scmp.ne.s32.totalorder %s80, %s81
    %p93 = scmp.eq.s32.totalorder %s29, 1
    %p94 = por %p92, %p93
    %p96 = scmp.ne.s32.totalorder %s81, %s95
    %p97 = scmp.eq.s32.totalorder %s29, 0
    %p98 = por %p96, %p97
    %s100 = sadd.s32 %s99, 1
    %p103 = scmp.eq.s32.totalorder %s23, 1
    %p104 = scmp.ne.s32.totalorder %s99, %s101
    %p105 = scmp.eq.s32.totalorder %s23, 0
    %p106 = por %p104, %p105
    %p107 = scmp.ne.s32.totalorder %s99, %s101
    %p108 = scmp.eq.s32.totalorder %s28, 1
    %p109 = por %p107, %p108
    %p110 = scmp.ne.s32.totalorder %s101, %s102
    %p111 = scmp.eq.s32.totalorder %s28, 0
    %p112 = por %p110, %p111
    %p113 = scmp.ne.s32.totalorder %s101, %s102
    %p114 = scmp.eq.s32.totalorder %s29, 1
    %p115 = por %p113, %p114
    %p117 = scmp.ne.s32.totalorder %s102, %s116
    %p118 = scmp.eq.s32.totalorder %s29, 0
    %p119 = por %p117, %p118
    %s121 = sadd.s32 %s120, 1
    %p124 = scmp.eq.s32.totalorder %s23, 1
    %p125 = scmp.ne.s32.totalorder %s120, %s122
    %p126 = scmp.eq.s32.totalorder %s23, 0
    %p127 = por %p125, %p126
    %p128 = scmp.ne.s32.totalorder %s120, %s122
    %p129 = scmp.eq.s32.totalorder %s28, 1
    %p130 = por %p128, %p129
    %p131 = scmp.ne.s32.totalorder %s122, %s123
    %p132 = scmp.eq.s32.totalorder %s28, 0
    %p133 = por %p131, %p132
    %p134 = scmp.ne.s32.totalorder %s122, %s123
    %p135 = scmp.eq.s32.totalorder %s29, 1
    %p136 = por %p134, %p135
    %p138 = scmp.ne.s32.totalorder %s123, %s137
    %p139 = scmp.eq.s32.totalorder %s29, 0
    %p140 = por %p138, %p139
    %s142 = sadd.s32 %s141, 1
    %p145 = scmp.eq.s32.totalorder %s23, 1
    %p146 = scmp.ne.s32.totalorder %s141, %s143
    %p147 = scmp.eq.s32.totalorder %s23, 0
    %p148 = por %p146, %p147
    %p149 = scmp.ne.s32.totalorder %s141, %s143
    %p150 = scmp.eq.s32.totalorder %s28, 1
    %p151 = por %p149, %p150
    %p152 = scmp.ne.s32.totalorder %s143, %s144
    %p153 = scmp.eq.s32.totalorder %s28, 0
    %p154 = por %p152, %p153
    %p155 = scmp.ne.s32.totalorder %s143, %s144
    %p156 = scmp.eq.s32.totalorder %s29, 1
    %p157 = por %p155, %p156
    %p159 = scmp.ne.s32.totalorder %s144, %s158
    %p160 = scmp.eq.s32.totalorder %s29, 0
    %p161 = por %p159, %p160
    %s163 = sadd.s32 %s162, 1
    %p166 = scmp.eq.s32.totalorder %s23, 1
    %p167 = scmp.ne.s32.totalorder %s162, %s164
    %p168 = scmp.eq.s32.totalorder %s23, 0
    %p169 = por %p167, %p168
    %p170 = scmp.ne.s32.totalorder %s162, %s164
    %p171 = scmp.eq.s32.totalorder %s28, 1
    %p172 = por %p170, %p171
    %p173 = scmp.ne.s32.totalorder %s164, %s165
    %p174 = scmp.eq.s32.totalorder %s28, 0
    %p175 = por %p173, %p174
    %p176 = scmp.ne.s32.totalorder %s164, %s165
    %p177 = scmp.eq.s32.totalorder %s29, 1
    %p178 = por %p176, %p177
    %p180 = scmp.ne.s32.totalorder %s165, %s179
    %p181 = scmp.eq.s32.totalorder %s29, 0
    %p182 = por %p180, %p181
    %s184 = sadd.s32 %s183, 1
    %p187 = scmp.eq.s32.totalorder %s23, 1
    %p188 = scmp.ne.s32.totalorder %s183, %s185
    %p189 = scmp.eq.s32.totalorder %s23, 0
    %p190 = por %p188, %p189
    %p191 = scmp.ne.s32.totalorder %s183, %s185
    %p192 = scmp.eq.s32.totalorder %s28, 1
    %p193 = por %p191, %p192
    %p194 = scmp.ne.s32.totalorder %s185, %s186
    %p195 = scmp.eq.s32.totalorder %s28, 0
    %p196 = por %p194, %p195
    %p197 = scmp.ne.s32.totalorder %s185, %s186
    %p198 = scmp.eq.s32.totalorder %s29, 1
    %p199 = por %p197, %p198
    %p201 = scmp.ne.s32.totalorder %s186, %s200
    %p202 = scmp.eq.s32.totalorder %s29, 0
    %p203 = por %p201, %p202
    %s205 = sadd.s32 %s204, 1
    %p208 = scmp.eq.s32.totalorder %s23, 1
    %p209 = scmp.ne.s32.totalorder %s204, %s206
    %p210 = scmp.eq.s32.totalorder %s23, 0
    %p211 = por %p209, %p210
    %p212 = scmp.ne.s32.totalorder %s204, %s206
    %p213 = scmp.eq.s32.totalorder %s28, 1
    %p214 = por %p212, %p213
    %p215 = scmp.ne.s32.totalorder %s206, %s207
    %p216 = scmp.eq.s32.totalorder %s28, 0
    %p217 = por %p215, %p216
    %p218 = scmp.ne.s32.totalorder %s206, %s207
    %p219 = scmp.eq.s32.totalorder %s29, 1
    %p220 = por %p218, %p219
    %p222 = scmp.ne.s32.totalorder %s207, %s221
    %p223 = scmp.eq.s32.totalorder %s29, 0
    %p224 = por %p222, %p223
    %s226 = sadd.s32 %s225, 1
    %p229 = scmp.eq.s32.totalorder %s23, 1
    %p230 = scmp.ne.s32.totalorder %s225, %s227
    %p231 = scmp.eq.s32.totalorder %s23, 0
    %p232 = por %p230, %p231
    %p233 = scmp.ne.s32.totalorder %s225, %s227
    %p234 = scmp.eq.s32.totalorder %s28, 1
    %p235 = por %p233, %p234
    %p236 = scmp.ne.s32.totalorder %s227, %s228
    %p237 = scmp.eq.s32.totalorder %s28, 0
    %p238 = por %p236, %p237
    %p239 = scmp.ne.s32.totalorder %s227, %s228
    %p240 = scmp.eq.s32.totalorder %s29, 1
    %p241 = por %p239, %p240
    %p243 = scmp.ne.s32.totalorder %s228, %s242
    %p244 = scmp.eq.s32.totalorder %s29, 0
    %p245 = por %p243, %p244
    %s247 = sadd.s32 %s246, 1
    %p250 = scmp.eq.s32.totalorder %s23, 1
    %p251 = scmp.ne.s32.totalorder %s246, %s248
    %p252 = scmp.eq.s32.totalorder %s23, 0
    %p253 = por %p251, %p252
    %p254 = scmp.ne.s32.totalorder %s246, %s248
    %p255 = scmp.eq.s32.totalorder %s28, 1
    %p256 = por %p254, %p255
    %p257 = scmp.ne.s32.totalorder %s248, %s249
    %p258 = scmp.eq.s32.totalorder %s28, 0
    %p259 = por %p257, %p258
    %p260 = scmp.ne.s32.totalorder %s248, %s249
    %p261 = scmp.eq.s32.totalorder %s29, 1
    %p262 = por %p260, %p261
    %p264 = scmp.ne.s32.totalorder %s249, %s263
    %p265 = scmp.eq.s32.totalorder %s29, 0
    %p266 = por %p264, %p265
    %s268 = sadd.s32 %s267, 1
    %p271 = scmp.eq.s32.totalorder %s23, 1
    %p272 = scmp.ne.s32.totalorder %s267, %s269
    %p273 = scmp.eq.s32.totalorder %s23, 0
    %p274 = por %p272, %p273
    %p275 = scmp.ne.s32.totalorder %s267, %s269
    %p276 = scmp.eq.s32.totalorder %s28, 1
    %p277 = por %p275, %p276
    %p278 = scmp.ne.s32.totalorder %s269, %s270
    %p279 = scmp.eq.s32.totalorder %s28, 0
    %p280 = por %p278, %p279
    %p281 = scmp.ne.s32.totalorder %s269, %s270
    %p282 = scmp.eq.s32.totalorder %s29, 1
    %p283 = por %p281, %p282
    %p285 = scmp.ne.s32.totalorder %s270, %s284
    %p286 = scmp.eq.s32.totalorder %s29, 0
    %p287 = por %p285, %p286
    %s289 = sadd.s32 %s288, 1
    %p292 = scmp.eq.s32.totalorder %s23, 1
    %p293 = scmp.ne.s32.totalorder %s288, %s290
    %p294 = scmp.eq.s32.totalorder %s23, 0
    %p295 = por %p293, %p294
    %p296 = scmp.ne.s32.totalorder %s288, %s290
    %p297 = scmp.eq.s32.totalorder %s28, 1
    %p298 = por %p296, %p297
    %p299 = scmp.ne.s32.totalorder %s290, %s291
    %p300 = scmp.eq.s32.totalorder %s28, 0
    %p301 = por %p299, %p300
    %p302 = scmp.ne.s32.totalorder %s290, %s291
    %p303 = scmp.eq.s32.totalorder %s29, 1
    %p304 = por %p302, %p303
    %p306 = scmp.ne.s32.totalorder %s291, %s305
    %p307 = scmp.eq.s32.totalorder %s29, 0
    %p308 = por %p306, %p307
    %s310 = sadd.s32 %s309, 1
    %p313 = scmp.eq.s32.totalorder %s23, 1
    %p314 = scmp.ne.s32.totalorder %s309, %s311
    %p315 = scmp.eq.s32.totalorder %s23, 0
    %p316 = por %p314, %p315
    %p317 = scmp.ne.s32.totalorder %s309, %s311
    %p318 = scmp.eq.s32.totalorder %s28, 1
    %p319 = por %p317, %p318
    %p320 = scmp.ne.s32.totalorder %s311, %s312
    %p321 = scmp.eq.s32.totalorder %s28, 0
    %p322 = por %p320, %p321
    %p323 = scmp.ne.s32.totalorder %s311, %s312
    %p324 = scmp.eq.s32.totalorder %s29, 1
    %p325 = por %p323, %p324
    %p327 = scmp.ne.s32.totalorder %s312, %s326
    %p328 = scmp.eq.s32.totalorder %s29, 0
    %p329 = por %p327, %p328
    %s331 = sadd.s32 %s330, 1
    %p334 = scmp.eq.s32.totalorder %s23, 1
    %p335 = scmp.ne.s32.totalorder %s330, %s332
    %p336 = scmp.eq.s32.totalorder %s23, 0
    %p337 = por %p335, %p336
    %p338 = scmp.ne.s32.totalorder %s330, %s332
    %p339 = scmp.eq.s32.totalorder %s28, 1
    %p340 = por %p338, %p339
    %p341 = scmp.ne.s32.totalorder %s332, %s333
    %p342 = scmp.eq.s32.totalorder %s28, 0
    %p343 = por %p341, %p342
    %p344 = scmp.ne.s32.totalorder %s332, %s333
    %p345 = scmp.eq.s32.totalorder %s29, 1
    %p346 = por %p344, %p345
    %p348 = scmp.ne.s32.totalorder %s333, %s347
    %p349 = scmp.eq.s32.totalorder %s29, 0
    %p350 = por %p348, %p349
    %s352 = sadd.s32 %s351, 1
    %p355 = scmp.eq.s32.totalorder %s23, 1
    %p356 = scmp.ne.s32.totalorder %s351, %s353
    %p357 = scmp.eq.s32.totalorder %s23, 0
    %p358 = por %p356, %p357
    %p359 = scmp.ne.s32.totalorder %s351, %s353
    %p360 = scmp.eq.s32.totalorder %s28, 1
    %p361 = por %p359, %p360
    %p362 = scmp.ne.s32.totalorder %s353, %s354
    %p363 = scmp.eq.s32.totalorder %s28, 0
    %p364 = por %p362, %p363
    %p365 = scmp.ne.s32.totalorder %s353, %s354
    %p366 = scmp.eq.s32.totalorder %s29, 1
    %p367 = por %p365, %p366
    %p369 = scmp.ne.s32.totalorder %s354, %s368
    %p370 = scmp.eq.s32.totalorder %s29, 0
    %p371 = por %p369, %p370
    %s373 = sadd.s32 %s372, 1
    %p376 = scmp.eq.s32.totalorder %s23, 1
    %p377 = scmp.ne.s32.totalorder %s372, %s374
    %p378 = scmp.eq.s32.totalorder %s23, 0
    %p379 = por %p377, %p378
    %p380 = scmp.ne.s32.totalorder %s372, %s374
    %p381 = scmp.eq.s32.totalorder %s28, 1
    %p382 = por %p380, %p381
    %p383 = scmp.ne.s32.totalorder %s374, %s375
    %p384 = scmp.eq.s32.totalorder %s28, 0
    %p385 = por %p383, %p384
    %p386 = scmp.ne.s32.totalorder %s374, %s375
    %p387 = scmp.eq.s32.totalorder %s29, 1
    %p388 = por %p386, %p387
    %p390 = scmp.ne.s32.totalorder %s375, %s389
    %p391 = scmp.eq.s32.totalorder %s29, 0
    %p392 = por %p390, %p391
    %s393 = ssub.s32 %s23, %s30
    %p394 = scmp.eq.s32.totalorder %s393, 0
    %s396 = sadd.s32 %s395, 1
    %s397 = scalar_select %p394, %s395, %s396
    %p400 = pneg %p394
    %p401 = scmp.eq.s32.totalorder %s23, 1
    %p402 = por %p400, %p401
    %p403 = scmp.ne.s32.totalorder %s395, %s398
    %p404 = scmp.eq.s32.totalorder %s23, 0
    %p405 = por %p403, %p404
    %p406 = scmp.ne.s32.totalorder %s395, %s398
    %p407 = scmp.eq.s32.totalorder %s28, 1
    %p408 = por %p406, %p407
    %p409 = scmp.ne.s32.totalorder %s398, %s399
    %p410 = scmp.eq.s32.totalorder %s28, 0
    %p411 = por %p409, %p410
    %p412 = scmp.ne.s32.totalorder %s398, %s399
    %p413 = scmp.eq.s32.totalorder %s29, 1
    %p414 = por %p412, %p413
    %p416 = scmp.ne.s32.totalorder %s399, %s415
    %p417 = scmp.eq.s32.totalorder %s29, 0
    %p418 = por %p416, %p417
    %p419 = scmp.le.s32.totalorder 1, %s23
    %p420 = scmp.lt.s32.totalorder %s23, 3
    %p421 = pnand %p419, %p420
    %p422 = pneg %p421
    // Predicated region
    $region9: #{dense_block_apply.1} parent=5 // pred_check
      _
    $region10: #{dense_block_apply.1} parent=5 // pred_check_branch
      %424 = sbr.rel (%p421) target = $region12
    $region11: #{dense_block_apply.1} parent=5 // pred_region
      %s425 = ssub.s32 %s23, 1
      // Predicated region
      $region13: #{dense_block_apply.1} parent=11 // pred_check
        %p426 = pneg %p70
      $region14: #{dense_block_apply.1} parent=11 // pred_check_branch
        %428 = sbr.rel (%p426) target = $region16
      $region15: #{dense_block_apply.1} parent=11 // pred_region
        _
      $region16: #{dense_block_apply.1} parent=11 // pred_fallthru
        _
      // Predicated region
      $region17: #{dense_block_apply.1} parent=11 // pred_check
        %p429 = pneg %p91
      $region18: #{dense_block_apply.1} parent=11 // pred_check_branch
        %431 = sbr.rel (%p429) target = $region20
      $region19: #{dense_block_apply.1} parent=11 // pred_region
        _
      $region20: #{dense_block_apply.1} parent=11 // pred_fallthru
        _
      // Predicated region
      $region21: #{dense_block_apply.1} parent=11 // pred_check
        %p432 = pneg %p112
      $region22: #{dense_block_apply.1} parent=11 // pred_check_branch
        %434 = sbr.rel (%p432) target = $region24
      $region23: #{dense_block_apply.1} parent=11 // pred_region
        _
      $region24: #{dense_block_apply.1} parent=11 // pred_fallthru
        _
      // Predicated region
      $region25: #{dense_block_apply.1} parent=11 // pred_check
        %p435 = pneg %p133
      $region26: #{dense_block_apply.1} parent=11 // pred_check_branch
        %437 = sbr.rel (%p435) target = $region28
      $region27: #{dense_block_apply.1} parent=11 // pred_region
        _
      $region28: #{dense_block_apply.1} parent=11 // pred_fallthru
        _
      // Predicated region
      $region29: #{dense_block_apply.1} parent=11 // pred_check
        %p438 = pneg %p154
      $region30: #{dense_block_apply.1} parent=11 // pred_check_branch
        %440 = sbr.rel (%p438) target = $region32
      $region31: #{dense_block_apply.1} parent=11 // pred_region
        _
      $region32: #{dense_block_apply.1} parent=11 // pred_fallthru
        _
      // Predicated region
      $region33: #{dense_block_apply.1} parent=11 // pred_check
        %p441 = pneg %p175
      $region34: #{dense_block_apply.1} parent=11 // pred_check_branch
        %443 = sbr.rel (%p441) target = $region36
      $region35: #{dense_block_apply.1} parent=11 // pred_region
        _
      $region36: #{dense_block_apply.1} parent=11 // pred_fallthru
        _
      // Predicated region
      $region37: #{dense_block_apply.1} parent=11 // pred_check
        %p444 = pneg %p196
      $region38: #{dense_block_apply.1} parent=11 // pred_check_branch
        %446 = sbr.rel (%p444) target = $region40
      $region39: #{dense_block_apply.1} parent=11 // pred_region
        _
      $region40: #{dense_block_apply.1} parent=11 // pred_fallthru
        _
      // Predicated region
      $region41: #{dense_block_apply.1} parent=11 // pred_check
        %p447 = pneg %p217
      $region42: #{dense_block_apply.1} parent=11 // pred_check_branch
        %449 = sbr.rel (%p447) target = $region44
      $region43: #{dense_block_apply.1} parent=11 // pred_region
        _
      $region44: #{dense_block_apply.1} parent=11 // pred_fallthru
        _
      // Predicated region
      $region45: #{dense_block_apply.1} parent=11 // pred_check
        %p450 = pneg %p238
      $region46: #{dense_block_apply.1} parent=11 // pred_check_branch
        %452 = sbr.rel (%p450) target = $region48
      $region47: #{dense_block_apply.1} parent=11 // pred_region
        _
      $region48: #{dense_block_apply.1} parent=11 // pred_fallthru
        _
      // Predicated region
      $region49: #{dense_block_apply.1} parent=11 // pred_check
        %p453 = pneg %p259
      $region50: #{dense_block_apply.1} parent=11 // pred_check_branch
        %455 = sbr.rel (%p453) target = $region52
      $region51: #{dense_block_apply.1} parent=11 // pred_region
        _
      $region52: #{dense_block_apply.1} parent=11 // pred_fallthru
        _
      // Predicated region
      $region53: #{dense_block_apply.1} parent=11 // pred_check
        %p456 = pneg %p280
      $region54: #{dense_block_apply.1} parent=11 // pred_check_branch
        %458 = sbr.rel (%p456) target = $region56
      $region55: #{dense_block_apply.1} parent=11 // pred_region
        _
      $region56: #{dense_block_apply.1} parent=11 // pred_fallthru
        _
      // Predicated region
      $region57: #{dense_block_apply.1} parent=11 // pred_check
        %p459 = pneg %p301
      $region58: #{dense_block_apply.1} parent=11 // pred_check_branch
        %461 = sbr.rel (%p459) target = $region60
      $region59: #{dense_block_apply.1} parent=11 // pred_region
        _
      $region60: #{dense_block_apply.1} parent=11 // pred_fallthru
        _
      // Predicated region
      $region61: #{dense_block_apply.1} parent=11 // pred_check
        %p462 = pneg %p322
      $region62: #{dense_block_apply.1} parent=11 // pred_check_branch
        %464 = sbr.rel (%p462) target = $region64
      $region63: #{dense_block_apply.1} parent=11 // pred_region
        _
      $region64: #{dense_block_apply.1} parent=11 // pred_fallthru
        _
      // Predicated region
      $region65: #{dense_block_apply.1} parent=11 // pred_check
        %p465 = pneg %p343
      $region66: #{dense_block_apply.1} parent=11 // pred_check_branch
        %467 = sbr.rel (%p465) target = $region68
      $region67: #{dense_block_apply.1} parent=11 // pred_region
        _
      $region68: #{dense_block_apply.1} parent=11 // pred_fallthru
        _
      // Predicated region
      $region69: #{dense_block_apply.1} parent=11 // pred_check
        %p468 = pneg %p364
      $region70: #{dense_block_apply.1} parent=11 // pred_check_branch
        %470 = sbr.rel (%p468) target = $region72
      $region71: #{dense_block_apply.1} parent=11 // pred_region
        _
      $region72: #{dense_block_apply.1} parent=11 // pred_fallthru
        _
      // Predicated region
      $region73: #{dense_block_apply.1} parent=11 // pred_check
        %p471 = pneg %p385
      $region74: #{dense_block_apply.1} parent=11 // pred_check_branch
        %473 = sbr.rel (%p471) target = $region76
      $region75: #{dense_block_apply.1} parent=11 // pred_region
        _
      $region76: #{dense_block_apply.1} parent=11 // pred_fallthru
        _
    $region12: #{dense_block_apply.1} parent=5 // pred_fallthru
      _
    %p474 = scmp.lt.s32.totalorder %s23, 2
    // Predicated region
    $region77: #{dense_block_apply.1} parent=5 // pred_check
      %p475 = pneg %p474
    $region78: #{dense_block_apply.1} parent=5 // pred_check_branch
      %477 = sbr.rel (%p475) target = $region80
    $region79: #{dense_block_apply.1} parent=5 // pred_region
      // Predicated region
      $region81: #{dense_block_apply.1} parent=79 // pred_check
        %p478 = pneg %p43
      $region82: #{dense_block_apply.1} parent=79 // pred_check_branch
        %480 = sbr.rel (%p478) target = $region84
      $region83: #{dense_block_apply.1} parent=79 // pred_region
        %p481 = scmp.lt.s32.totalorder %s23, 1
        %s482 = scalar_select %p481, %s23, 1
        %s483 = smul.addr %s482, 2
        %s484 = smul.addr %s483, 4
        %s485 = scalar_lea.vmem %s0, %s484
      $region84: #{dense_block_apply.1} parent=79 // pred_fallthru
        _
    $region80: #{dense_block_apply.1} parent=5 // pred_fallthru
      _
    %p486 = scmp.le.s32.totalorder 1, %s23
    %p487 = scmp.lt.s32.totalorder %s23, 3
    %p488 = pnand %p486, %p487
    %p489 = pneg %p488
    // Predicated region
    $region85: #{dense_block_apply.1} parent=5 // pred_check
      _
    $region86: #{dense_block_apply.1} parent=5 // pred_check_branch
      %491 = sbr.rel (%p488) target = $region88
    $region87: #{dense_block_apply.1} parent=5 // pred_region
      %s492 = ssub.s32 %s23, 1
      %p493 = scmp.lt.s32.totalorder %s28, 1
      %s494 = scalar_select %p493, %s28, 1
      %s495 = smul.addr %s494, 2
      %s496 = smul.addr %s495, 4
      %s497 = scalar_lea.vmem %s0, %s496
      %p498 = pneg %p49
      %p499 = pneg %p46
      %p500 = pneg %p70
      %p501 = pneg %p67
      %p502 = pneg %p91
      %p503 = pneg %p88
      %p504 = pneg %p112
      %p505 = pneg %p109
      %p506 = pneg %p133
      %p507 = pneg %p130
      %p508 = pneg %p154
      %p509 = pneg %p151
      %p510 = pneg %p175
      %p511 = pneg %p172
      %p512 = pneg %p196
      %p513 = pneg %p193
      %p514 = pneg %p217
      %p515 = pneg %p214
      %p516 = pneg %p238
      %p517 = pneg %p235
      %p518 = pneg %p259
      %p519 = pneg %p256
      %p520 = pneg %p280
      %p521 = pneg %p277
      %p522 = pneg %p301
      %p523 = pneg %p298
      %p524 = pneg %p322
      %p525 = pneg %p319
      %p526 = pneg %p343
      %p527 = pneg %p340
      %p528 = pneg %p364
      %p529 = pneg %p361
      %p530 = pneg %p385
      %p531 = pneg %p382
      %p532 = pneg %p411
      %p533 = pneg %p408
      %p534 = scmp.lt.s32.totalorder %s28, 1
      %s535 = scalar_select %p534, %s28, 1
      %s536 = smul.addr %s535, 4
      %s537 = smul.addr %s536, 8
      %s538 = scalar_lea.vmem %s17, %s537
      %p539 = scmp.lt.s32.totalorder %s28, 1
      %s540 = scalar_select %p539, %s28, 1
      %s541 = smul.addr %s540, 2
      %s542 = smul.addr %s541, 4
      %s543 = scalar_lea.vmem %s0, %s542
      %p544 = scmp.lt.s32.totalorder %s28, 1
      %s545 = scalar_select %p544, %s28, 1
      %s546 = smul.addr %s545, 4
      %s547 = smul.addr %s546, 8
      %s548 = scalar_lea.vmem %s17, %s547
      %v549 = vld [vmem:[%s543] sm:$0xff]
      %v551 = vcombine.high %v549, %v549
      %553 = vst [vmem:[%s548] sm:$0xf] %v549
      %554 = vst [vmem:[%s548 + $0x8] sm:$0xf] %v551
      %v555 = vld [vmem:[%s1] sm:$0xff]
      %v556 = vld [vmem:[%s548] sm:$0xf]
      %v557 = vld [vmem:[%s548 + $0x8] sm:$0xf]
      %v558 = vld [vmem:[%s2] sm:$0xf]
      %560 = vset.pattern.permute.xlu0 0
      %561 = vperm.xlu0 %560, %v558
      %v562 = vpop.permute.xlu0 %561
      %v564 = vmul.f32 %v556, %v562
      %v565 = vmul.f32 %v557, %v562
      %v566 = vld [vmem:[%s3] sm:$0xf]
      %568 = vset.pattern.permute.xlu0 0
      %569 = vperm.xlu0 %568, %v566
      %v570 = vpop.permute.xlu0 %569
      %v572 = vadd.f32 %v564, %v570
      %v573 = vadd.f32 %v565, %v570
      %v574 = vmax.f32 %v572, 0.0
      %v575 = vmax.f32 %v573, 0.0
      %v576 = vld [vmem:[%s4] sm:$0xff]
      %v577 = vld [vmem:[%s4 + $0x8] sm:$0xff]
      %v578 = vld [vmem:[%s5] sm:$0xff]
      %v579 = vld [vmem:[%s5 + $0x8] sm:$0xff]
      %581 = vset.pattern.permute.xlu0 0
      %582 = vperm.xlu0 %581, %v578
      %v583 = vpop.permute.xlu0 %582
      %586 = vset.pattern.permute.xlu0 0
      %587 = vperm.xlu0 %586, %v579
      %v588 = vpop.permute.xlu0 %587
      %vm590 = vcmask 31744
      %v592 = vsel %vm590, %v576, 0
      %v595 = vsel %vm590, %v577, 0
      %vm597 = vcmask 1043456
      %v599 = vsel %vm597, %v574, 0
      %v602 = vsel %vm597, %v575, 0
      %604 = vmatprep.subr.mxu0 %v602
      %605 = vmatpush1.msra.mxu0 %v599
      %606 = vmatprep.subr.mxu0 0.0
      %607 = vmatpush1.msra.mxu0 0.0
      %608 = vmatprep.subr.mxu0 0.0
      %609 = vmatpush1.msra.mxu0 0.0
      %610 = vmatprep.subr.mxu0 0.0
      %611 = vmatpush1.msra.mxu0 0.0
      %612 = vmatprep.subr.mxu0 0.0
      %613 = vmatpush1.msra.mxu0 0.0
      %614 = vmatprep.subr.mxu0 0.0
      %615 = vmatpush1.msra.mxu0 0.0
      %616 = vmatprep.subr.mxu0 0.0
      %617 = vmatpush1.msra.mxu0 0.0
      %618 = vmatprep.subr.mxu0 0.0
      %619 = vmatpush1.msra.mxu0 0.0
      %620 = vmatprep.subr.mxu0 0.0
      %621 = vmatpush1.msra.mxu0 0.0
      %622 = vmatprep.subr.mxu0 0.0
      %623 = vmatpush1.msra.mxu0 0.0
      %624 = vmatprep.subr.mxu0 0.0
      %625 = vmatpush1.msra.mxu0 0.0
      %626 = vmatprep.subr.mxu0 0.0
      %627 = vmatpush1.msra.mxu0 0.0
      %628 = vmatprep.subr.mxu0 0.0
      %629 = vmatpush1.msra.mxu0 0.0
      %630 = vmatprep.subr.mxu0 0.0
      %631 = vmatpush1.msra.mxu0 0.0
      %632 = vmatprep.subr.mxu0 0.0
      %633 = vmatpush1.msra.mxu0 0.0
      %634 = vmatprep.subr.mxu0 0.0
      %635 = vmatpush1.msra.mxu0 0.0
      %636 = vmatprep.subr.mxu0 0.0
      %637 = vmatpush1.msra.mxu0 0.0
      %638 = vmatprep.subr.mxu0 0.0
      %639 = vmatpush1.msra.mxu0 0.0
      %640 = vmatprep.subr.mxu0 0.0
      %641 = vmatpush1.msra.mxu0 0.0
      %642 = vmatprep.subr.mxu0 0.0
      %643 = vmatpush1.msra.mxu0 0.0
      %644 = vmatprep.subr.mxu0 0.0
      %645 = vmatpush1.msra.mxu0 0.0
      %646 = vmatprep.subr.mxu0 0.0
      %647 = vmatpush1.msra.mxu0 0.0
      %648 = vmatprep.subr.mxu0 0.0
      %649 = vmatpush1.msra.mxu0 0.0
      %650 = vmatprep.subr.mxu0 0.0
      %651 = vmatpush1.msra.mxu0 0.0
      %652 = vmatprep.subr.mxu0 0.0
      %653 = vmatpush1.msra.mxu0 0.0
      %654 = vmatprep.subr.mxu0 0.0
      %655 = vmatpush1.msra.mxu0 0.0
      %656 = vmatprep.subr.mxu0 0.0
      %657 = vmatpush1.msra.mxu0 0.0
      %658 = vmatprep.subr.mxu0 0.0
      %659 = vmatpush1.msra.mxu0 0.0
      %660 = vmatprep.subr.mxu0 0.0
      %661 = vmatpush1.msra.mxu0 0.0
      %662 = vmatprep.subr.mxu0 0.0
      %663 = vmatpush1.msra.mxu0 0.0
      %664 = vmatprep.subr.mxu0 0.0
      %665 = vmatpush1.msra.mxu0 0.0
      %666 = vmatprep.subr.mxu0 0.0
      %667 = vmatpush1.msra.mxu0 0.0
      %668 = vmatprep.mubr.f32.mxu0 0.0
      %669 = vmatmul.mubr.f32.gmra.mrb[0].mxu0 %v592
      %v670 = vpop.f32.mrb[0].mxu0
      %v671 = vadd.f32 %v583, %v670
      %v672 = vpop.f32.mrb[0].mxu0
      %v673 = vadd.f32 %v583, %v672
      %674 = vmatprep.mubr.f32.mxu0 0.0
      %675 = vmatmul.mubr.f32.gmra.mrb[0].mxu0 %v595
      %v676 = vpop.f32.mrb[0].mxu0
      %v677 = vadd.f32 %v588, %v676
      %v678 = vpop.f32.mrb[0].mxu0
      %v679 = vadd.f32 %v588, %v678
      %680 = vdwg.mxu0
      %v681 = vmax.f32 %v671, 0.0
      %v682 = vmax.f32 %v673, 0.0
      %v683 = vmax.f32 %v677, 0.0
      %v684 = vmax.f32 %v679, 0.0
      %685 = vrot.lane.b32.xlu0 %v681, 1
      %v686 = vpop.permute.xlu0 %685
      %687 = vrot.lane.b32.xlu0 %v683, 1
      %v688 = vpop.permute.xlu0 %687
      %689 = vrot.lane.b32.xlu0 %v682, 1
      %v690 = vpop.permute.xlu0 %689
      %691 = vrot.lane.b32.xlu0 %v684, 1
      %v692 = vpop.permute.xlu0 %691
      %v693 = vlaneseq
      %v694 = vand.u32 %v693, 127
      %vm695 = vcmp.lt.s32.totalorder %v694, 1
      %v696 = vsel %vm695, %v686, %v690
      %v697 = vsel %vm695, %v688, %v692
      %v698 = vsel %vm695, %v690, %v686
      %v699 = vsel %vm695, %v692, %v688
      %v701 = vlaneseq
      %v702 = vshrl.u32 %v701, 7
      %v703 = vsub.s32 0, %v702
      %v704 = vrot.slane %v555, %v703
      %v705 = vlaneseq
      %v706 = vshrl.u32 %v705, 7
      %v707 = vsub.s32 4, %v706
      %v708 = vrot.slane %v555, %v707
      %v711 = vlaneseq
      %v712 = vshrl.u32 %v711, 7
      %v713 = vsub.s32 0, %v712
      %v714 = vrot.slane %v704, %v713
      %v715 = vlaneseq
      %v716 = vshrl.u32 %v715, 7
      %v717 = vsub.s32 0, %v716
      %v718 = vrot.slane %v708, %v717
      %v719 = vmul.f32 %v698, %v714
      %v720 = vmul.f32 %v696, %v718
      %v721 = vmul.f32 %v699, %v714
      %v722 = vmul.f32 %v697, %v718
      %723 = vrot.lane.b32.xlu0 %v681, 127
      %v724 = vpop.permute.xlu0 %723
      %725 = vrot.lane.b32.xlu0 %v683, 127
      %v726 = vpop.permute.xlu0 %725
      %727 = vrot.lane.b32.xlu0 %v682, 127
      %v728 = vpop.permute.xlu0 %727
      %729 = vrot.lane.b32.xlu0 %v684, 127
      %v730 = vpop.permute.xlu0 %729
      %vm731 = vcmp.lt.s32.totalorder %v694, 127
      %v732 = vsel %vm731, %v724, %v728
      %v733 = vsel %vm731, %v726, %v730
      %v734 = vsel %vm731, %v728, %v724
      %v735 = vsel %vm731, %v730, %v726
      %v736 = vlaneseq
      %v737 = vshrl.u32 %v736, 7
      %v738 = vsub.s32 1, %v737
      %v739 = vrot.slane %v555, %v738
      %v740 = vlaneseq
      %v741 = vshrl.u32 %v740, 7
      %v742 = vsub.s32 5, %v741
      %v743 = vrot.slane %v555, %v742
      %v746 = vlaneseq
      %v747 = vshrl.u32 %v746, 7
      %v748 = vsub.s32 1, %v747
      %v749 = vrot.slane %v739, %v748
      %v750 = vlaneseq
      %v751 = vshrl.u32 %v750, 7
      %v752 = vsub.s32 1, %v751
      %v753 = vrot.slane %v743, %v752
      %v754 = vmul.f32 %v732, %v749
      %v755 = vmul.f32 %v734, %v753
      %v756 = vmul.f32 %v733, %v749
      %v757 = vmul.f32 %v735, %v753
      %v758 = vld [vmem:[%s6] sm:$0xf]
      %s759 = scalar_lea.vmem %s6, 4
      %v760 = vld [vmem:[%s759] sm:$0xf]
      %vm761 = vcmask 130048
      %v763 = vsel %vm761, %v760, 0
      %765 = vmatprep.subr.mxu0 %v682
      %766 = vmatpush1.msra.mxu0 %v681
      %767 = vmatprep.subr.mxu0 %v684
      %768 = vmatpush1.msra.mxu0 %v683
      %769 = vmatprep.subr.mxu0 0.0
      %770 = vmatpush1.msra.mxu0 0.0
      %771 = vmatprep.subr.mxu0 0.0
      %772 = vmatpush1.msra.mxu0 0.0
      %773 = vmatprep.subr.mxu0 0.0
      %774 = vmatpush1.msra.mxu0 0.0
      %775 = vmatprep.subr.mxu0 0.0
      %776 = vmatpush1.msra.mxu0 0.0
      %777 = vmatprep.subr.mxu0 0.0
      %778 = vmatpush1.msra.mxu0 0.0
      %779 = vmatprep.subr.mxu0 0.0
      %780 = vmatpush1.msra.mxu0 0.0
      %781 = vmatprep.subr.mxu0 0.0
      %782 = vmatpush1.msra.mxu0 0.0
      %783 = vmatprep.subr.mxu0 0.0
      %784 = vmatpush1.msra.mxu0 0.0
      %785 = vmatprep.subr.mxu0 0.0
      %786 = vmatpush1.msra.mxu0 0.0
      %787 = vmatprep.subr.mxu0 0.0
      %788 = vmatpush1.msra.mxu0 0.0
      %789 = vmatprep.subr.mxu0 0.0
      %790 = vmatpush1.msra.mxu0 0.0
      %791 = vmatprep.subr.mxu0 0.0
      %792 = vmatpush1.msra.mxu0 0.0
      %793 = vmatprep.subr.mxu0 0.0
      %794 = vmatpush1.msra.mxu0 0.0
      %795 = vmatprep.subr.mxu0 0.0
      %796 = vmatpush1.msra.mxu0 0.0
      %797 = vmatprep.subr.mxu0 0.0
      %798 = vmatpush1.msra.mxu0 0.0
      %799 = vmatprep.subr.mxu0 0.0
      %800 = vmatpush1.msra.mxu0 0.0
      %801 = vmatprep.subr.mxu0 0.0
      %802 = vmatpush1.msra.mxu0 0.0
      %803 = vmatprep.subr.mxu0 0.0
      %804 = vmatpush1.msra.mxu0 0.0
      %805 = vmatprep.subr.mxu0 0.0
      %806 = vmatpush1.msra.mxu0 0.0
      %807 = vmatprep.subr.mxu0 0.0
      %808 = vmatpush1.msra.mxu0 0.0
      %809 = vmatprep.subr.mxu0 0.0
      %810 = vmatpush1.msra.mxu0 0.0
      %811 = vmatprep.subr.mxu0 0.0
      %812 = vmatpush1.msra.mxu0 0.0
      %813 = vmatprep.subr.mxu0 0.0
      %814 = vmatpush1.msra.mxu0 0.0
      %815 = vmatprep.subr.mxu0 0.0
      %816 = vmatpush1.msra.mxu0 0.0
      %817 = vmatprep.subr.mxu0 0.0
      %818 = vmatpush1.msra.mxu0 0.0
      %819 = vmatprep.subr.mxu0 0.0
      %820 = vmatpush1.msra.mxu0 0.0
      %821 = vmatprep.subr.mxu0 0.0
      %822 = vmatpush1.msra.mxu0 0.0
      %823 = vmatprep.subr.mxu0 0.0
      %824 = vmatpush1.msra.mxu0 0.0
      %825 = vmatprep.subr.mxu0 0.0
      %826 = vmatpush1.msra.mxu0 0.0
      %827 = vmatprep.subr.mxu0 0.0
      %828 = vmatpush1.msra.mxu0 0.0
      %829 = vmatprep.mubr.f32.mxu0 0.0
      %830 = vmatmul.mubr.f32.gmra.mrb[0].mxu0 %v763
      %v831 = vpop.f32.mrb[0].mxu0
      %v832 = vadd.f32 0.0, %v831
      %v833 = vpop.f32.mrb[0].mxu0
      %v834 = vadd.f32 0.0, %v833
      %835 = vdwg.mxu0
      %v837 = vsel %vm761, %v758, 0
      %839 = vmatprep.subr.mxu0 %v720
      %840 = vmatpush1.msra.mxu0 %v719
      %841 = vmatprep.subr.mxu0 %v722
      %842 = vmatpush1.msra.mxu0 %v721
      %843 = vmatprep.subr.mxu0 0.0
      %844 = vmatpush1.msra.mxu0 0.0
      %845 = vmatprep.subr.mxu0 0.0
      %846 = vmatpush1.msra.mxu0 0.0
      %847 = vmatprep.subr.mxu0 0.0
      %848 = vmatpush1.msra.mxu0 0.0
      %849 = vmatprep.subr.mxu0 0.0
      %850 = vmatpush1.msra.mxu0 0.0
      %851 = vmatprep.subr.mxu0 0.0
      %852 = vmatpush1.msra.mxu0 0.0
      %853 = vmatprep.subr.mxu0 0.0
      %854 = vmatpush1.msra.mxu0 0.0
      %855 = vmatprep.subr.mxu0 0.0
      %856 = vmatpush1.msra.mxu0 0.0
      %857 = vmatprep.subr.mxu0 0.0
      %858 = vmatpush1.msra.mxu0 0.0
      %859 = vmatprep.subr.mxu0 0.0
      %860 = vmatpush1.msra.mxu0 0.0
      %861 = vmatprep.subr.mxu0 0.0
      %862 = vmatpush1.msra.mxu0 0.0
      %863 = vmatprep.subr.mxu0 0.0
      %864 = vmatpush1.msra.mxu0 0.0
      %865 = vmatprep.subr.mxu0 0.0
      %866 = vmatpush1.msra.mxu0 0.0
      %867 = vmatprep.subr.mxu0 0.0
      %868 = vmatpush1.msra.mxu0 0.0
      %869 = vmatprep.subr.mxu0 0.0
      %870 = vmatpush1.msra.mxu0 0.0
      %871 = vmatprep.subr.mxu0 0.0
      %872 = vmatpush1.msra.mxu0 0.0
      %873 = vmatprep.subr.mxu0 0.0
      %874 = vmatpush1.msra.mxu0 0.0
      %875 = vmatprep.subr.mxu0 0.0
      %876 = vmatpush1.msra.mxu0 0.0
      %877 = vmatprep.subr.mxu0 0.0
      %878 = vmatpush1.msra.mxu0 0.0
      %879 = vmatprep.subr.mxu0 0.0
      %880 = vmatpush1.msra.mxu0 0.0
      %881 = vmatprep.subr.mxu0 0.0
      %882 = vmatpush1.msra.mxu0 0.0
      %883 = vmatprep.subr.mxu0 0.0
      %884 = vmatpush1.msra.mxu0 0.0
      %885 = vmatprep.subr.mxu0 0.0
      %886 = vmatpush1.msra.mxu0 0.0
      %887 = vmatprep.subr.mxu0 0.0
      %888 = vmatpush1.msra.mxu0 0.0
      %889 = vmatprep.subr.mxu0 0.0
      %890 = vmatpush1.msra.mxu0 0.0
      %891 = vmatprep.subr.mxu0 0.0
      %892 = vmatpush1.msra.mxu0 0.0
      %893 = vmatprep.subr.mxu0 0.0
      %894 = vmatpush1.msra.mxu0 0.0
      %895 = vmatprep.subr.mxu0 0.0
      %896 = vmatpush1.msra.mxu0 0.0
      %897 = vmatprep.subr.mxu0 0.0
      %898 = vmatpush1.msra.mxu0 0.0
      %899 = vmatprep.subr.mxu0 0.0
      %900 = vmatpush1.msra.mxu0 0.0
      %901 = vmatprep.subr.mxu0 0.0
      %902 = vmatpush1.msra.mxu0 0.0
      %903 = vmatprep.mubr.f32.mxu0 0.0
      %904 = vmatmul.mubr.f32.gmra.mrb[0].mxu0 %v837
      %v905 = vpop.f32.mrb[0].mxu0
      %v906 = vadd.f32 %v832, %v905
      %v907 = vpop.f32.mrb[0].mxu0
      %v908 = vadd.f32 %v834, %v907
      %909 = vdwg.mxu0
      %s910 = scalar_lea.vmem %s6, 8
      %v911 = vld [vmem:[%s910] sm:$0xf]
      %v913 = vsel %vm761, %v911, 0
      %915 = vmatprep.subr.mxu0 %v755
      %916 = vmatpush1.msra.mxu0 %v754
      %917 = vmatprep.subr.mxu0 %v757
      %918 = vmatpush1.msra.mxu0 %v756
      %919 = vmatprep.subr.mxu0 0.0
      %920 = vmatpush1.msra.mxu0 0.0
      %921 = vmatprep.subr.mxu0 0.0
      %922 = vmatpush1.msra.mxu0 0.0
      %923 = vmatprep.subr.mxu0 0.0
      %924 = vmatpush1.msra.mxu0 0.0
      %925 = vmatprep.subr.mxu0 0.0
      %926 = vmatpush1.msra.mxu0 0.0
      %927 = vmatprep.subr.mxu0 0.0
      %928 = vmatpush1.msra.mxu0 0.0
      %929 = vmatprep.subr.mxu0 0.0
      %930 = vmatpush1.msra.mxu0 0.0
      %931 = vmatprep.subr.mxu0 0.0
      %932 = vmatpush1.msra.mxu0 0.0
      %933 = vmatprep.subr.mxu0 0.0
      %934 = vmatpush1.msra.mxu0 0.0
      %935 = vmatprep.subr.mxu0 0.0
      %936 = vmatpush1.msra.mxu0 0.0
      %937 = vmatprep.subr.mxu0 0.0
      %938 = vmatpush1.msra.mxu0 0.0
      %939 = vmatprep.subr.mxu0 0.0
      %940 = vmatpush1.msra.mxu0 0.0
      %941 = vmatprep.subr.mxu0 0.0
      %942 = vmatpush1.msra.mxu0 0.0
      %943 = vmatprep.subr.mxu0 0.0
      %944 = vmatpush1.msra.mxu0 0.0
      %945 = vmatprep.subr.mxu0 0.0
      %946 = vmatpush1.msra.mxu0 0.0
      %947 = vmatprep.subr.mxu0 0.0
      %948 = vmatpush1.msra.mxu0 0.0
      %949 = vmatprep.subr.mxu0 0.0
      %950 = vmatpush1.msra.mxu0 0.0
      %951 = vmatprep.subr.mxu0 0.0
      %952 = vmatpush1.msra.mxu0 0.0
      %953 = vmatprep.subr.mxu0 0.0
      %954 = vmatpush1.msra.mxu0 0.0
      %955 = vmatprep.subr.mxu0 0.0
      %956 = vmatpush1.msra.mxu0 0.0
      %957 = vmatprep.subr.mxu0 0.0
      %958 = vmatpush1.msra.mxu0 0.0
      %959 = vmatprep.subr.mxu0 0.0
      %960 = vmatpush1.msra.mxu0 0.0
      %961 = vmatprep.subr.mxu0 0.0
      %962 = vmatpush1.msra.mxu0 0.0
      %963 = vmatprep.subr.mxu0 0.0
      %964 = vmatpush1.msra.mxu0 0.0
      %965 = vmatprep.subr.mxu0 0.0
      %966 = vmatpush1.msra.mxu0 0.0
      %967 = vmatprep.subr.mxu0 0.0
      %968 = vmatpush1.msra.mxu0 0.0
      %969 = vmatprep.subr.mxu0 0.0
      %970 = vmatpush1.msra.mxu0 0.0
      %971 = vmatprep.subr.mxu0 0.0
      %972 = vmatpush1.msra.mxu0 0.0
      %973 = vmatprep.subr.mxu0 0.0
      %974 = vmatpush1.msra.mxu0 0.0
      %975 = vmatprep.subr.mxu0 0.0
      %976 = vmatpush1.msra.mxu0 0.0
      %977 = vmatprep.subr.mxu0 0.0
      %978 = vmatpush1.msra.mxu0 0.0
      %979 = vmatprep.mubr.f32.mxu0 0.0
      %980 = vmatmul.mubr.f32.gmra.mrb[0].mxu0 %v913
      %v981 = vpop.f32.mrb[0].mxu0
      %v982 = vadd.f32 0.0, %v981
      %v983 = vpop.f32.mrb[0].mxu0
      %v984 = vadd.f32 0.0, %v983
      %985 = vdwg.mxu0
      %v986 = vadd.f32 %v906, %v982
      %v987 = vadd.f32 %v908, %v984
      %s988 = scalar_lea.vmem %s6, 12
      %v989 = vld [vmem:[%s988] sm:$0xf]
      %s990 = scalar_lea.vmem %s6, 16
      %v991 = vld [vmem:[%s990] sm:$0xf]
      %v993 = vsel %vm761, %v991, 0
      %995 = vmatprep.subr.mxu0 %v682
      %996 = vmatpush1.msra.mxu0 %v681
      %997 = vmatprep.subr.mxu0 %v684
      %998 = vmatpush1.msra.mxu0 %v683
      %999 = vmatprep.subr.mxu0 0.0
      %1000 = vmatpush1.msra.mxu0 0.0
      %1001 = vmatprep.subr.mxu0 0.0
      %1002 = vmatpush1.msra.mxu0 0.0
      %1003 = vmatprep.subr.mxu0 0.0
      %1004 = vmatpush1.msra.mxu0 0.0
      %1005 = vmatprep.subr.mxu0 0.0
      %1006 = vmatpush1.msra.mxu0 0.0
      %1007 = vmatprep.subr.mxu0 0.0
      %1008 = vmatpush1.msra.mxu0 0.0
      %1009 = vmatprep.subr.mxu0 0.0
      %1010 = vmatpush1.msra.mxu0 0.0
      %1011 = vmatprep.subr.mxu0 0.0
      %1012 = vmatpush1.msra.mxu0 0.0
      %1013 = vmatprep.subr.mxu0 0.0
      %1014 = vmatpush1.msra.mxu0 0.0
      %1015 = vmatprep.subr.mxu0 0.0
      %1016 = vmatpush1.msra.mxu0 0.0
      %1017 = vmatprep.subr.mxu0 0.0
      %1018 = vmatpush1.msra.mxu0 0.0
      %1019 = vmatprep.subr.mxu0 0.0
      %1020 = vmatpush1.msra.mxu0 0.0
      %1021 = vmatprep.subr.mxu0 0.0
      %1022 = vmatpush1.msra.mxu0 0.0
      %1023 = vmatprep.subr.mxu0 0.0
      %1024 = vmatpush1.msra.mxu0 0.0
      %1025 = vmatprep.subr.mxu0 0.0
      %1026 = vmatpush1.msra.mxu0 0.0
      %1027 = vmatprep.subr.mxu0 0.0
      %1028 = vmatpush1.msra.mxu0 0.0
      %1029 = vmatprep.subr.mxu0 0.0
      %1030 = vmatpush1.msra.mxu0 0.0
      %1031 = vmatprep.subr.mxu0 0.0
      %1032 = vmatpush1.msra.mxu0 0.0
      %1033 = vmatprep.subr.mxu0 0.0
      %1034 = vmatpush1.msra.mxu0 0.0
      %1035 = vmatprep.subr.mxu0 0.0
      %1036 = vmatpush1.msra.mxu0 0.0
      %1037 = vmatprep.subr.mxu0 0.0
      %1038 = vmatpush1.msra.mxu0 0.0
      %1039 = vmatprep.subr.mxu0 0.0
      %1040 = vmatpush1.msra.mxu0 0.0
      %1041 = vmatprep.subr.mxu0 0.0
      %1042 = vmatpush1.msra.mxu0 0.0
      %1043 = vmatprep.subr.mxu0 0.0
      %1044 = vmatpush1.msra.mxu0 0.0
      %1045 = vmatprep.subr.mxu0 0.0
      %1046 = vmatpush1.msra.mxu0 0.0
      %1047 = vmatprep.subr.mxu0 0.0
      %1048 = vmatpush1.msra.mxu0 0.0
      %1049 = vmatprep.subr.mxu0 0.0
      %1050 = vmatpush1.msra.mxu0 0.0
      %1051 = vmatprep.subr.mxu0 0.0
      %1052 = vmatpush1.msra.mxu0 0.0
      %1053 = vmatprep.subr.mxu0 0.0
      %1054 = vmatpush1.msra.mxu0 0.0
      %1055 = vmatprep.subr.mxu0 0.0
      %1056 = vmatpush1.msra.mxu0 0.0
      %1057 = vmatprep.subr.mxu0 0.0
      %1058 = vmatpush1.msra.mxu0 0.0
      %1059 = vmatprep.mubr.f32.mxu0 0.0
      %1060 = vmatmul.mubr.f32.gmra.mrb[0].mxu0 %v993
      %v1061 = vpop.f32.mrb[0].mxu0
      %v1062 = vadd.f32 0.0, %v1061
      %v1063 = vpop.f32.mrb[0].mxu0
      %v1064 = vadd.f32 0.0, %v1063
      %1065 = vdwg.mxu0
      %v1067 = vsel %vm761, %v989, 0
      %1069 = vmatprep.subr.mxu0 %v720
      %1070 = vmatpush1.msra.mxu0 %v719
      %1071 = vmatprep.subr.mxu0 %v722
      %1072 = vmatpush1.msra.mxu0 %v721
      %1073 = vmatprep.subr.mxu0 0.0
      %1074 = vmatpush1.msra.mxu0 0.0
      %1075 = vmatprep.subr.mxu0 0.0
      %1076 = vmatpush1.msra.mxu0 0.0
      %1077 = vmatprep.subr.mxu0 0.0
      %1078 = vmatpush1.msra.mxu0 0.0
      %1079 = vmatprep.subr.mxu0 0.0
      %1080 = vmatpush1.msra.mxu0 0.0
      %1081 = vmatprep.subr.mxu0 0.0
      %1082 = vmatpush1.msra.mxu0 0.0
      %1083 = vmatprep.subr.mxu0 0.0
      %1084 = vmatpush1.msra.mxu0 0.0
      %1085 = vmatprep.subr.mxu0 0.0
      %1086 = vmatpush1.msra.mxu0 0.0
      %1087 = vmatprep.subr.mxu0 0.0
      %1088 = vmatpush1.msra.mxu0 0.0
      %1089 = vmatprep.subr.mxu0 0.0
      %1090 = vmatpush1.msra.mxu0 0.0
      %1091 = vmatprep.subr.mxu0 0.0
      %1092 = vmatpush1.msra.mxu0 0.0
      %1093 = vmatprep.subr.mxu0 0.0
      %1094 = vmatpush1.msra.mxu0 0.0
      %1095 = vmatprep.subr.mxu0 0.0
      %1096 = vmatpush1.msra.mxu0 0.0
      %1097 = vmatprep.subr.mxu0 0.0
      %1098 = vmatpush1.msra.mxu0 0.0
      %1099 = vmatprep.subr.mxu0 0.0
      %1100 = vmatpush1.msra.mxu0 0.0
      %1101 = vmatprep.subr.mxu0 0.0
      %1102 = vmatpush1.msra.mxu0 0.0
      %1103 = vmatprep.subr.mxu0 0.0
      %1104 = vmatpush1.msra.mxu0 0.0
      %1105 = vmatprep.subr.mxu0 0.0
      %1106 = vmatpush1.msra.mxu0 0.0
      %1107 = vmatprep.subr.mxu0 0.0
      %1108 = vmatpush1.msra.mxu0 0.0
      %1109 = vmatprep.subr.mxu0 0.0
      %1110 = vmatpush1.msra.mxu0 0.0
      %1111 = vmatprep.subr.mxu0 0.0
      %1112 = vmatpush1.msra.mxu0 0.0
      %1113 = vmatprep.subr.mxu0 0.0
      %1114 = vmatpush1.msra.mxu0 0.0
      %1115 = vmatprep.subr.mxu0 0.0
      %1116 = vmatpush1.msra.mxu0 0.0
      %1117 = vmatprep.subr.mxu0 0.0
      %1118 = vmatpush1.msra.mxu0 0.0
      %1119 = vmatprep.subr.mxu0 0.0
      %1120 = vmatpush1.msra.mxu0 0.0
      %1121 = vmatprep.subr.mxu0 0.0
      %1122 = vmatpush1.msra.mxu0 0.0
      %1123 = vmatprep.subr.mxu0 0.0
      %1124 = vmatpush1.msra.mxu0 0.0
      %1125 = vmatprep.subr.mxu0 0.0
      %1126 = vmatpush1.msra.mxu0 0.0
      %1127 = vmatprep.subr.mxu0 0.0
      %1128 = vmatpush1.msra.mxu0 0.0
      %1129 = vmatprep.subr.mxu0 0.0
      %1130 = vmatpush1.msra.mxu0 0.0
      %1131 = vmatprep.subr.mxu0 0.0
      %1132 = vmatpush1.msra.mxu0 0.0
      %1133 = vmatprep.mubr.f32.mxu0 0.0
      %1134 = vmatmul.mubr.f32.gmra.mrb[0].mxu0 %v1067
      %v1135 = vpop.f32.mrb[0].mxu0
      %v1136 = vadd.f32 %v1062, %v1135
      %v1137 = vpop.f32.mrb[0].mxu0
      %v1138 = vadd.f32 %v1064, %v1137
      %1139 = vdwg.mxu0
      %s1140 = scalar_lea.vmem %s6, 20
      %v1141 = vld [vmem:[%s1140] sm:$0xf]
      %v1143 = vsel %vm761, %v1141, 0
      %1145 = vmatprep.subr.mxu0 %v755
      %1146 = vmatpush1.msra.mxu0 %v754
      %1147 = vmatprep.subr.mxu0 %v757
      %1148 = vmatpush1.msra.mxu0 %v756
      %1149 = vmatprep.subr.mxu0 0.0
      %1150 = vmatpush1.msra.mxu0 0.0
      %1151 = vmatprep.subr.mxu0 0.0
      %1152 = vmatpush1.msra.mxu0 0.0
      %1153 = vmatprep.subr.mxu0 0.0
      %1154 = vmatpush1.msra.mxu0 0.0
      %1155 = vmatprep.subr.mxu0 0.0
      %1156 = vmatpush1.msra.mxu0 0.0
      %1157 = vmatprep.subr.mxu0 0.0
      %1158 = vmatpush1.msra.mxu0 0.0
      %1159 = vmatprep.subr.mxu0 0.0
      %1160 = vmatpush1.msra.mxu0 0.0
      %1161 = vmatprep.subr.mxu0 0.0
      %1162 = vmatpush1.msra.mxu0 0.0
      %1163 = vmatprep.subr.mxu0 0.0
      %1164 = vmatpush1.msra.mxu0 0.0
      %1165 = vmatprep.subr.mxu0 0.0
      %1166 = vmatpush1.msra.mxu0 0.0
      %1167 = vmatprep.subr.mxu0 0.0
      %1168 = vmatpush1.msra.mxu0 0.0
      %1169 = vmatprep.subr.mxu0 0.0
      %1170 = vmatpush1.msra.mxu0 0.0
      %1171 = vmatprep.subr.mxu0 0.0
      %1172 = vmatpush1.msra.mxu0 0.0
      %1173 = vmatprep.subr.mxu0 0.0
      %1174 = vmatpush1.msra.mxu0 0.0
      %1175 = vmatprep.subr.mxu0 0.0
      %1176 = vmatpush1.msra.mxu0 0.0
      %1177 = vmatprep.subr.mxu0 0.0
      %1178 = vmatpush1.msra.mxu0 0.0
      %1179 = vmatprep.subr.mxu0 0.0
      %1180 = vmatpush1.msra.mxu0 0.0
      %1181 = vmatprep.subr.mxu0 0.0
      %1182 = vmatpush1.msra.mxu0 0.0
      %1183 = vmatprep.subr.mxu0 0.0
      %1184 = vmatpush1.msra.mxu0 0.0
      %1185 = vmatprep.subr.mxu0 0.0
      %1186 = vmatpush1.msra.mxu0 0.0
      %1187 = vmatprep.subr.mxu0 0.0
      %1188 = vmatpush1.msra.mxu0 0.0
      %1189 = vmatprep.subr.mxu0 0.0
      %1190 = vmatpush1.msra.mxu0 0.0
      %1191 = vmatprep.subr.mxu0 0.0
      %1192 = vmatpush1.msra.mxu0 0.0
      %1193 = vmatprep.subr.mxu0 0.0
      %1194 = vmatpush1.msra.mxu0 0.0
      %1195 = vmatprep.subr.mxu0 0.0
      %1196 = vmatpush1.msra.mxu0 0.0
      %1197 = vmatprep.subr.mxu0 0.0
      %1198 = vmatpush1.msra.mxu0 0.0
      %1199 = vmatprep.subr.mxu0 0.0
      %1200 = vmatpush1.msra.mxu0 0.0
      %1201 = vmatprep.subr.mxu0 0.0
      %1202 = vmatpush1.msra.mxu0 0.0
      %1203 = vmatprep.subr.mxu0 0.0
      %1204 = vmatpush1.msra.mxu0 0.0
      %1205 = vmatprep.subr.mxu0 0.0
      %1206 = vmatpush1.msra.mxu0 0.0
      %1207 = vmatprep.subr.mxu0 0.0
      %1208 = vmatpush1.msra.mxu0 0.0
      %1209 = vmatprep.mubr.f32.mxu0 0.0
      %1210 = vmatmul.mubr.f32.gmra.mrb[0].mxu0 %v1143
      %v1211 = vpop.f32.mrb[0].mxu0
      %v1212 = vadd.f32 0.0, %v1211
      %v1213 = vpop.f32.mrb[0].mxu0
      %v1214 = vadd.f32 0.0, %v1213
      %1215 = vdwg.mxu0
      %v1216 = vadd.f32 %v1136, %v1212
      %v1217 = vadd.f32 %v1138, %v1214
      %s1218 = scalar_lea.vmem %s6, 24
      %v1219 = vld [vmem:[%s1218] sm:$0xf]
      %s1220 = scalar_lea.vmem %s6, 28
      %v1221 = vld [vmem:[%s1220] sm:$0xf]
      %v1223 = vsel %vm761, %v1221, 0
      %1225 = vmatprep.subr.mxu0 %v682
      %1226 = vmatpush1.msra.mxu0 %v681
      %1227 = vmatprep.subr.mxu0 %v684
      %1228 = vmatpush1.msra.mxu0 %v683
      %1229 = vmatprep.subr.mxu0 0.0
      %1230 = vmatpush1.msra.mxu0 0.0
      %1231 = vmatprep.subr.mxu0 0.0
      %1232 = vmatpush1.msra.mxu0 0.0
      %1233 = vmatprep.subr.mxu0 0.0
      %1234 = vmatpush1.msra.mxu0 0.0
      %1235 = vmatprep.subr.mxu0 0.0
      %1236 = vmatpush1.msra.mxu0 0.0
      %1237 = vmatprep.subr.mxu0 0.0
      %1238 = vmatpush1.msra.mxu0 0.0
      %1239 = vmatprep.subr.mxu0 0.0
      %1240 = vmatpush1.msra.mxu0 0.0
      %1241 = vmatprep.subr.mxu0 0.0
      %1242 = vmatpush1.msra.mxu0 0.0
      %1243 = vmatprep.subr.mxu0 0.0
      %1244 = vmatpush1.msra.mxu0 0.0
      %1245 = vmatprep.subr.mxu0 0.0
      %1246 = vmatpush1.msra.mxu0 0.0
      %1247 = vmatprep.subr.mxu0 0.0
      %1248 = vmatpush1.msra.mxu0 0.0
      %1249 = vmatprep.subr.mxu0 0.0
      %1250 = vmatpush1.msra.mxu0 0.0
      %1251 = vmatprep.subr.mxu0 0.0
      %1252 = vmatpush1.msra.mxu0 0.0
      %1253 = vmatprep.subr.mxu0 0.0
      %1254 = vmatpush1.msra.mxu0 0.0
      %1255 = vmatprep.subr.mxu0 0.0
      %1256 = vmatpush1.msra.mxu0 0.0
      %1257 = vmatprep.subr.mxu0 0.0
      %1258 = vmatpush1.msra.mxu0 0.0
      %1259 = vmatprep.subr.mxu0 0.0
      %1260 = vmatpush1.msra.mxu0 0.0
      %1261 = vmatprep.subr.mxu0 0.0
      %1262 = vmatpush1.msra.mxu0 0.0
      %1263 = vmatprep.subr.mxu0 0.0
      %1264 = vmatpush1.msra.mxu0 0.0
      %1265 = vmatprep.subr.mxu0 0.0
      %1266 = vmatpush1.msra.mxu0 0.0
      %1267 = vmatprep.subr.mxu0 0.0
      %1268 = vmatpush1.msra.mxu0 0.0
      %1269 = vmatprep.subr.mxu0 0.0
      %1270 = vmatpush1.msra.mxu0 0.0
      %1271 = vmatprep.subr.mxu0 0.0
      %1272 = vmatpush1.msra.mxu0 0.0
      %1273 = vmatprep.subr.mxu0 0.0
      %1274 = vmatpush1.msra.mxu0 0.0
      %1275 = vmatprep.subr.mxu0 0.0
      %1276 = vmatpush1.msra.mxu0 0.0
      %1277 = vmatprep.subr.mxu0 0.0
      %1278 = vmatpush1.msra.mxu0 0.0
      %1279 = vmatprep.subr.mxu0 0.0
      %1280 = vmatpush1.msra.mxu0 0.0
      %1281 = vmatprep.subr.mxu0 0.0
      %1282 = vmatpush1.msra.mxu0 0.0
      %1283 = vmatprep.subr.mxu0 0.0
      %1284 = vmatpush1.msra.mxu0 0.0
      %1285 = vmatprep.subr.mxu0 0.0
      %1286 = vmatpush1.msra.mxu0 0.0
      %1287 = vmatprep.subr.mxu0 0.0
      %1288 = vmatpush1.msra.mxu0 0.0
      %1289 = vmatprep.mubr.f32.mxu0 0.0
      %1290 = vmatmul.mubr.f32.gmra.mrb[0].mxu0 %v1223
      %v1291 = vpop.f32.mrb[0].mxu0
      %v1292 = vadd.f32 0.0, %v1291
      %v1293 = vpop.f32.mrb[0].mxu0
      %v1294 = vadd.f32 0.0, %v1293
      %1295 = vdwg.mxu0
      %v1297 = vsel %vm761, %v1219, 0
      %1299 = vmatprep.subr.mxu0 %v720
      %1300 = vmatpush1.msra.mxu0 %v719
      %1301 = vmatprep.subr.mxu0 %v722
      %1302 = vmatpush1.msra.mxu0 %v721
      %1303 = vmatprep.subr.mxu0 0.0
      %1304 = vmatpush1.msra.mxu0 0.0
      %1305 = vmatprep.subr.mxu0 0.0
      %1306 = vmatpush1.msra.mxu0 0.0
      %1307 = vmatprep.subr.mxu0 0.0
      %1308 = vmatpush1.msra.mxu0 0.0
      %1309 = vmatprep.subr.mxu0 0.0
      %1310 = vmatpush1.msra.mxu0 0.0
      %1311 = vmatprep.subr.mxu0 0.0
      %1312 = vmatpush1.msra.mxu0 0.0
      %1313 = vmatprep.subr.mxu0 0.0
      %1314 = vmatpush1.msra.mxu0 0.0
      %1315 = vmatprep.subr.mxu0 0.0
      %1316 = vmatpush1.msra.mxu0 0.0
      %1317 = vmatprep.subr.mxu0 0.0
      %1318 = vmatpush1.msra.mxu0 0.0
      %1319 = vmatprep.subr.mxu0 0.0
      %1320 = vmatpush1.msra.mxu0 0.0
      %1321 = vmatprep.subr.mxu0 0.0
      %1322 = vmatpush1.msra.mxu0 0.0
      %1323 = vmatprep.subr.mxu0 0.0
      %1324 = vmatpush1.msra.mxu0 0.0
      %1325 = vmatprep.subr.mxu0 0.0
      %1326 = vmatpush1.msra.mxu0 0.0
      %1327 = vmatprep.subr.mxu0 0.0
      %1328 = vmatpush1.msra.mxu0 0.0
      %1329 = vmatprep.subr.mxu0 0.0
      %1330 = vmatpush1.msra.mxu0 0.0
      %1331 = vmatprep.subr.mxu0 0.0
      %1332 = vmatpush1.msra.mxu0 0.0
      %1333 = vmatprep.subr.mxu0 0.0
      %1334 = vmatpush1.msra.mxu0 0.0
      %1335 = vmatprep.subr.mxu0 0.0
      %1336 = vmatpush1.msra.mxu0 0.0
      %1337 = vmatprep.subr.mxu0 0.0
      %1338 = vmatpush1.msra.mxu0 0.0
      %1339 = vmatprep.subr.mxu0 0.0
      %1340 = vmatpush1.msra.mxu0 0.0
      %1341 = vmatprep.subr.mxu0 0.0
      %1342 = vmatpush1.msra.mxu0 0.0
      %1343 = vmatprep.subr.mxu0 0.0
      %1344 = vmatpush1.msra.mxu0 0.0
      %1345 = vmatprep.subr.mxu0 0.0
      %1346 = vmatpush1.msra.mxu0 0.0
      %1347 = vmatprep.subr.mxu0 0.0
      %1348 = vmatpush1.msra.mxu0 0.0
      %1349 = vmatprep.subr.mxu0 0.0
      %1350 = vmatpush1.msra.mxu0 0.0
      %1351 = vmatprep.subr.mxu0 0.0
      %1352 = vmatpush1.msra.mxu0 0.0
      %1353 = vmatprep.subr.mxu0 0.0
      %1354 = vmatpush1.msra.mxu0 0.0
      %1355 = vmatprep.subr.mxu0 0.0
      %1356 = vmatpush1.msra.mxu0 0.0
      %1357 = vmatprep.subr.mxu0 0.0
      %1358 = vmatpush1.msra.mxu0 0.0
      %1359 = vmatprep.subr.mxu0 0.0
      %1360 = vmatpush1.msra.mxu0 0.0
      %1361 = vmatprep.subr.mxu0 0.0
      %1362 = vmatpush1.msra.mxu0 0.0
      %1363 = vmatprep.mubr.f32.mxu0 0.0
      %1364 = vmatmul.mubr.f32.gmra.mrb[0].mxu0 %v1297
      %v1365 = vpop.f32.mrb[0].mxu0
      %v1366 = vadd.f32 %v1292, %v1365
      %v1367 = vpop.f32.mrb[0].mxu0
      %v1368 = vadd.f32 %v1294, %v1367
      %1369 = vdwg.mxu0
      %s1370 = scalar_lea.vmem %s6, 32
      %v1371 = vld [vmem:[%s1370] sm:$0xf]
      %v1373 = vsel %vm761, %v1371, 0
      %1375 = vmatprep.subr.mxu0 %v755
      %1376 = vmatpush1.msra.mxu0 %v754
      %1377 = vmatprep.subr.mxu0 %v757
      %1378 = vmatpush1.msra.mxu0 %v756
      %1379 = vmatprep.subr.mxu0 0.0
      %1380 = vmatpush1.msra.mxu0 0.0
      %1381 = vmatprep.subr.mxu0 0.0
      %1382 = vmatpush1.msra.mxu0 0.0
      %1383 = vmatprep.subr.mxu0 0.0
      %1384 = vmatpush1.msra.mxu0 0.0
      %1385 = vmatprep.subr.mxu0 0.0
      %1386 = vmatpush1.msra.mxu0 0.0
      %1387 = vmatprep.subr.mxu0 0.0
      %1388 = vmatpush1.msra.mxu0 0.0
      %1389 = vmatprep.subr.mxu0 0.0
      %1390 = vmatpush1.msra.mxu0 0.0
      %1391 = vmatprep.subr.mxu0 0.0
      %1392 = vmatpush1.msra.mxu0 0.0
      %1393 = vmatprep.subr.mxu0 0.0
      %1394 = vmatpush1.msra.mxu0 0.0
      %1395 = vmatprep.subr.mxu0 0.0
      %1396 = vmatpush1.msra.mxu0 0.0
      %1397 = vmatprep.subr.mxu0 0.0
      %1398 = vmatpush1.msra.mxu0 0.0
      %1399 = vmatprep.subr.mxu0 0.0
      %1400 = vmatpush1.msra.mxu0 0.0
      %1401 = vmatprep.subr.mxu0 0.0
      %1402 = vmatpush1.msra.mxu0 0.0
      %1403 = vmatprep.subr.mxu0 0.0
      %1404 = vmatpush1.msra.mxu0 0.0
      %1405 = vmatprep.subr.mxu0 0.0
      %1406 = vmatpush1.msra.mxu0 0.0
      %1407 = vmatprep.subr.mxu0 0.0
      %1408 = vmatpush1.msra.mxu0 0.0
      %1409 = vmatprep.subr.mxu0 0.0
      %1410 = vmatpush1.msra.mxu0 0.0
      %1411 = vmatprep.subr.mxu0 0.0
      %1412 = vmatpush1.msra.mxu0 0.0
      %1413 = vmatprep.subr.mxu0 0.0
      %1414 = vmatpush1.msra.mxu0 0.0
      %1415 = vmatprep.subr.mxu0 0.0
      %1416 = vmatpush1.msra.mxu0 0.0
      %1417 = vmatprep.subr.mxu0 0.0
      %1418 = vmatpush1.msra.mxu0 0.0
      %1419 = vmatprep.subr.mxu0 0.0
      %1420 = vmatpush1.msra.mxu0 0.0
      %1421 = vmatprep.subr.mxu0 0.0
      %1422 = vmatpush1.msra.mxu0 0.0
      %1423 = vmatprep.subr.mxu0 0.0
      %1424 = vmatpush1.msra.mxu0 0.0
      %1425 = vmatprep.subr.mxu0 0.0
      %1426 = vmatpush1.msra.mxu0 0.0
      %1427 = vmatprep.subr.mxu0 0.0
      %1428 = vmatpush1.msra.mxu0 0.0
      %1429 = vmatprep.subr.mxu0 0.0
      %1430 = vmatpush1.msra.mxu0 0.0
      %1431 = vmatprep.subr.mxu0 0.0
      %1432 = vmatpush1.msra.mxu0 0.0
      %1433 = vmatprep.subr.mxu0 0.0
      %1434 = vmatpush1.msra.mxu0 0.0
      %1435 = vmatprep.subr.mxu0 0.0
      %1436 = vmatpush1.msra.mxu0 0.0
      %1437 = vmatprep.subr.mxu0 0.0
      %1438 = vmatpush1.msra.mxu0 0.0
      %1439 = vmatprep.mubr.f32.mxu0 0.0
      %1440 = vmatmul.mubr.f32.gmra.mrb[0].mxu0 %v1373
      %v1441 = vpop.f32.mrb[0].mxu0
      %v1442 = vadd.f32 0.0, %v1441
      %v1443 = vpop.f32.mrb[0].mxu0
      %v1444 = vadd.f32 0.0, %v1443
      %1445 = vdwg.mxu0
      %v1446 = vadd.f32 %v1366, %v1442
      %v1447 = vadd.f32 %v1368, %v1444
      %1448 = vrot.lane.b32.xlu0 %v986, 16
      %v1449 = vpop.permute.xlu0 %1448
      %1450 = vrot.lane.b32.xlu0 %v987, 16
      %v1451 = vpop.permute.xlu0 %1450
      %vm1452 = vcmp.lt.s32.totalorder %v694, 16
      %v1453 = vsel %vm1452, %v1449, %v1451
      %v1454 = vsel %vm1452, %v1451, %v1449
      %v1455 = vlaneseq
      %v1456 = vshrl.u32 %v1455, 7
      %v1457 = vsub.s32 2, %v1456
      %v1458 = vrot.slane %v555, %v1457
      %v1459 = vlaneseq
      %v1460 = vshrl.u32 %v1459, 7
      %v1461 = vsub.s32 6, %v1460
      %v1462 = vrot.slane %v555, %v1461
      %v1465 = vlaneseq
      %v1466 = vshrl.u32 %v1465, 7
      %v1467 = vsub.s32 2, %v1466
      %v1468 = vrot.slane %v1458, %v1467
      %v1469 = vlaneseq
      %v1470 = vshrl.u32 %v1469, 7
      %v1471 = vsub.s32 2, %v1470
      %v1472 = vrot.slane %v1462, %v1471
      %v1473 = vmul.f32 %v1454, %v1468
      %v1474 = vmul.f32 %v1453, %v1472
      %v1475 = vadd.f32 %v1473, %v1216
      %v1476 = vadd.f32 %v1474, %v1217
      %1477 = vrot.lane.b32.xlu0 %v1446, 112
      %v1478 = vpop.permute.xlu0 %1477
      %1479 = vrot.lane.b32.xlu0 %v1447, 112
      %v1480 = vpop.permute.xlu0 %1479
      %vm1481 = vcmp.lt.s32.totalorder %v694, 112
      %v1482 = vsel %vm1481, %v1478, %v1480
      %v1483 = vsel %vm1481, %v1480, %v1478
      %v1484 = vlaneseq
      %v1485 = vshrl.u32 %v1484, 7
      %v1486 = vsub.s32 3, %v1485
      %v1487 = vrot.slane %v555, %v1486
      %v1488 = vlaneseq
      %v1489 = vshrl.u32 %v1488, 7
      %v1490 = vsub.s32 7, %v1489
      %v1491 = vrot.slane %v555, %v1490
      %v1494 = vlaneseq
      %v1495 = vshrl.u32 %v1494, 7
      %v1496 = vsub.s32 3, %v1495
      %v1497 = vrot.slane %v1487, %v1496
      %v1498 = vlaneseq
      %v1499 = vshrl.u32 %v1498, 7
      %v1500 = vsub.s32 3, %v1499
      %v1501 = vrot.slane %v1491, %v1500
      %v1502 = vmul.f32 %v1482, %v1497
      %v1503 = vmul.f32 %v1483, %v1501
      %v1504 = vadd.f32 %v1475, %v1502
      %v1505 = vadd.f32 %v1476, %v1503
      %v1508 = vrot.slane %v1504, 4
      %v1509 = vrot.slane %v1505, 4
      %1512 = vst [vmem:[%s548] sm:$0xf0] %v1508
      %1513 = vst [vmem:[%s548 + $0x8] sm:$0xf0] %v1509
      %v1514 = vld [vmem:[%s548] sm:$0xff]
      %v1515 = vld [vmem:[%s548 + $0x8] sm:$0xff]
      %v1516 = vld [vmem:[%s7] sm:$0xff]
      %1518 = vset.pattern.permute.xlu0 0
      %1519 = vperm.xlu0 %1518, %v1516
      %v1520 = vpop.permute.xlu0 %1519
      %v1522 = vmul.f32 %v1514, %v1520
      %v1523 = vmul.f32 %v1515, %v1520
      %v1524 = vld [vmem:[%s8] sm:$0xff]
      %1526 = vset.pattern.permute.xlu0 0
      %1527 = vperm.xlu0 %1526, %v1524
      %v1528 = vpop.permute.xlu0 %1527
      %v1530 = vadd.f32 %v1522, %v1528
      %v1531 = vadd.f32 %v1523, %v1528
      %v1532 = vmax.f32 %v1530, 0.0
      %v1533 = vmax.f32 %v1531, 0.0
      %v1534 = vld [vmem:[%s9] sm:$0xff]
      %v1535 = vld [vmem:[%s9 + $0x8] sm:$0xff]
      %v1536 = vld [vmem:[%s10] sm:$0xff]
      %v1537 = vld [vmem:[%s10 + $0x8] sm:$0xff]
      %1539 = vset.pattern.permute.xlu0 0
      %1540 = vperm.xlu0 %1539, %v1536
      %v1541 = vpop.permute.xlu0 %1540
      %1544 = vset.pattern.permute.xlu0 0
      %1545 = vperm.xlu0 %1544, %v1537
      %v1546 = vpop.permute.xlu0 %1545
      %vm1548 = vcmask 64512
      %v1550 = vsel %vm1548, %v1534, 0
      %v1553 = vsel %vm1548, %v1535, 0
      %1555 = vmatprep.subr.mxu0 %v1533
      %1556 = vmatpush1.msra.mxu0 %v1532
      %1557 = vmatprep.subr.mxu0 0.0
      %1558 = vmatpush1.msra.mxu0 0.0
      %1559 = vmatprep.subr.mxu0 0.0
      %1560 = vmatpush1.msra.mxu0 0.0
      %1561 = vmatprep.subr.mxu0 0.0
      %1562 = vmatpush1.msra.mxu0 0.0
      %1563 = vmatprep.subr.mxu0 0.0
      %1564 = vmatpush1.msra.mxu0 0.0
      %1565 = vmatprep.subr.mxu0 0.0
      %1566 = vmatpush1.msra.mxu0 0.0
      %1567 = vmatprep.subr.mxu0 0.0
      %1568 = vmatpush1.msra.mxu0 0.0
      %1569 = vmatprep.subr.mxu0 0.0
      %1570 = vmatpush1.msra.mxu0 0.0
      %1571 = vmatprep.subr.mxu0 0.0
      %1572 = vmatpush1.msra.mxu0 0.0
      %1573 = vmatprep.subr.mxu0 0.0
      %1574 = vmatpush1.msra.mxu0 0.0
      %1575 = vmatprep.subr.mxu0 0.0
      %1576 = vmatpush1.msra.mxu0 0.0
      %1577 = vmatprep.subr.mxu0 0.0
      %1578 = vmatpush1.msra.mxu0 0.0
      %1579 = vmatprep.subr.mxu0 0.0
      %1580 = vmatpush1.msra.mxu0 0.0
      %1581 = vmatprep.subr.mxu0 0.0
      %1582 = vmatpush1.msra.mxu0 0.0
      %1583 = vmatprep.subr.mxu0 0.0
      %1584 = vmatpush1.msra.mxu0 0.0
      %1585 = vmatprep.subr.mxu0 0.0
      %1586 = vmatpush1.msra.mxu0 0.0
      %1587 = vmatprep.subr.mxu0 0.0
      %1588 = vmatpush1.msra.mxu0 0.0
      %1589 = vmatprep.subr.mxu0 0.0
      %1590 = vmatpush1.msra.mxu0 0.0
      %1591 = vmatprep.subr.mxu0 0.0
      %1592 = vmatpush1.msra.mxu0 0.0
      %1593 = vmatprep.subr.mxu0 0.0
      %1594 = vmatpush1.msra.mxu0 0.0
      %1595 = vmatprep.subr.mxu0 0.0
      %1596 = vmatpush1.msra.mxu0 0.0
      %1597 = vmatprep.subr.mxu0 0.0
      %1598 = vmatpush1.msra.mxu0 0.0
      %1599 = vmatprep.subr.mxu0 0.0
      %1600 = vmatpush1.msra.mxu0 0.0
      %1601 = vmatprep.subr.mxu0 0.0
      %1602 = vmatpush1.msra.mxu0 0.0
      %1603 = vmatprep.subr.mxu0 0.0
      %1604 = vmatpush1.msra.mxu0 0.0
      %1605 = vmatprep.subr.mxu0 0.0
      %1606 = vmatpush1.msra.mxu0 0.0
      %1607 = vmatprep.subr.mxu0 0.0
      %1608 = vmatpush1.msra.mxu0 0.0
      %1609 = vmatprep.subr.mxu0 0.0
      %1610 = vmatpush1.msra.mxu0 0.0
      %1611 = vmatprep.subr.mxu0 0.0
      %1612 = vmatpush1.msra.mxu0 0.0
      %1613 = vmatprep.subr.mxu0 0.0
      %1614 = vmatpush1.msra.mxu0 0.0
      %1615 = vmatprep.subr.mxu0 0.0
      %1616 = vmatpush1.msra.mxu0 0.0
      %1617 = vmatprep.subr.mxu0 0.0
      %1618 = vmatpush1.msra.mxu0 0.0
      %1619 = vmatprep.mubr.f32.mxu0 0.0
      %1620 = vmatmul.mubr.f32.gmra.mrb[0].mxu0 %v1550
      %v1621 = vpop.f32.mrb[0].mxu0
      %v1622 = vadd.f32 %v1541, %v1621
      %v1623 = vpop.f32.mrb[0].mxu0
      %v1624 = vadd.f32 %v1541, %v1623
      %1625 = vmatprep.mubr.f32.mxu0 0.0
      %1626 = vmatmul.mubr.f32.gmra.mrb[0].mxu0 %v1553
      %v1627 = vpop.f32.mrb[0].mxu0
      %v1628 = vadd.f32 %v1546, %v1627
      %v1629 = vpop.f32.mrb[0].mxu0
      %v1630 = vadd.f32 %v1546, %v1629
      %1631 = vdwg.mxu0
      %v1632 = vmax.f32 %v1622, 0.0
      %v1633 = vmax.f32 %v1624, 0.0
      %v1634 = vmax.f32 %v1628, 0.0
      %v1635 = vmax.f32 %v1630, 0.0
      %1636 = vrot.lane.b32.xlu0 %v1632, 1
      %v1637 = vpop.permute.xlu0 %1636
      %1638 = vrot.lane.b32.xlu0 %v1634, 1
      %v1639 = vpop.permute.xlu0 %1638
      %1640 = vrot.lane.b32.xlu0 %v1633, 1
      %v1641 = vpop.permute.xlu0 %1640
      %1642 = vrot.lane.b32.xlu0 %v1635, 1
      %v1643 = vpop.permute.xlu0 %1642
      %v1644 = vsel %vm695, %v1637, %v1641
      %v1645 = vsel %vm695, %v1639, %v1643
      %v1646 = vsel %vm695, %v1641, %v1637
      %v1647 = vsel %vm695, %v1643, %v1639
      %v1648 = vmul.f32 %v1646, %v714
      %v1649 = vmul.f32 %v1644, %v718
      %v1650 = vmul.f32 %v1647, %v714
      %v1651 = vmul.f32 %v1645, %v718
      %1652 = vrot.lane.b32.xlu0 %v1632, 127
      %v1653 = vpop.permute.xlu0 %1652
      %1654 = vrot.lane.b32.xlu0 %v1634, 127
      %v1655 = vpop.permute.xlu0 %1654
      %1656 = vrot.lane.b32.xlu0 %v1633, 127
      %v1657 = vpop.permute.xlu0 %1656
      %1658 = vrot.lane.b32.xlu0 %v1635, 127
      %v1659 = vpop.permute.xlu0 %1658
      %v1660 = vsel %vm731, %v1653, %v1657
      %v1661 = vsel %vm731, %v1655, %v1659
      %v1662 = vsel %vm731, %v1657, %v1653
      %v1663 = vsel %vm731, %v1659, %v1655
      %v1664 = vmul.f32 %v1660, %v749
      %v1665 = vmul.f32 %v1662, %v753
      %v1666 = vmul.f32 %v1661, %v749
      %v1667 = vmul.f32 %v1663, %v753
      %v1668 = vld [vmem:[%s11] sm:$0xf]
      %s1669 = scalar_lea.vmem %s11, 4
      %v1670 = vld [vmem:[%s1669] sm:$0xf]
      %v1672 = vsel %vm761, %v1670, 0
      %1674 = vmatprep.subr.mxu0 %v1633
      %1675 = vmatpush1.msra.mxu0 %v1632
      %1676 = vmatprep.subr.mxu0 %v1635
      %1677 = vmatpush1.msra.mxu0 %v1634
      %1678 = vmatprep.subr.mxu0 0.0
      %1679 = vmatpush1.msra.mxu0 0.0
      %1680 = vmatprep.subr.mxu0 0.0
      %1681 = vmatpush1.msra.mxu0 0.0
      %1682 = vmatprep.subr.mxu0 0.0
      %1683 = vmatpush1.msra.mxu0 0.0
      %1684 = vmatprep.subr.mxu0 0.0
      %1685 = vmatpush1.msra.mxu0 0.0
      %1686 = vmatprep.subr.mxu0 0.0
      %1687 = vmatpush1.msra.mxu0 0.0
      %1688 = vmatprep.subr.mxu0 0.0
      %1689 = vmatpush1.msra.mxu0 0.0
      %1690 = vmatprep.subr.mxu0 0.0
      %1691 = vmatpush1.msra.mxu0 0.0
      %1692 = vmatprep.subr.mxu0 0.0
      %1693 = vmatpush1.msra.mxu0 0.0
      %1694 = vmatprep.subr.mxu0 0.0
      %1695 = vmatpush1.msra.mxu0 0.0
      %1696 = vmatprep.subr.mxu0 0.0
      %1697 = vmatpush1.msra.mxu0 0.0
      %1698 = vmatprep.subr.mxu0 0.0
      %1699 = vmatpush1.msra.mxu0 0.0
      %1700 = vmatprep.subr.mxu0 0.0
      %1701 = vmatpush1.msra.mxu0 0.0
      %1702 = vmatprep.subr.mxu0 0.0
      %1703 = vmatpush1.msra.mxu0 0.0
      %1704 = vmatprep.subr.mxu0 0.0
      %1705 = vmatpush1.msra.mxu0 0.0
      %1706 = vmatprep.subr.mxu0 0.0
      %1707 = vmatpush1.msra.mxu0 0.0
      %1708 = vmatprep.subr.mxu0 0.0
      %1709 = vmatpush1.msra.mxu0 0.0
      %1710 = vmatprep.subr.mxu0 0.0
      %1711 = vmatpush1.msra.mxu0 0.0
      %1712 = vmatprep.subr.mxu0 0.0
      %1713 = vmatpush1.msra.mxu0 0.0
      %1714 = vmatprep.subr.mxu0 0.0
      %1715 = vmatpush1.msra.mxu0 0.0
      %1716 = vmatprep.subr.mxu0 0.0
      %1717 = vmatpush1.msra.mxu0 0.0
      %1718 = vmatprep.subr.mxu0 0.0
      %1719 = vmatpush1.msra.mxu0 0.0
      %1720 = vmatprep.subr.mxu0 0.0
      %1721 = vmatpush1.msra.mxu0 0.0
      %1722 = vmatprep.subr.mxu0 0.0
      %1723 = vmatpush1.msra.mxu0 0.0
      %1724 = vmatprep.subr.mxu0 0.0
      %1725 = vmatpush1.msra.mxu0 0.0
      %1726 = vmatprep.subr.mxu0 0.0
      %1727 = vmatpush1.msra.mxu0 0.0
      %1728 = vmatprep.subr.mxu0 0.0
      %1729 = vmatpush1.msra.mxu0 0.0
      %1730 = vmatprep.subr.mxu0 0.0
      %1731 = vmatpush1.msra.mxu0 0.0
      %1732 = vmatprep.subr.mxu0 0.0
      %1733 = vmatpush1.msra.mxu0 0.0
      %1734 = vmatprep.subr.mxu0 0.0
      %1735 = vmatpush1.msra.mxu0 0.0
      %1736 = vmatprep.subr.mxu0 0.0
      %1737 = vmatpush1.msra.mxu0 0.0
      %1738 = vmatprep.mubr.f32.mxu0 0.0
      %1739 = vmatmul.mubr.f32.gmra.mrb[0].mxu0 %v1672
      %v1740 = vpop.f32.mrb[0].mxu0
      %v1741 = vadd.f32 0.0, %v1740
      %v1742 = vpop.f32.mrb[0].mxu0
      %v1743 = vadd.f32 0.0, %v1742
      %1744 = vdwg.mxu0
      %v1746 = vsel %vm761, %v1668, 0
      %1748 = vmatprep.subr.mxu0 %v1649
      %1749 = vmatpush1.msra.mxu0 %v1648
      %1750 = vmatprep.subr.mxu0 %v1651
      %1751 = vmatpush1.msra.mxu0 %v1650
      %1752 = vmatprep.subr.mxu0 0.0
      %1753 = vmatpush1.msra.mxu0 0.0
      %1754 = vmatprep.subr.mxu0 0.0
      %1755 = vmatpush1.msra.mxu0 0.0
      %1756 = vmatprep.subr.mxu0 0.0
      %1757 = vmatpush1.msra.mxu0 0.0
      %1758 = vmatprep.subr.mxu0 0.0
      %1759 = vmatpush1.msra.mxu0 0.0
      %1760 = vmatprep.subr.mxu0 0.0
      %1761 = vmatpush1.msra.mxu0 0.0
      %1762 = vmatprep.subr.mxu0 0.0
      %1763 = vmatpush1.msra.mxu0 0.0
      %1764 = vmatprep.subr.mxu0 0.0
      %1765 = vmatpush1.msra.mxu0 0.0
      %1766 = vmatprep.subr.mxu0 0.0
      %1767 = vmatpush1.msra.mxu0 0.0
      %1768 = vmatprep.subr.mxu0 0.0
      %1769 = vmatpush1.msra.mxu0 0.0
      %1770 = vmatprep.subr.mxu0 0.0
      %1771 = vmatpush1.msra.mxu0 0.0
      %1772 = vmatprep.subr.mxu0 0.0
      %1773 = vmatpush1.msra.mxu0 0.0
      %1774 = vmatprep.subr.mxu0 0.0
      %1775 = vmatpush1.msra.mxu0 0.0
      %1776 = vmatprep.subr.mxu0 0.0
      %1777 = vmatpush1.msra.mxu0 0.0
      %1778 = vmatprep.subr.mxu0 0.0
      %1779 = vmatpush1.msra.mxu0 0.0
      %1780 = vmatprep.subr.mxu0 0.0
      %1781 = vmatpush1.msra.mxu0 0.0
      %1782 = vmatprep.subr.mxu0 0.0
      %1783 = vmatpush1.msra.mxu0 0.0
      %1784 = vmatprep.subr.mxu0 0.0
      %1785 = vmatpush1.msra.mxu0 0.0
      %1786 = vmatprep.subr.mxu0 0.0
      %1787 = vmatpush1.msra.mxu0 0.0
      %1788 = vmatprep.subr.mxu0 0.0
      %1789 = vmatpush1.msra.mxu0 0.0
      %1790 = vmatprep.subr.mxu0 0.0
      %1791 = vmatpush1.msra.mxu0 0.0
      %1792 = vmatprep.subr.mxu0 0.0
      %1793 = vmatpush1.msra.mxu0 0.0
      %1794 = vmatprep.subr.mxu0 0.0
      %1795 = vmatpush1.msra.mxu0 0.0
      %1796 = vmatprep.subr.mxu0 0.0
      %1797 = vmatpush1.msra.mxu0 0.0
      %1798 = vmatprep.subr.mxu0 0.0
      %1799 = vmatpush1.msra.mxu0 0.0
      %1800 = vmatprep.subr.mxu0 0.0
      %1801 = vmatpush1.msra.mxu0 0.0
      %1802 = vmatprep.subr.mxu0 0.0
      %1803 = vmatpush1.msra.mxu0 0.0
      %1804 = vmatprep.subr.mxu0 0.0
      %1805 = vmatpush1.msra.mxu0 0.0
      %1806 = vmatprep.subr.mxu0 0.0
      %1807 = vmatpush1.msra.mxu0 0.0
      %1808 = vmatprep.subr.mxu0 0.0
      %1809 = vmatpush1.msra.mxu0 0.0
      %1810 = vmatprep.subr.mxu0 0.0
      %1811 = vmatpush1.msra.mxu0 0.0
      %1812 = vmatprep.mubr.f32.mxu0 0.0
      %1813 = vmatmul.mubr.f32.gmra.mrb[0].mxu0 %v1746
      %v1814 = vpop.f32.mrb[0].mxu0
      %v1815 = vadd.f32 %v1741, %v1814
      %v1816 = vpop.f32.mrb[0].mxu0
      %v1817 = vadd.f32 %v1743, %v1816
      %1818 = vdwg.mxu0
      %s1819 = scalar_lea.vmem %s11, 8
      %v1820 = vld [vmem:[%s1819] sm:$0xf]
      %v1822 = vsel %vm761, %v1820, 0
      %1824 = vmatprep.subr.mxu0 %v1665
      %1825 = vmatpush1.msra.mxu0 %v1664
      %1826 = vmatprep.subr.mxu0 %v1667
      %1827 = vmatpush1.msra.mxu0 %v1666
      %1828 = vmatprep.subr.mxu0 0.0
      %1829 = vmatpush1.msra.mxu0 0.0
      %1830 = vmatprep.subr.mxu0 0.0
      %1831 = vmatpush1.msra.mxu0 0.0
      %1832 = vmatprep.subr.mxu0 0.0
      %1833 = vmatpush1.msra.mxu0 0.0
      %1834 = vmatprep.subr.mxu0 0.0
      %1835 = vmatpush1.msra.mxu0 0.0
      %1836 = vmatprep.subr.mxu0 0.0
      %1837 = vmatpush1.msra.mxu0 0.0
      %1838 = vmatprep.subr.mxu0 0.0
      %1839 = vmatpush1.msra.mxu0 0.0
      %1840 = vmatprep.subr.mxu0 0.0
      %1841 = vmatpush1.msra.mxu0 0.0
      %1842 = vmatprep.subr.mxu0 0.0
      %1843 = vmatpush1.msra.mxu0 0.0
      %1844 = vmatprep.subr.mxu0 0.0
      %1845 = vmatpush1.msra.mxu0 0.0
      %1846 = vmatprep.subr.mxu0 0.0
      %1847 = vmatpush1.msra.mxu0 0.0
      %1848 = vmatprep.subr.mxu0 0.0
      %1849 = vmatpush1.msra.mxu0 0.0
      %1850 = vmatprep.subr.mxu0 0.0
      %1851 = vmatpush1.msra.mxu0 0.0
      %1852 = vmatprep.subr.mxu0 0.0
      %1853 = vmatpush1.msra.mxu0 0.0
      %1854 = vmatprep.subr.mxu0 0.0
      %1855 = vmatpush1.msra.mxu0 0.0
      %1856 = vmatprep.subr.mxu0 0.0
      %1857 = vmatpush1.msra.mxu0 0.0
      %1858 = vmatprep.subr.mxu0 0.0
      %1859 = vmatpush1.msra.mxu0 0.0
      %1860 = vmatprep.subr.mxu0 0.0
      %1861 = vmatpush1.msra.mxu0 0.0
      %1862 = vmatprep.subr.mxu0 0.0
      %1863 = vmatpush1.msra.mxu0 0.0
      %1864 = vmatprep.subr.mxu0 0.0
      %1865 = vmatpush1.msra.mxu0 0.0
      %1866 = vmatprep.subr.mxu0 0.0
      %1867 = vmatpush1.msra.mxu0 0.0
      %1868 = vmatprep.subr.mxu0 0.0
      %1869 = vmatpush1.msra.mxu0 0.0
      %1870 = vmatprep.subr.mxu0 0.0
      %1871 = vmatpush1.msra.mxu0 0.0
      %1872 = vmatprep.subr.mxu0 0.0
      %1873 = vmatpush1.msra.mxu0 0.0
      %1874 = vmatprep.subr.mxu0 0.0
      %1875 = vmatpush1.msra.mxu0 0.0
      %1876 = vmatprep.subr.mxu0 0.0
      %1877 = vmatpush1.msra.mxu0 0.0
      %1878 = vmatprep.subr.mxu0 0.0
      %1879 = vmatpush1.msra.mxu0 0.0
      %1880 = vmatprep.subr.mxu0 0.0
      %1881 = vmatpush1.msra.mxu0 0.0
      %1882 = vmatprep.subr.mxu0 0.0
      %1883 = vmatpush1.msra.mxu0 0.0
      %1884 = vmatprep.subr.mxu0 0.0
      %1885 = vmatpush1.msra.mxu0 0.0
      %1886 = vmatprep.subr.mxu0 0.0
      %1887 = vmatpush1.msra.mxu0 0.0
      %1888 = vmatprep.mubr.f32.mxu0 0.0
      %1889 = vmatmul.mubr.f32.gmra.mrb[0].mxu0 %v1822
      %v1890 = vpop.f32.mrb[0].mxu0
      %v1891 = vadd.f32 0.0, %v1890
      %v1892 = vpop.f32.mrb[0].mxu0
      %v1893 = vadd.f32 0.0, %v1892
      %1894 = vdwg.mxu0
      %v1895 = vadd.f32 %v1815, %v1891
      %v1896 = vadd.f32 %v1817, %v1893
      %s1897 = scalar_lea.vmem %s11, 12
      %v1898 = vld [vmem:[%s1897] sm:$0xf]
      %s1899 = scalar_lea.vmem %s11, 16
      %v1900 = vld [vmem:[%s1899] sm:$0xf]
      %v1902 = vsel %vm761, %v1900, 0
      %1904 = vmatprep.subr.mxu0 %v1633
      %1905 = vmatpush1.msra.mxu0 %v1632
      %1906 = vmatprep.subr.mxu0 %v1635
      %1907 = vmatpush1.msra.mxu0 %v1634
      %1908 = vmatprep.subr.mxu0 0.0
      %1909 = vmatpush1.msra.mxu0 0.0
      %1910 = vmatprep.subr.mxu0 0.0
      %1911 = vmatpush1.msra.mxu0 0.0
      %1912 = vmatprep.subr.mxu0 0.0
      %1913 = vmatpush1.msra.mxu0 0.0
      %1914 = vmatprep.subr.mxu0 0.0
      %1915 = vmatpush1.msra.mxu0 0.0
      %1916 = vmatprep.subr.mxu0 0.0
      %1917 = vmatpush1.msra.mxu0 0.0
      %1918 = vmatprep.subr.mxu0 0.0
      %1919 = vmatpush1.msra.mxu0 0.0
      %1920 = vmatprep.subr.mxu0 0.0
      %1921 = vmatpush1.msra.mxu0 0.0
      %1922 = vmatprep.subr.mxu0 0.0
      %1923 = vmatpush1.msra.mxu0 0.0
      %1924 = vmatprep.subr.mxu0 0.0
      %1925 = vmatpush1.msra.mxu0 0.0
      %1926 = vmatprep.subr.mxu0 0.0
      %1927 = vmatpush1.msra.mxu0 0.0
      %1928 = vmatprep.subr.mxu0 0.0
      %1929 = vmatpush1.msra.mxu0 0.0
      %1930 = vmatprep.subr.mxu0 0.0
      %1931 = vmatpush1.msra.mxu0 0.0
      %1932 = vmatprep.subr.mxu0 0.0
      %1933 = vmatpush1.msra.mxu0 0.0
      %1934 = vmatprep.subr.mxu0 0.0
      %1935 = vmatpush1.msra.mxu0 0.0
      %1936 = vmatprep.subr.mxu0 0.0
      %1937 = vmatpush1.msra.mxu0 0.0
      %1938 = vmatprep.subr.mxu0 0.0
      %1939 = vmatpush1.msra.mxu0 0.0
      %1940 = vmatprep.subr.mxu0 0.0
      %1941 = vmatpush1.msra.mxu0 0.0
      %1942 = vmatprep.subr.mxu0 0.0
      %1943 = vmatpush1.msra.mxu0 0.0
      %1944 = vmatprep.subr.mxu0 0.0
      %1945 = vmatpush1.msra.mxu0 0.0
      %1946 = vmatprep.subr.mxu0 0.0
      %1947 = vmatpush1.msra.mxu0 0.0
      %1948 = vmatprep.subr.mxu0 0.0
      %1949 = vmatpush1.msra.mxu0 0.0
      %1950 = vmatprep.subr.mxu0 0.0
      %1951 = vmatpush1.msra.mxu0 0.0
      %1952 = vmatprep.subr.mxu0 0.0
      %1953 = vmatpush1.msra.mxu0 0.0
      %1954 = vmatprep.subr.mxu0 0.0
      %1955 = vmatpush1.msra.mxu0 0.0
      %1956 = vmatprep.subr.mxu0 0.0
      %1957 = vmatpush1.msra.mxu0 0.0
      %1958 = vmatprep.subr.mxu0 0.0
      %1959 = vmatpush1.msra.mxu0 0.0
      %1960 = vmatprep.subr.mxu0 0.0
      %1961 = vmatpush1.msra.mxu0 0.0
      %1962 = vmatprep.subr.mxu0 0.0
      %1963 = vmatpush1.msra.mxu0 0.0
      %1964 = vmatprep.subr.mxu0 0.0
      %1965 = vmatpush1.msra.mxu0 0.0
      %1966 = vmatprep.subr.mxu0 0.0
      %1967 = vmatpush1.msra.mxu0 0.0
      %1968 = vmatprep.mubr.f32.mxu0 0.0
      %1969 = vmatmul.mubr.f32.gmra.mrb[0].mxu0 %v1902
      %v1970 = vpop.f32.mrb[0].mxu0
      %v1971 = vadd.f32 0.0, %v1970
      %v1972 = vpop.f32.mrb[0].mxu0
      %v1973 = vadd.f32 0.0, %v1972
      %1974 = vdwg.mxu0
      %v1976 = vsel %vm761, %v1898, 0
      %1978 = vmatprep.subr.mxu0 %v1649
      %1979 = vmatpush1.msra.mxu0 %v1648
      %1980 = vmatprep.subr.mxu0 %v1651
      %1981 = vmatpush1.msra.mxu0 %v1650
      %1982 = vmatprep.subr.mxu0 0.0
      %1983 = vmatpush1.msra.mxu0 0.0
      %1984 = vmatprep.subr.mxu0 0.0
      %1985 = vmatpush1.msra.mxu0 0.0
      %1986 = vmatprep.subr.mxu0 0.0
      %1987 = vmatpush1.msra.mxu0 0.0
      %1988 = vmatprep.subr.mxu0 0.0
      %1989 = vmatpush1.msra.mxu0 0.0
      %1990 = vmatprep.subr.mxu0 0.0
      %1991 = vmatpush1.msra.mxu0 0.0
      %1992 = vmatprep.subr.mxu0 0.0
      %1993 = vmatpush1.msra.mxu0 0.0
      %1994 = vmatprep.subr.mxu0 0.0
      %1995 = vmatpush1.msra.mxu0 0.0
      %1996 = vmatprep.subr.mxu0 0.0
      %1997 = vmatpush1.msra.mxu0 0.0
      %1998 = vmatprep.subr.mxu0 0.0
      %1999 = vmatpush1.msra.mxu0 0.0
      %2000 = vmatprep.subr.mxu0 0.0
      %2001 = vmatpush1.msra.mxu0 0.0
      %2002 = vmatprep.subr.mxu0 0.0
      %2003 = vmatpush1.msra.mxu0 0.0
      %2004 = vmatprep.subr.mxu0 0.0
      %2005 = vmatpush1.msra.mxu0 0.0
      %2006 = vmatprep.subr.mxu0 0.0
      %2007 = vmatpush1.msra.mxu0 0.0
      %2008 = vmatprep.subr.mxu0 0.0
      %2009 = vmatpush1.msra.mxu0 0.0
      %2010 = vmatprep.subr.mxu0 0.0
      %2011 = vmatpush1.msra.mxu0 0.0
      %2012 = vmatprep.subr.mxu0 0.0
      %2013 = vmatpush1.msra.mxu0 0.0
      %2014 = vmatprep.subr.mxu0 0.0
      %2015 = vmatpush1.msra.mxu0 0.0
      %2016 = vmatprep.subr.mxu0 0.0
      %2017 = vmatpush1.msra.mxu0 0.0
      %2018 = vmatprep.subr.mxu0 0.0
      %2019 = vmatpush1.msra.mxu0 0.0
      %2020 = vmatprep.subr.mxu0 0.0
      %2021 = vmatpush1.msra.mxu0 0.0
      %2022 = vmatprep.subr.mxu0 0.0
      %2023 = vmatpush1.msra.mxu0 0.0
      %2024 = vmatprep.subr.mxu0 0.0
      %2025 = vmatpush1.msra.mxu0 0.0
      %2026 = vmatprep.subr.mxu0 0.0
      %2027 = vmatpush1.msra.mxu0 0.0
      %2028 = vmatprep.subr.mxu0 0.0
      %2029 = vmatpush1.msra.mxu0 0.0
      %2030 = vmatprep.subr.mxu0 0.0
      %2031 = vmatpush1.msra.mxu0 0.0
      %2032 = vmatprep.subr.mxu0 0.0
      %2033 = vmatpush1.msra.mxu0 0.0
      %2034 = vmatprep.subr.mxu0 0.0
      %2035 = vmatpush1.msra.mxu0 0.0
      %2036 = vmatprep.subr.mxu0 0.0
      %2037 = vmatpush1.msra.mxu0 0.0
      %2038 = vmatprep.subr.mxu0 0.0
      %2039 = vmatpush1.msra.mxu0 0.0
      %2040 = vmatprep.subr.mxu0 0.0
      %2041 = vmatpush1.msra.mxu0 0.0
      %2042 = vmatprep.mubr.f32.mxu0 0.0
      %2043 = vmatmul.mubr.f32.gmra.mrb[0].mxu0 %v1976
      %v2044 = vpop.f32.mrb[0].mxu0
      %v2045 = vadd.f32 %v1971, %v2044
      %v2046 = vpop.f32.mrb[0].mxu0
      %v2047 = vadd.f32 %v1973, %v2046
      %2048 = vdwg.mxu0
      %s2049 = scalar_lea.vmem %s11, 20
      %v2050 = vld [vmem:[%s2049] sm:$0xf]
      %v2052 = vsel %vm761, %v2050, 0
      %2054 = vmatprep.subr.mxu0 %v1665
      %2055 = vmatpush1.msra.mxu0 %v1664
      %2056 = vmatprep.subr.mxu0 %v1667
      %2057 = vmatpush1.msra.mxu0 %v1666
      %2058 = vmatprep.subr.mxu0 0.0
      %2059 = vmatpush1.msra.mxu0 0.0
      %2060 = vmatprep.subr.mxu0 0.0
      %2061 = vmatpush1.msra.mxu0 0.0
      %2062 = vmatprep.subr.mxu0 0.0
      %2063 = vmatpush1.msra.mxu0 0.0
      %2064 = vmatprep.subr.mxu0 0.0
      %2065 = vmatpush1.msra.mxu0 0.0
      %2066 = vmatprep.subr.mxu0 0.0
      %2067 = vmatpush1.msra.mxu0 0.0
      %2068 = vmatprep.subr.mxu0 0.0
      %2069 = vmatpush1.msra.mxu0 0.0
      %2070 = vmatprep.subr.mxu0 0.0
      %2071 = vmatpush1.msra.mxu0 0.0
      %2072 = vmatprep.subr.mxu0 0.0
      %2073 = vmatpush1.msra.mxu0 0.0
      %2074 = vmatprep.subr.mxu0 0.0
      %2075 = vmatpush1.msra.mxu0 0.0
      %2076 = vmatprep.subr.mxu0 0.0
      %2077 = vmatpush1.msra.mxu0 0.0
      %2078 = vmatprep.subr.mxu0 0.0
      %2079 = vmatpush1.msra.mxu0 0.0
      %2080 = vmatprep.subr.mxu0 0.0
      %2081 = vmatpush1.msra.mxu0 0.0
      %2082 = vmatprep.subr.mxu0 0.0
      %2083 = vmatpush1.msra.mxu0 0.0
      %2084 = vmatprep.subr.mxu0 0.0
      %2085 = vmatpush1.msra.mxu0 0.0
      %2086 = vmatprep.subr.mxu0 0.0
      %2087 = vmatpush1.msra.mxu0 0.0
      %2088 = vmatprep.subr.mxu0 0.0
      %2089 = vmatpush1.msra.mxu0 0.0
      %2090 = vmatprep.subr.mxu0 0.0
      %2091 = vmatpush1.msra.mxu0 0.0
      %2092 = vmatprep.subr.mxu0 0.0
      %2093 = vmatpush1.msra.mxu0 0.0
      %2094 = vmatprep.subr.mxu0 0.0
      %2095 = vmatpush1.msra.mxu0 0.0
      %2096 = vmatprep.subr.mxu0 0.0
      %2097 = vmatpush1.msra.mxu0 0.0
      %2098 = vmatprep.subr.mxu0 0.0
      %2099 = vmatpush1.msra.mxu0 0.0
      %2100 = vmatprep.subr.mxu0 0.0
      %2101 = vmatpush1.msra.mxu0 0.0
      %2102 = vmatprep.subr.mxu0 0.0
      %2103 = vmatpush1.msra.mxu0 0.0
      %2104 = vmatprep.subr.mxu0 0.0
      %2105 = vmatpush1.msra.mxu0 0.0
      %2106 = vmatprep.subr.mxu0 0.0
      %2107 = vmatpush1.msra.mxu0 0.0
      %2108 = vmatprep.subr.mxu0 0.0
      %2109 = vmatpush1.msra.mxu0 0.0
      %2110 = vmatprep.subr.mxu0 0.0
      %2111 = vmatpush1.msra.mxu0 0.0
      %2112 = vmatprep.subr.mxu0 0.0
      %2113 = vmatpush1.msra.mxu0 0.0
      %2114 = vmatprep.subr.mxu0 0.0
      %2115 = vmatpush1.msra.mxu0 0.0
      %2116 = vmatprep.subr.mxu0 0.0
      %2117 = vmatpush1.msra.mxu0 0.0
      %2118 = vmatprep.mubr.f32.mxu0 0.0
      %2119 = vmatmul.mubr.f32.gmra.mrb[0].mxu0 %v2052
      %v2120 = vpop.f32.mrb[0].mxu0
      %v2121 = vadd.f32 0.0, %v2120
      %v2122 = vpop.f32.mrb[0].mxu0
      %v2123 = vadd.f32 0.0, %v2122
      %2124 = vdwg.mxu0
      %v2125 = vadd.f32 %v2045, %v2121
      %v2126 = vadd.f32 %v2047, %v2123
      %s2127 = scalar_lea.vmem %s11, 24
      %v2128 = vld [vmem:[%s2127] sm:$0xf]
      %s2129 = scalar_lea.vmem %s11, 28
      %v2130 = vld [vmem:[%s2129] sm:$0xf]
      %v2132 = vsel %vm761, %v2130, 0
      %2134 = vmatprep.subr.mxu0 %v1633
      %2135 = vmatpush1.msra.mxu0 %v1632
      %2136 = vmatprep.subr.mxu0 %v1635
      %2137 = vmatpush1.msra.mxu0 %v1634
      %2138 = vmatprep.subr.mxu0 0.0
      %2139 = vmatpush1.msra.mxu0 0.0
      %2140 = vmatprep.subr.mxu0 0.0
      %2141 = vmatpush1.msra.mxu0 0.0
      %2142 = vmatprep.subr.mxu0 0.0
      %2143 = vmatpush1.msra.mxu0 0.0
      %2144 = vmatprep.subr.mxu0 0.0
      %2145 = vmatpush1.msra.mxu0 0.0
      %2146 = vmatprep.subr.mxu0 0.0
      %2147 = vmatpush1.msra.mxu0 0.0
      %2148 = vmatprep.subr.mxu0 0.0
      %2149 = vmatpush1.msra.mxu0 0.0
      %2150 = vmatprep.subr.mxu0 0.0
      %2151 = vmatpush1.msra.mxu0 0.0
      %2152 = vmatprep.subr.mxu0 0.0
      %2153 = vmatpush1.msra.mxu0 0.0
      %2154 = vmatprep.subr.mxu0 0.0
      %2155 = vmatpush1.msra.mxu0 0.0
      %2156 = vmatprep.subr.mxu0 0.0
      %2157 = vmatpush1.msra.mxu0 0.0
      %2158 = vmatprep.subr.mxu0 0.0
      %2159 = vmatpush1.msra.mxu0 0.0
      %2160 = vmatprep.subr.mxu0 0.0
      %2161 = vmatpush1.msra.mxu0 0.0
      %2162 = vmatprep.subr.mxu0 0.0
      %2163 = vmatpush1.msra.mxu0 0.0
      %2164 = vmatprep.subr.mxu0 0.0
      %2165 = vmatpush1.msra.mxu0 0.0
      %2166 = vmatprep.subr.mxu0 0.0
      %2167 = vmatpush1.msra.mxu0 0.0
      %2168 = vmatprep.subr.mxu0 0.0
      %2169 = vmatpush1.msra.mxu0 0.0
      %2170 = vmatprep.subr.mxu0 0.0
      %2171 = vmatpush1.msra.mxu0 0.0
      %2172 = vmatprep.subr.mxu0 0.0
      %2173 = vmatpush1.msra.mxu0 0.0
      %2174 = vmatprep.subr.mxu0 0.0
      %2175 = vmatpush1.msra.mxu0 0.0
      %2176 = vmatprep.subr.mxu0 0.0
      %2177 = vmatpush1.msra.mxu0 0.0
      %2178 = vmatprep.subr.mxu0 0.0
      %2179 = vmatpush1.msra.mxu0 0.0
      %2180 = vmatprep.subr.mxu0 0.0
      %2181 = vmatpush1.msra.mxu0 0.0
      %2182 = vmatprep.subr.mxu0 0.0
      %2183 = vmatpush1.msra.mxu0 0.0
      %2184 = vmatprep.subr.mxu0 0.0
      %2185 = vmatpush1.msra.mxu0 0.0
      %2186 = vmatprep.subr.mxu0 0.0
      %2187 = vmatpush1.msra.mxu0 0.0
      %2188 = vmatprep.subr.mxu0 0.0
      %2189 = vmatpush1.msra.mxu0 0.0
      %2190 = vmatprep.subr.mxu0 0.0
      %2191 = vmatpush1.msra.mxu0 0.0
      %2192 = vmatprep.subr.mxu0 0.0
      %2193 = vmatpush1.msra.mxu0 0.0
      %2194 = vmatprep.subr.mxu0 0.0
      %2195 = vmatpush1.msra.mxu0 0.0
      %2196 = vmatprep.subr.mxu0 0.0
      %2197 = vmatpush1.msra.mxu0 0.0
      %2198 = vmatprep.mubr.f32.mxu0 0.0
      %2199 = vmatmul.mubr.f32.gmra.mrb[0].mxu0 %v2132
      %v2200 = vpop.f32.mrb[0].mxu0
      %v2201 = vadd.f32 0.0, %v2200
      %v2202 = vpop.f32.mrb[0].mxu0
      %v2203 = vadd.f32 0.0, %v2202
      %2204 = vdwg.mxu0
      %v2206 = vsel %vm761, %v2128, 0
      %2208 = vmatprep.subr.mxu0 %v1649
      %2209 = vmatpush1.msra.mxu0 %v1648
      %2210 = vmatprep.subr.mxu0 %v1651
      %2211 = vmatpush1.msra.mxu0 %v1650
      %2212 = vmatprep.subr.mxu0 0.0
      %2213 = vmatpush1.msra.mxu0 0.0
      %2214 = vmatprep.subr.mxu0 0.0
      %2215 = vmatpush1.msra.mxu0 0.0
      %2216 = vmatprep.subr.mxu0 0.0
      %2217 = vmatpush1.msra.mxu0 0.0
      %2218 = vmatprep.subr.mxu0 0.0
      %2219 = vmatpush1.msra.mxu0 0.0
      %2220 = vmatprep.subr.mxu0 0.0
      %2221 = vmatpush1.msra.mxu0 0.0
      %2222 = vmatprep.subr.mxu0 0.0
      %2223 = vmatpush1.msra.mxu0 0.0
      %2224 = vmatprep.subr.mxu0 0.0
      %2225 = vmatpush1.msra.mxu0 0.0
      %2226 = vmatprep.subr.mxu0 0.0
      %2227 = vmatpush1.msra.mxu0 0.0
      %2228 = vmatprep.subr.mxu0 0.0
      %2229 = vmatpush1.msra.mxu0 0.0
      %2230 = vmatprep.subr.mxu0 0.0
      %2231 = vmatpush1.msra.mxu0 0.0
      %2232 = vmatprep.subr.mxu0 0.0
      %2233 = vmatpush1.msra.mxu0 0.0
      %2234 = vmatprep.subr.mxu0 0.0
      %2235 = vmatpush1.msra.mxu0 0.0
      %2236 = vmatprep.subr.mxu0 0.0
      %2237 = vmatpush1.msra.mxu0 0.0
      %2238 = vmatprep.subr.mxu0 0.0
      %2239 = vmatpush1.msra.mxu0 0.0
      %2240 = vmatprep.subr.mxu0 0.0
      %2241 = vmatpush1.msra.mxu0 0.0
      %2242 = vmatprep.subr.mxu0 0.0
      %2243 = vmatpush1.msra.mxu0 0.0
      %2244 = vmatprep.subr.mxu0 0.0
      %2245 = vmatpush1.msra.mxu0 0.0
      %2246 = vmatprep.subr.mxu0 0.0
      %2247 = vmatpush1.msra.mxu0 0.0
      %2248 = vmatprep.subr.mxu0 0.0
      %2249 = vmatpush1.msra.mxu0 0.0
      %2250 = vmatprep.subr.mxu0 0.0
      %2251 = vmatpush1.msra.mxu0 0.0
      %2252 = vmatprep.subr.mxu0 0.0
      %2253 = vmatpush1.msra.mxu0 0.0
      %2254 = vmatprep.subr.mxu0 0.0
      %2255 = vmatpush1.msra.mxu0 0.0
      %2256 = vmatprep.subr.mxu0 0.0
      %2257 = vmatpush1.msra.mxu0 0.0
      %2258 = vmatprep.subr.mxu0 0.0
      %2259 = vmatpush1.msra.mxu0 0.0
      %2260 = vmatprep.subr.mxu0 0.0
      %2261 = vmatpush1.msra.mxu0 0.0
      %2262 = vmatprep.subr.mxu0 0.0
      %2263 = vmatpush1.msra.mxu0 0.0
      %2264 = vmatprep.subr.mxu0 0.0
      %2265 = vmatpush1.msra.mxu0 0.0
      %2266 = vmatprep.subr.mxu0 0.0
      %2267 = vmatpush1.msra.mxu0 0.0
      %2268 = vmatprep.subr.mxu0 0.0
      %2269 = vmatpush1.msra.mxu0 0.0
      %2270 = vmatprep.subr.mxu0 0.0
      %2271 = vmatpush1.msra.mxu0 0.0
      %2272 = vmatprep.mubr.f32.mxu0 0.0
      %2273 = vmatmul.mubr.f32.gmra.mrb[0].mxu0 %v2206
      %v2274 = vpop.f32.mrb[0].mxu0
      %v2275 = vadd.f32 %v2201, %v2274
      %v2276 = vpop.f32.mrb[0].mxu0
      %v2277 = vadd.f32 %v2203, %v2276
      %2278 = vdwg.mxu0
      %s2279 = scalar_lea.vmem %s11, 32
      %v2280 = vld [vmem:[%s2279] sm:$0xf]
      %v2282 = vsel %vm761, %v2280, 0
      %2284 = vmatprep.subr.mxu0 %v1665
      %2285 = vmatpush1.msra.mxu0 %v1664
      %2286 = vmatprep.subr.mxu0 %v1667
      %2287 = vmatpush1.msra.mxu0 %v1666
      %2288 = vmatprep.subr.mxu0 0.0
      %2289 = vmatpush1.msra.mxu0 0.0
      %2290 = vmatprep.subr.mxu0 0.0
      %2291 = vmatpush1.msra.mxu0 0.0
      %2292 = vmatprep.subr.mxu0 0.0
      %2293 = vmatpush1.msra.mxu0 0.0
      %2294 = vmatprep.subr.mxu0 0.0
      %2295 = vmatpush1.msra.mxu0 0.0
      %2296 = vmatprep.subr.mxu0 0.0
      %2297 = vmatpush1.msra.mxu0 0.0
      %2298 = vmatprep.subr.mxu0 0.0
      %2299 = vmatpush1.msra.mxu0 0.0
      %2300 = vmatprep.subr.mxu0 0.0
      %2301 = vmatpush1.msra.mxu0 0.0
      %2302 = vmatprep.subr.mxu0 0.0
      %2303 = vmatpush1.msra.mxu0 0.0
      %2304 = vmatprep.subr.mxu0 0.0
      %2305 = vmatpush1.msra.mxu0 0.0
      %2306 = vmatprep.subr.mxu0 0.0
      %2307 = vmatpush1.msra.mxu0 0.0
      %2308 = vmatprep.subr.mxu0 0.0
      %2309 = vmatpush1.msra.mxu0 0.0
      %2310 = vmatprep.subr.mxu0 0.0
      %2311 = vmatpush1.msra.mxu0 0.0
      %2312 = vmatprep.subr.mxu0 0.0
      %2313 = vmatpush1.msra.mxu0 0.0
      %2314 = vmatprep.subr.mxu0 0.0
      %2315 = vmatpush1.msra.mxu0 0.0
      %2316 = vmatprep.subr.mxu0 0.0
      %2317 = vmatpush1.msra.mxu0 0.0
      %2318 = vmatprep.subr.mxu0 0.0
      %2319 = vmatpush1.msra.mxu0 0.0
      %2320 = vmatprep.subr.mxu0 0.0
      %2321 = vmatpush1.msra.mxu0 0.0
      %2322 = vmatprep.subr.mxu0 0.0
      %2323 = vmatpush1.msra.mxu0 0.0
      %2324 = vmatprep.subr.mxu0 0.0
      %2325 = vmatpush1.msra.mxu0 0.0
      %2326 = vmatprep.subr.mxu0 0.0
      %2327 = vmatpush1.msra.mxu0 0.0
      %2328 = vmatprep.subr.mxu0 0.0
      %2329 = vmatpush1.msra.mxu0 0.0
      %2330 = vmatprep.subr.mxu0 0.0
      %2331 = vmatpush1.msra.mxu0 0.0
      %2332 = vmatprep.subr.mxu0 0.0
      %2333 = vmatpush1.msra.mxu0 0.0
      %2334 = vmatprep.subr.mxu0 0.0
      %2335 = vmatpush1.msra.mxu0 0.0
      %2336 = vmatprep.subr.mxu0 0.0
      %2337 = vmatpush1.msra.mxu0 0.0
      %2338 = vmatprep.subr.mxu0 0.0
      %2339 = vmatpush1.msra.mxu0 0.0
      %2340 = vmatprep.subr.mxu0 0.0
      %2341 = vmatpush1.msra.mxu0 0.0
      %2342 = vmatprep.subr.mxu0 0.0
      %2343 = vmatpush1.msra.mxu0 0.0
      %2344 = vmatprep.subr.mxu0 0.0
      %2345 = vmatpush1.msra.mxu0 0.0
      %2346 = vmatprep.subr.mxu0 0.0
      %2347 = vmatpush1.msra.mxu0 0.0
      %2348 = vmatprep.mubr.f32.mxu0 0.0
      %2349 = vmatmul.mubr.f32.gmra.mrb[0].mxu0 %v2282
      %v2350 = vpop.f32.mrb[0].mxu0
      %v2351 = vadd.f32 0.0, %v2350
      %v2352 = vpop.f32.mrb[0].mxu0
      %v2353 = vadd.f32 0.0, %v2352
      %2354 = vdwg.mxu0
      %v2355 = vadd.f32 %v2275, %v2351
      %v2356 = vadd.f32 %v2277, %v2353
      %2357 = vrot.lane.b32.xlu0 %v1895, 16
      %v2358 = vpop.permute.xlu0 %2357
      %2359 = vrot.lane.b32.xlu0 %v1896, 16
      %v2360 = vpop.permute.xlu0 %2359
      %v2361 = vsel %vm1452, %v2358, %v2360
      %v2362 = vsel %vm1452, %v2360, %v2358
      %v2363 = vmul.f32 %v2362, %v1468
      %v2364 = vmul.f32 %v2361, %v1472
      %v2365 = vadd.f32 %v2363, %v2125
      %v2366 = vadd.f32 %v2364, %v2126
      %2367 = vrot.lane.b32.xlu0 %v2355, 112
      %v2368 = vpop.permute.xlu0 %2367
      %2369 = vrot.lane.b32.xlu0 %v2356, 112
      %v2370 = vpop.permute.xlu0 %2369
      %v2371 = vsel %vm1481, %v2368, %v2370
      %v2372 = vsel %vm1481, %v2370, %v2368
      %v2373 = vmul.f32 %v2371, %v1497
      %v2374 = vmul.f32 %v2372, %v1501
      %v2375 = vadd.f32 %v2365, %v2373
      %v2376 = vadd.f32 %v2366, %v2374
      %2377 = vst [vmem:[%s548 + $0x10] sm:$0xf] %v2375
      %2378 = vst [vmem:[%s548 + $0x18] sm:$0xf] %v2376
      %v2379 = vld [vmem:[%s548] sm:$0xff]
      %v2380 = vld [vmem:[%s548 + $0x8] sm:$0xff]
      %v2381 = vld [vmem:[%s548 + $0x10] sm:$0xf]
      %v2382 = vld [vmem:[%s548 + $0x18] sm:$0xf]
      %v2383 = vld [vmem:[%s12] sm:$0xff]
      %v2384 = vld [vmem:[%s12 + $0x8] sm:$0xf]
      %2386 = vset.pattern.permute.xlu0 0
      %2387 = vperm.xlu0 %2386, %v2383
      %v2388 = vpop.permute.xlu0 %2387
      %2391 = vset.pattern.permute.xlu0 0
      %2392 = vperm.xlu0 %2391, %v2384
      %v2393 = vpop.permute.xlu0 %2392
      %v2395 = vmul.f32 %v2379, %v2388
      %v2396 = vmul.f32 %v2380, %v2388
      %v2397 = vmul.f32 %v2381, %v2393
      %v2398 = vmul.f32 %v2382, %v2393
      %v2399 = vld [vmem:[%s13] sm:$0xff]
      %v2400 = vld [vmem:[%s13 + $0x8] sm:$0xf]
      %2402 = vset.pattern.permute.xlu0 0
      %2403 = vperm.xlu0 %2402, %v2399
      %v2404 = vpop.permute.xlu0 %2403
      %2407 = vset.pattern.permute.xlu0 0
      %2408 = vperm.xlu0 %2407, %v2400
      %v2409 = vpop.permute.xlu0 %2408
      %v2411 = vadd.f32 %v2395, %v2404
      %v2412 = vadd.f32 %v2396, %v2404
      %v2413 = vadd.f32 %v2397, %v2409
      %v2414 = vadd.f32 %v2398, %v2409
      %v2415 = vmax.f32 %v2411, 0.0
      %v2416 = vmax.f32 %v2412, 0.0
      %v2417 = vmax.f32 %v2413, 0.0
      %v2418 = vmax.f32 %v2414, 0.0
      %v2419 = vld [vmem:[%s14] sm:$0xff]
      %v2420 = vld [vmem:[%s14 + $0x8] sm:$0xff]
      %v2421 = vld [vmem:[%s15] sm:$0xff]
      %v2422 = vld [vmem:[%s15 + $0x8] sm:$0xff]
      %2424 = vset.pattern.permute.xlu0 0
      %2425 = vperm.xlu0 %2424, %v2421
      %v2426 = vpop.permute.xlu0 %2425
      %2429 = vset.pattern.permute.xlu0 0
      %2430 = vperm.xlu0 %2429, %v2422
      %v2431 = vpop.permute.xlu0 %2430
      %vm2433 = vcmask 97280
      %v2435 = vsel %vm2433, %v2419, 0
      %v2438 = vsel %vm2433, %v2420, 0
      %v2441 = vsel %vm597, %v2417, 0
      %v2444 = vsel %vm597, %v2418, 0
      %2446 = vmatprep.subr.mxu0 %v2416
      %2447 = vmatpush1.msra.mxu0 %v2415
      %2448 = vmatprep.subr.mxu0 %v2444
      %2449 = vmatpush1.msra.mxu0 %v2441
      %2450 = vmatprep.subr.mxu0 0.0
      %2451 = vmatpush1.msra.mxu0 0.0
      %2452 = vmatprep.subr.mxu0 0.0
      %2453 = vmatpush1.msra.mxu0 0.0
      %2454 = vmatprep.subr.mxu0 0.0
      %2455 = vmatpush1.msra.mxu0 0.0
      %2456 = vmatprep.subr.mxu0 0.0
      %2457 = vmatpush1.msra.mxu0 0.0
      %2458 = vmatprep.subr.mxu0 0.0
      %2459 = vmatpush1.msra.mxu0 0.0
      %2460 = vmatprep.subr.mxu0 0.0
      %2461 = vmatpush1.msra.mxu0 0.0
      %2462 = vmatprep.subr.mxu0 0.0
      %2463 = vmatpush1.msra.mxu0 0.0
      %2464 = vmatprep.subr.mxu0 0.0
      %2465 = vmatpush1.msra.mxu0 0.0
      %2466 = vmatprep.subr.mxu0 0.0
      %2467 = vmatpush1.msra.mxu0 0.0
      %2468 = vmatprep.subr.mxu0 0.0
      %2469 = vmatpush1.msra.mxu0 0.0
      %2470 = vmatprep.subr.mxu0 0.0
      %2471 = vmatpush1.msra.mxu0 0.0
      %2472 = vmatprep.subr.mxu0 0.0
      %2473 = vmatpush1.msra.mxu0 0.0
      %2474 = vmatprep.subr.mxu0 0.0
      %2475 = vmatpush1.msra.mxu0 0.0
      %2476 = vmatprep.subr.mxu0 0.0
      %2477 = vmatpush1.msra.mxu0 0.0
      %2478 = vmatprep.subr.mxu0 0.0
      %2479 = vmatpush1.msra.mxu0 0.0
      %2480 = vmatprep.subr.mxu0 0.0
      %2481 = vmatpush1.msra.mxu0 0.0
      %2482 = vmatprep.subr.mxu0 0.0
      %2483 = vmatpush1.msra.mxu0 0.0
      %2484 = vmatprep.subr.mxu0 0.0
      %2485 = vmatpush1.msra.mxu0 0.0
      %2486 = vmatprep.subr.mxu0 0.0
      %2487 = vmatpush1.msra.mxu0 0.0
      %2488 = vmatprep.subr.mxu0 0.0
      %2489 = vmatpush1.msra.mxu0 0.0
      %2490 = vmatprep.subr.mxu0 0.0
      %2491 = vmatpush1.msra.mxu0 0.0
      %2492 = vmatprep.subr.mxu0 0.0
      %2493 = vmatpush1.msra.mxu0 0.0
      %2494 = vmatprep.subr.mxu0 0.0
      %2495 = vmatpush1.msra.mxu0 0.0
      %2496 = vmatprep.subr.mxu0 0.0
      %2497 = vmatpush1.msra.mxu0 0.0
      %2498 = vmatprep.subr.mxu0 0.0
      %2499 = vmatpush1.msra.mxu0 0.0
      %2500 = vmatprep.subr.mxu0 0.0
      %2501 = vmatpush1.msra.mxu0 0.0
      %2502 = vmatprep.subr.mxu0 0.0
      %2503 = vmatpush1.msra.mxu0 0.0
      %2504 = vmatprep.subr.mxu0 0.0
      %2505 = vmatpush1.msra.mxu0 0.0
      %2506 = vmatprep.subr.mxu0 0.0
      %2507 = vmatpush1.msra.mxu0 0.0
      %2508 = vmatprep.subr.mxu0 0.0
      %2509 = vmatpush1.msra.mxu0 0.0
      %2510 = vmatprep.mubr.f32.mxu0 0.0
      %2511 = vmatmul.mubr.f32.gmra.mrb[0].mxu0 %v2435
      %v2512 = vpop.f32.mrb[0].mxu0
      %v2513 = vadd.f32 %v2426, %v2512
      %v2514 = vpop.f32.mrb[0].mxu0
      %v2515 = vadd.f32 %v2426, %v2514
      %2516 = vmatprep.mubr.f32.mxu0 0.0
      %2517 = vmatmul.mubr.f32.gmra.mrb[0].mxu0 %v2438
      %v2518 = vpop.f32.mrb[0].mxu0
      %v2519 = vadd.f32 %v2431, %v2518
      %v2520 = vpop.f32.mrb[0].mxu0
      %v2521 = vadd.f32 %v2431, %v2520
      %2522 = vdwg.mxu0
      %v2523 = vmax.f32 %v2513, 0.0
      %v2524 = vmax.f32 %v2515, 0.0
      %v2525 = vmax.f32 %v2519, 0.0
      %v2526 = vmax.f32 %v2521, 0.0
      %2527 = vrot.lane.b32.xlu0 %v2523, 1
      %v2528 = vpop.permute.xlu0 %2527
      %2529 = vrot.lane.b32.xlu0 %v2525, 1
      %v2530 = vpop.permute.xlu0 %2529
      %2531 = vrot.lane.b32.xlu0 %v2524, 1
      %v2532 = vpop.permute.xlu0 %2531
      %2533 = vrot.lane.b32.xlu0 %v2526, 1
      %v2534 = vpop.permute.xlu0 %2533
      %v2535 = vsel %vm695, %v2528, %v2532
      %v2536 = vsel %vm695, %v2530, %v2534
      %v2537 = vsel %vm695, %v2532, %v2528
      %v2538 = vsel %vm695, %v2534, %v2530
      %v2539 = vmul.f32 %v2537, %v714
      %v2540 = vmul.f32 %v2535, %v718
      %v2541 = vmul.f32 %v2538, %v714
      %v2542 = vmul.f32 %v2536, %v718
      %2543 = vrot.lane.b32.xlu0 %v2523, 127
      %v2544 = vpop.permute.xlu0 %2543
      %2545 = vrot.lane.b32.xlu0 %v2525, 127
      %v2546 = vpop.permute.xlu0 %2545
      %2547 = vrot.lane.b32.xlu0 %v2524, 127
      %v2548 = vpop.permute.xlu0 %2547
      %2549 = vrot.lane.b32.xlu0 %v2526, 127
      %v2550 = vpop.permute.xlu0 %2549
      %v2551 = vsel %vm731, %v2544, %v2548
      %v2552 = vsel %vm731, %v2546, %v2550
      %v2553 = vsel %vm731, %v2548, %v2544
      %v2554 = vsel %vm731, %v2550, %v2546
      %v2555 = vmul.f32 %v2551, %v749
      %v2556 = vmul.f32 %v2553, %v753
      %v2557 = vmul.f32 %v2552, %v749
      %v2558 = vmul.f32 %v2554, %v753
      %v2559 = vld [vmem:[%s16] sm:$0xf]
      %s2560 = scalar_lea.vmem %s16, 4
      %v2561 = vld [vmem:[%s2560] sm:$0xf]
      %v2563 = vsel %vm761, %v2561, 0
      %2565 = vmatprep.subr.mxu0 %v2524
      %2566 = vmatpush1.msra.mxu0 %v2523
      %2567 = vmatprep.subr.mxu0 %v2526
      %2568 = vmatpush1.msra.mxu0 %v2525
      %2569 = vmatprep.subr.mxu0 0.0
      %2570 = vmatpush1.msra.mxu0 0.0
      %2571 = vmatprep.subr.mxu0 0.0
      %2572 = vmatpush1.msra.mxu0 0.0
      %2573 = vmatprep.subr.mxu0 0.0
      %2574 = vmatpush1.msra.mxu0 0.0
      %2575 = vmatprep.subr.mxu0 0.0
      %2576 = vmatpush1.msra.mxu0 0.0
      %2577 = vmatprep.subr.mxu0 0.0
      %2578 = vmatpush1.msra.mxu0 0.0
      %2579 = vmatprep.subr.mxu0 0.0
      %2580 = vmatpush1.msra.mxu0 0.0
      %2581 = vmatprep.subr.mxu0 0.0
      %2582 = vmatpush1.msra.mxu0 0.0
      %2583 = vmatprep.subr.mxu0 0.0
      %2584 = vmatpush1.msra.mxu0 0.0
      %2585 = vmatprep.subr.mxu0 0.0
      %2586 = vmatpush1.msra.mxu0 0.0
      %2587 = vmatprep.subr.mxu0 0.0
      %2588 = vmatpush1.msra.mxu0 0.0
      %2589 = vmatprep.subr.mxu0 0.0
      %2590 = vmatpush1.msra.mxu0 0.0
      %2591 = vmatprep.subr.mxu0 0.0
      %2592 = vmatpush1.msra.mxu0 0.0
      %2593 = vmatprep.subr.mxu0 0.0
      %2594 = vmatpush1.msra.mxu0 0.0
      %2595 = vmatprep.subr.mxu0 0.0
      %2596 = vmatpush1.msra.mxu0 0.0
      %2597 = vmatprep.subr.mxu0 0.0
      %2598 = vmatpush1.msra.mxu0 0.0
      %2599 = vmatprep.subr.mxu0 0.0
      %2600 = vmatpush1.msra.mxu0 0.0
      %2601 = vmatprep.subr.mxu0 0.0
      %2602 = vmatpush1.msra.mxu0 0.0
      %2603 = vmatprep.subr.mxu0 0.0
      %2604 = vmatpush1.msra.mxu0 0.0
      %2605 = vmatprep.subr.mxu0 0.0
      %2606 = vmatpush1.msra.mxu0 0.0
      %2607 = vmatprep.subr.mxu0 0.0
      %2608 = vmatpush1.msra.mxu0 0.0
      %2609 = vmatprep.subr.mxu0 0.0
      %2610 = vmatpush1.msra.mxu0 0.0
      %2611 = vmatprep.subr.mxu0 0.0
      %2612 = vmatpush1.msra.mxu0 0.0
      %2613 = vmatprep.subr.mxu0 0.0
      %2614 = vmatpush1.msra.mxu0 0.0
      %2615 = vmatprep.subr.mxu0 0.0
      %2616 = vmatpush1.msra.mxu0 0.0
      %2617 = vmatprep.subr.mxu0 0.0
      %2618 = vmatpush1.msra.mxu0 0.0
      %2619 = vmatprep.subr.mxu0 0.0
      %2620 = vmatpush1.msra.mxu0 0.0
      %2621 = vmatprep.subr.mxu0 0.0
      %2622 = vmatpush1.msra.mxu0 0.0
      %2623 = vmatprep.subr.mxu0 0.0
      %2624 = vmatpush1.msra.mxu0 0.0
      %2625 = vmatprep.subr.mxu0 0.0
      %2626 = vmatpush1.msra.mxu0 0.0
      %2627 = vmatprep.subr.mxu0 0.0
      %2628 = vmatpush1.msra.mxu0 0.0
      %2629 = vmatprep.mubr.f32.mxu0 0.0
      %2630 = vmatmul.mubr.f32.gmra.mrb[0].mxu0 %v2563
      %v2631 = vpop.f32.mrb[0].mxu0
      %v2632 = vadd.f32 0.0, %v2631
      %v2633 = vpop.f32.mrb[0].mxu0
      %v2634 = vadd.f32 0.0, %v2633
      %2635 = vdwg.mxu0
      %v2637 = vsel %vm761, %v2559, 0
      %2639 = vmatprep.subr.mxu0 %v2540
      %2640 = vmatpush1.msra.mxu0 %v2539
      %2641 = vmatprep.subr.mxu0 %v2542
      %2642 = vmatpush1.msra.mxu0 %v2541
      %2643 = vmatprep.subr.mxu0 0.0
      %2644 = vmatpush1.msra.mxu0 0.0
      %2645 = vmatprep.subr.mxu0 0.0
      %2646 = vmatpush1.msra.mxu0 0.0
      %2647 = vmatprep.subr.mxu0 0.0
      %2648 = vmatpush1.msra.mxu0 0.0
      %2649 = vmatprep.subr.mxu0 0.0
      %2650 = vmatpush1.msra.mxu0 0.0
      %2651 = vmatprep.subr.mxu0 0.0
      %2652 = vmatpush1.msra.mxu0 0.0
      %2653 = vmatprep.subr.mxu0 0.0
      %2654 = vmatpush1.msra.mxu0 0.0
      %2655 = vmatprep.subr.mxu0 0.0
      %2656 = vmatpush1.msra.mxu0 0.0
      %2657 = vmatprep.subr.mxu0 0.0
      %2658 = vmatpush1.msra.mxu0 0.0
      %2659 = vmatprep.subr.mxu0 0.0
      %2660 = vmatpush1.msra.mxu0 0.0
      %2661 = vmatprep.subr.mxu0 0.0
      %2662 = vmatpush1.msra.mxu0 0.0
      %2663 = vmatprep.subr.mxu0 0.0
      %2664 = vmatpush1.msra.mxu0 0.0
      %2665 = vmatprep.subr.mxu0 0.0
      %2666 = vmatpush1.msra.mxu0 0.0
      %2667 = vmatprep.subr.mxu0 0.0
      %2668 = vmatpush1.msra.mxu0 0.0
      %2669 = vmatprep.subr.mxu0 0.0
      %2670 = vmatpush1.msra.mxu0 0.0
      %2671 = vmatprep.subr.mxu0 0.0
      %2672 = vmatpush1.msra.mxu0 0.0
      %2673 = vmatprep.subr.mxu0 0.0
      %2674 = vmatpush1.msra.mxu0 0.0
      %2675 = vmatprep.subr.mxu0 0.0
      %2676 = vmatpush1.msra.mxu0 0.0
      %2677 = vmatprep.subr.mxu0 0.0
      %2678 = vmatpush1.msra.mxu0 0.0
      %2679 = vmatprep.subr.mxu0 0.0
      %2680 = vmatpush1.msra.mxu0 0.0
      %2681 = vmatprep.subr.mxu0 0.0
      %2682 = vmatpush1.msra.mxu0 0.0
      %2683 = vmatprep.subr.mxu0 0.0
      %2684 = vmatpush1.msra.mxu0 0.0
      %2685 = vmatprep.subr.mxu0 0.0
      %2686 = vmatpush1.msra.mxu0 0.0
      %2687 = vmatprep.subr.mxu0 0.0
      %2688 = vmatpush1.msra.mxu0 0.0
      %2689 = vmatprep.subr.mxu0 0.0
      %2690 = vmatpush1.msra.mxu0 0.0
      %2691 = vmatprep.subr.mxu0 0.0
      %2692 = vmatpush1.msra.mxu0 0.0
      %2693 = vmatprep.subr.mxu0 0.0
      %2694 = vmatpush1.msra.mxu0 0.0
      %2695 = vmatprep.subr.mxu0 0.0
      %2696 = vmatpush1.msra.mxu0 0.0
      %2697 = vmatprep.subr.mxu0 0.0
      %2698 = vmatpush1.msra.mxu0 0.0
      %2699 = vmatprep.subr.mxu0 0.0
      %2700 = vmatpush1.msra.mxu0 0.0
      %2701 = vmatprep.subr.mxu0 0.0
      %2702 = vmatpush1.msra.mxu0 0.0
      %2703 = vmatprep.mubr.f32.mxu0 0.0
      %2704 = vmatmul.mubr.f32.gmra.mrb[0].mxu0 %v2637
      %v2705 = vpop.f32.mrb[0].mxu0
      %v2706 = vadd.f32 %v2632, %v2705
      %v2707 = vpop.f32.mrb[0].mxu0
      %v2708 = vadd.f32 %v2634, %v2707
      %2709 = vdwg.mxu0
      %s2710 = scalar_lea.vmem %s16, 8
      %v2711 = vld [vmem:[%s2710] sm:$0xf]
      %v2713 = vsel %vm761, %v2711, 0
      %2715 = vmatprep.subr.mxu0 %v2556
      %2716 = vmatpush1.msra.mxu0 %v2555
      %2717 = vmatprep.subr.mxu0 %v2558
      %2718 = vmatpush1.msra.mxu0 %v2557
      %2719 = vmatprep.subr.mxu0 0.0
      %2720 = vmatpush1.msra.mxu0 0.0
      %2721 = vmatprep.subr.mxu0 0.0
      %2722 = vmatpush1.msra.mxu0 0.0
      %2723 = vmatprep.subr.mxu0 0.0
      %2724 = vmatpush1.msra.mxu0 0.0
      %2725 = vmatprep.subr.mxu0 0.0
      %2726 = vmatpush1.msra.mxu0 0.0
      %2727 = vmatprep.subr.mxu0 0.0
      %2728 = vmatpush1.msra.mxu0 0.0
      %2729 = vmatprep.subr.mxu0 0.0
      %2730 = vmatpush1.msra.mxu0 0.0
      %2731 = vmatprep.subr.mxu0 0.0
      %2732 = vmatpush1.msra.mxu0 0.0
      %2733 = vmatprep.subr.mxu0 0.0
      %2734 = vmatpush1.msra.mxu0 0.0
      %2735 = vmatprep.subr.mxu0 0.0
      %2736 = vmatpush1.msra.mxu0 0.0
      %2737 = vmatprep.subr.mxu0 0.0
      %2738 = vmatpush1.msra.mxu0 0.0
      %2739 = vmatprep.subr.mxu0 0.0
      %2740 = vmatpush1.msra.mxu0 0.0
      %2741 = vmatprep.subr.mxu0 0.0
      %2742 = vmatpush1.msra.mxu0 0.0
      %2743 = vmatprep.subr.mxu0 0.0
      %2744 = vmatpush1.msra.mxu0 0.0
      %2745 = vmatprep.subr.mxu0 0.0
      %2746 = vmatpush1.msra.mxu0 0.0
      %2747 = vmatprep.subr.mxu0 0.0
      %2748 = vmatpush1.msra.mxu0 0.0
      %2749 = vmatprep.subr.mxu0 0.0
      %2750 = vmatpush1.msra.mxu0 0.0
      %2751 = vmatprep.subr.mxu0 0.0
      %2752 = vmatpush1.msra.mxu0 0.0
      %2753 = vmatprep.subr.mxu0 0.0
      %2754 = vmatpush1.msra.mxu0 0.0
      %2755 = vmatprep.subr.mxu0 0.0
      %2756 = vmatpush1.msra.mxu0 0.0
      %2757 = vmatprep.subr.mxu0 0.0
      %2758 = vmatpush1.msra.mxu0 0.0
      %2759 = vmatprep.subr.mxu0 0.0
      %2760 = vmatpush1.msra.mxu0 0.0
      %2761 = vmatprep.subr.mxu0 0.0
      %2762 = vmatpush1.msra.mxu0 0.0
      %2763 = vmatprep.subr.mxu0 0.0
      %2764 = vmatpush1.msra.mxu0 0.0
      %2765 = vmatprep.subr.mxu0 0.0
      %2766 = vmatpush1.msra.mxu0 0.0
      %2767 = vmatprep.subr.mxu0 0.0
      %2768 = vmatpush1.msra.mxu0 0.0
      %2769 = vmatprep.subr.mxu0 0.0
      %2770 = vmatpush1.msra.mxu0 0.0
      %2771 = vmatprep.subr.mxu0 0.0
      %2772 = vmatpush1.msra.mxu0 0.0
      %2773 = vmatprep.subr.mxu0 0.0
      %2774 = vmatpush1.msra.mxu0 0.0
      %2775 = vmatprep.subr.mxu0 0.0
      %2776 = vmatpush1.msra.mxu0 0.0
      %2777 = vmatprep.subr.mxu0 0.0
      %2778 = vmatpush1.msra.mxu0 0.0
      %2779 = vmatprep.mubr.f32.mxu0 0.0
      %2780 = vmatmul.mubr.f32.gmra.mrb[0].mxu0 %v2713
      %v2781 = vpop.f32.mrb[0].mxu0
      %v2782 = vadd.f32 0.0, %v2781
      %v2783 = vpop.f32.mrb[0].mxu0
      %v2784 = vadd.f32 0.0, %v2783
      %2785 = vdwg.mxu0
      %v2786 = vadd.f32 %v2706, %v2782
      %v2787 = vadd.f32 %v2708, %v2784
      %s2788 = scalar_lea.vmem %s16, 12
      %v2789 = vld [vmem:[%s2788] sm:$0xf]
      %s2790 = scalar_lea.vmem %s16, 16
      %v2791 = vld [vmem:[%s2790] sm:$0xf]
      %v2793 = vsel %vm761, %v2791, 0
      %2795 = vmatprep.subr.mxu0 %v2524
      %2796 = vmatpush1.msra.mxu0 %v2523
      %2797 = vmatprep.subr.mxu0 %v2526
      %2798 = vmatpush1.msra.mxu0 %v2525
      %2799 = vmatprep.subr.mxu0 0.0
      %2800 = vmatpush1.msra.mxu0 0.0
      %2801 = vmatprep.subr.mxu0 0.0
      %2802 = vmatpush1.msra.mxu0 0.0
      %2803 = vmatprep.subr.mxu0 0.0
      %2804 = vmatpush1.msra.mxu0 0.0
      %2805 = vmatprep.subr.mxu0 0.0
      %2806 = vmatpush1.msra.mxu0 0.0
      %2807 = vmatprep.subr.mxu0 0.0
      %2808 = vmatpush1.msra.mxu0 0.0
      %2809 = vmatprep.subr.mxu0 0.0
      %2810 = vmatpush1.msra.mxu0 0.0
      %2811 = vmatprep.subr.mxu0 0.0
      %2812 = vmatpush1.msra.mxu0 0.0
      %2813 = vmatprep.subr.mxu0 0.0
      %2814 = vmatpush1.msra.mxu0 0.0
      %2815 = vmatprep.subr.mxu0 0.0
      %2816 = vmatpush1.msra.mxu0 0.0
      %2817 = vmatprep.subr.mxu0 0.0
      %2818 = vmatpush1.msra.mxu0 0.0
      %2819 = vmatprep.subr.mxu0 0.0
      %2820 = vmatpush1.msra.mxu0 0.0
      %2821 = vmatprep.subr.mxu0 0.0
      %2822 = vmatpush1.msra.mxu0 0.0
      %2823 = vmatprep.subr.mxu0 0.0
      %2824 = vmatpush1.msra.mxu0 0.0
      %2825 = vmatprep.subr.mxu0 0.0
      %2826 = vmatpush1.msra.mxu0 0.0
      %2827 = vmatprep.subr.mxu0 0.0
      %2828 = vmatpush1.msra.mxu0 0.0
      %2829 = vmatprep.subr.mxu0 0.0
      %2830 = vmatpush1.msra.mxu0 0.0
      %2831 = vmatprep.subr.mxu0 0.0
      %2832 = vmatpush1.msra.mxu0 0.0
      %2833 = vmatprep.subr.mxu0 0.0
      %2834 = vmatpush1.msra.mxu0 0.0
      %2835 = vmatprep.subr.mxu0 0.0
      %2836 = vmatpush1.msra.mxu0 0.0
      %2837 = vmatprep.subr.mxu0 0.0
      %2838 = vmatpush1.msra.mxu0 0.0
      %2839 = vmatprep.subr.mxu0 0.0
      %2840 = vmatpush1.msra.mxu0 0.0
      %2841 = vmatprep.subr.mxu0 0.0
      %2842 = vmatpush1.msra.mxu0 0.0
      %2843 = vmatprep.subr.mxu0 0.0
      %2844 = vmatpush1.msra.mxu0 0.0
      %2845 = vmatprep.subr.mxu0 0.0
      %2846 = vmatpush1.msra.mxu0 0.0
      %2847 = vmatprep.subr.mxu0 0.0
      %2848 = vmatpush1.msra.mxu0 0.0
      %2849 = vmatprep.subr.mxu0 0.0
      %2850 = vmatpush1.msra.mxu0 0.0
      %2851 = vmatprep.subr.mxu0 0.0
      %2852 = vmatpush1.msra.mxu0 0.0
      %2853 = vmatprep.subr.mxu0 0.0
      %2854 = vmatpush1.msra.mxu0 0.0
      %2855 = vmatprep.subr.mxu0 0.0
      %2856 = vmatpush1.msra.mxu0 0.0
      %2857 = vmatprep.subr.mxu0 0.0
      %2858 = vmatpush1.msra.mxu0 0.0
      %2859 = vmatprep.mubr.f32.mxu0 0.0
      %2860 = vmatmul.mubr.f32.gmra.mrb[0].mxu0 %v2793
      %v2861 = vpop.f32.mrb[0].mxu0
      %v2862 = vadd.f32 0.0, %v2861
      %v2863 = vpop.f32.mrb[0].mxu0
      %v2864 = vadd.f32 0.0, %v2863
      %2865 = vdwg.mxu0
      %v2867 = vsel %vm761, %v2789, 0
      %2869 = vmatprep.subr.mxu0 %v2540
      %2870 = vmatpush1.msra.mxu0 %v2539
      %2871 = vmatprep.subr.mxu0 %v2542
      %2872 = vmatpush1.msra.mxu0 %v2541
      %2873 = vmatprep.subr.mxu0 0.0
      %2874 = vmatpush1.msra.mxu0 0.0
      %2875 = vmatprep.subr.mxu0 0.0
      %2876 = vmatpush1.msra.mxu0 0.0
      %2877 = vmatprep.subr.mxu0 0.0
      %2878 = vmatpush1.msra.mxu0 0.0
      %2879 = vmatprep.subr.mxu0 0.0
      %2880 = vmatpush1.msra.mxu0 0.0
      %2881 = vmatprep.subr.mxu0 0.0
      %2882 = vmatpush1.msra.mxu0 0.0
      %2883 = vmatprep.subr.mxu0 0.0
      %2884 = vmatpush1.msra.mxu0 0.0
      %2885 = vmatprep.subr.mxu0 0.0
      %2886 = vmatpush1.msra.mxu0 0.0
      %2887 = vmatprep.subr.mxu0 0.0
      %2888 = vmatpush1.msra.mxu0 0.0
      %2889 = vmatprep.subr.mxu0 0.0
      %2890 = vmatpush1.msra.mxu0 0.0
      %2891 = vmatprep.subr.mxu0 0.0
      %2892 = vmatpush1.msra.mxu0 0.0
      %2893 = vmatprep.subr.mxu0 0.0
      %2894 = vmatpush1.msra.mxu0 0.0
      %2895 = vmatprep.subr.mxu0 0.0
      %2896 = vmatpush1.msra.mxu0 0.0
      %2897 = vmatprep.subr.mxu0 0.0
      %2898 = vmatpush1.msra.mxu0 0.0
      %2899 = vmatprep.subr.mxu0 0.0
      %2900 = vmatpush1.msra.mxu0 0.0
      %2901 = vmatprep.subr.mxu0 0.0
      %2902 = vmatpush1.msra.mxu0 0.0
      %2903 = vmatprep.subr.mxu0 0.0
      %2904 = vmatpush1.msra.mxu0 0.0
      %2905 = vmatprep.subr.mxu0 0.0
      %2906 = vmatpush1.msra.mxu0 0.0
      %2907 = vmatprep.subr.mxu0 0.0
      %2908 = vmatpush1.msra.mxu0 0.0
      %2909 = vmatprep.subr.mxu0 0.0
      %2910 = vmatpush1.msra.mxu0 0.0
      %2911 = vmatprep.subr.mxu0 0.0
      %2912 = vmatpush1.msra.mxu0 0.0
      %2913 = vmatprep.subr.mxu0 0.0
      %2914 = vmatpush1.msra.mxu0 0.0
      %2915 = vmatprep.subr.mxu0 0.0
      %2916 = vmatpush1.msra.mxu0 0.0
      %2917 = vmatprep.subr.mxu0 0.0
      %2918 = vmatpush1.msra.mxu0 0.0
      %2919 = vmatprep.subr.mxu0 0.0
      %2920 = vmatpush1.msra.mxu0 0.0
      %2921 = vmatprep.subr.mxu0 0.0
      %2922 = vmatpush1.msra.mxu0 0.0
      %2923 = vmatprep.subr.mxu0 0.0
      %2924 = vmatpush1.msra.mxu0 0.0
      %2925 = vmatprep.subr.mxu0 0.0
      %2926 = vmatpush1.msra.mxu0 0.0
      %2927 = vmatprep.subr.mxu0 0.0
      %2928 = vmatpush1.msra.mxu0 0.0
      %2929 = vmatprep.subr.mxu0 0.0
      %2930 = vmatpush1.msra.mxu0 0.0
      %2931 = vmatprep.subr.mxu0 0.0
      %2932 = vmatpush1.msra.mxu0 0.0
      %2933 = vmatprep.mubr.f32.mxu0 0.0
      %2934 = vmatmul.mubr.f32.gmra.mrb[0].mxu0 %v2867
      %v2935 = vpop.f32.mrb[0].mxu0
      %v2936 = vadd.f32 %v2862, %v2935
      %v2937 = vpop.f32.mrb[0].mxu0
      %v2938 = vadd.f32 %v2864, %v2937
      %2939 = vdwg.mxu0
      %s2940 = scalar_lea.vmem %s16, 20
      %v2941 = vld [vmem:[%s2940] sm:$0xf]
      %v2943 = vsel %vm761, %v2941, 0
      %2945 = vmatprep.subr.mxu0 %v2556
      %2946 = vmatpush1.msra.mxu0 %v2555
      %2947 = vmatprep.subr.mxu0 %v2558
      %2948 = vmatpush1.msra.mxu0 %v2557
      %2949 = vmatprep.subr.mxu0 0.0
      %2950 = vmatpush1.msra.mxu0 0.0
      %2951 = vmatprep.subr.mxu0 0.0
      %2952 = vmatpush1.msra.mxu0 0.0
      %2953 = vmatprep.subr.mxu0 0.0
      %2954 = vmatpush1.msra.mxu0 0.0
      %2955 = vmatprep.subr.mxu0 0.0
      %2956 = vmatpush1.msra.mxu0 0.0
      %2957 = vmatprep.subr.mxu0 0.0
      %2958 = vmatpush1.msra.mxu0 0.0
      %2959 = vmatprep.subr.mxu0 0.0
      %2960 = vmatpush1.msra.mxu0 0.0
      %2961 = vmatprep.subr.mxu0 0.0
      %2962 = vmatpush1.msra.mxu0 0.0
      %2963 = vmatprep.subr.mxu0 0.0
      %2964 = vmatpush1.msra.mxu0 0.0
      %2965 = vmatprep.subr.mxu0 0.0
      %2966 = vmatpush1.msra.mxu0 0.0
      %2967 = vmatprep.subr.mxu0 0.0
      %2968 = vmatpush1.msra.mxu0 0.0
      %2969 = vmatprep.subr.mxu0 0.0
      %2970 = vmatpush1.msra.mxu0 0.0
      %2971 = vmatprep.subr.mxu0 0.0
      %2972 = vmatpush1.msra.mxu0 0.0
      %2973 = vmatprep.subr.mxu0 0.0
      %2974 = vmatpush1.msra.mxu0 0.0
      %2975 = vmatprep.subr.mxu0 0.0
      %2976 = vmatpush1.msra.mxu0 0.0
      %2977 = vmatprep.subr.mxu0 0.0
      %2978 = vmatpush1.msra.mxu0 0.0
      %2979 = vmatprep.subr.mxu0 0.0
      %2980 = vmatpush1.msra.mxu0 0.0
      %2981 = vmatprep.subr.mxu0 0.0
      %2982 = vmatpush1.msra.mxu0 0.0
      %2983 = vmatprep.subr.mxu0 0.0
      %2984 = vmatpush1.msra.mxu0 0.0
      %2985 = vmatprep.subr.mxu0 0.0
      %2986 = vmatpush1.msra.mxu0 0.0
      %2987 = vmatprep.subr.mxu0 0.0
      %2988 = vmatpush1.msra.mxu0 0.0
      %2989 = vmatprep.subr.mxu0 0.0
      %2990 = vmatpush1.msra.mxu0 0.0
      %2991 = vmatprep.subr.mxu0 0.0
      %2992 = vmatpush1.msra.mxu0 0.0
      %2993 = vmatprep.subr.mxu0 0.0
      %2994 = vmatpush1.msra.mxu0 0.0
      %2995 = vmatprep.subr.mxu0 0.0
      %2996 = vmatpush1.msra.mxu0 0.0
      %2997 = vmatprep.subr.mxu0 0.0
      %2998 = vmatpush1.msra.mxu0 0.0
      %2999 = vmatprep.subr.mxu0 0.0
      %3000 = vmatpush1.msra.mxu0 0.0
      %3001 = vmatprep.subr.mxu0 0.0
      %3002 = vmatpush1.msra.mxu0 0.0
      %3003 = vmatprep.subr.mxu0 0.0
      %3004 = vmatpush1.msra.mxu0 0.0
      %3005 = vmatprep.subr.mxu0 0.0
      %3006 = vmatpush1.msra.mxu0 0.0
      %3007 = vmatprep.subr.mxu0 0.0
      %3008 = vmatpush1.msra.mxu0 0.0
      %3009 = vmatprep.mubr.f32.mxu0 0.0
      %3010 = vmatmul.mubr.f32.gmra.mrb[0].mxu0 %v2943
      %v3011 = vpop.f32.mrb[0].mxu0
      %v3012 = vadd.f32 0.0, %v3011
      %v3013 = vpop.f32.mrb[0].mxu0
      %v3014 = vadd.f32 0.0, %v3013
      %3015 = vdwg.mxu0
      %v3016 = vadd.f32 %v2936, %v3012
      %v3017 = vadd.f32 %v2938, %v3014
      %s3018 = scalar_lea.vmem %s16, 24
      %v3019 = vld [vmem:[%s3018] sm:$0xf]
      %s3020 = scalar_lea.vmem %s16, 28
      %v3021 = vld [vmem:[%s3020] sm:$0xf]
      %v3023 = vsel %vm761, %v3021, 0
      %3025 = vmatprep.subr.mxu0 %v2524
      %3026 = vmatpush1.msra.mxu0 %v2523
      %3027 = vmatprep.subr.mxu0 %v2526
      %3028 = vmatpush1.msra.mxu0 %v2525
      %3029 = vmatprep.subr.mxu0 0.0
      %3030 = vmatpush1.msra.mxu0 0.0
      %3031 = vmatprep.subr.mxu0 0.0
      %3032 = vmatpush1.msra.mxu0 0.0
      %3033 = vmatprep.subr.mxu0 0.0
      %3034 = vmatpush1.msra.mxu0 0.0
      %3035 = vmatprep.subr.mxu0 0.0
      %3036 = vmatpush1.msra.mxu0 0.0
      %3037 = vmatprep.subr.mxu0 0.0
      %3038 = vmatpush1.msra.mxu0 0.0
      %3039 = vmatprep.subr.mxu0 0.0
      %3040 = vmatpush1.msra.mxu0 0.0
      %3041 = vmatprep.subr.mxu0 0.0
      %3042 = vmatpush1.msra.mxu0 0.0
      %3043 = vmatprep.subr.mxu0 0.0
      %3044 = vmatpush1.msra.mxu0 0.0
      %3045 = vmatprep.subr.mxu0 0.0
      %3046 = vmatpush1.msra.mxu0 0.0
      %3047 = vmatprep.subr.mxu0 0.0
      %3048 = vmatpush1.msra.mxu0 0.0
      %3049 = vmatprep.subr.mxu0 0.0
      %3050 = vmatpush1.msra.mxu0 0.0
      %3051 = vmatprep.subr.mxu0 0.0
      %3052 = vmatpush1.msra.mxu0 0.0
      %3053 = vmatprep.subr.mxu0 0.0
      %3054 = vmatpush1.msra.mxu0 0.0
      %3055 = vmatprep.subr.mxu0 0.0
      %3056 = vmatpush1.msra.mxu0 0.0
      %3057 = vmatprep.subr.mxu0 0.0
      %3058 = vmatpush1.msra.mxu0 0.0
      %3059 = vmatprep.subr.mxu0 0.0
      %3060 = vmatpush1.msra.mxu0 0.0
      %3061 = vmatprep.subr.mxu0 0.0
      %3062 = vmatpush1.msra.mxu0 0.0
      %3063 = vmatprep.subr.mxu0 0.0
      %3064 = vmatpush1.msra.mxu0 0.0
      %3065 = vmatprep.subr.mxu0 0.0
      %3066 = vmatpush1.msra.mxu0 0.0
      %3067 = vmatprep.subr.mxu0 0.0
      %3068 = vmatpush1.msra.mxu0 0.0
      %3069 = vmatprep.subr.mxu0 0.0
      %3070 = vmatpush1.msra.mxu0 0.0
      %3071 = vmatprep.subr.mxu0 0.0
      %3072 = vmatpush1.msra.mxu0 0.0
      %3073 = vmatprep.subr.mxu0 0.0
      %3074 = vmatpush1.msra.mxu0 0.0
      %3075 = vmatprep.subr.mxu0 0.0
      %3076 = vmatpush1.msra.mxu0 0.0
      %3077 = vmatprep.subr.mxu0 0.0
      %3078 = vmatpush1.msra.mxu0 0.0
      %3079 = vmatprep.subr.mxu0 0.0
      %3080 = vmatpush1.msra.mxu0 0.0
      %3081 = vmatprep.subr.mxu0 0.0
      %3082 = vmatpush1.msra.mxu0 0.0
      %3083 = vmatprep.subr.mxu0 0.0
      %3084 = vmatpush1.msra.mxu0 0.0
      %3085 = vmatprep.subr.mxu0 0.0
      %3086 = vmatpush1.msra.mxu0 0.0
      %3087 = vmatprep.subr.mxu0 0.0
      %3088 = vmatpush1.msra.mxu0 0.0
      %3089 = vmatprep.mubr.f32.mxu0 0.0
      %3090 = vmatmul.mubr.f32.gmra.mrb[0].mxu0 %v3023
      %v3091 = vpop.f32.mrb[0].mxu0
      %v3092 = vadd.f32 0.0, %v3091
      %v3093 = vpop.f32.mrb[0].mxu0
      %v3094 = vadd.f32 0.0, %v3093
      %3095 = vdwg.mxu0
      %v3097 = vsel %vm761, %v3019, 0
      %3099 = vmatprep.subr.mxu0 %v2540
      %3100 = vmatpush1.msra.mxu0 %v2539
      %3101 = vmatprep.subr.mxu0 %v2542
      %3102 = vmatpush1.msra.mxu0 %v2541
      %3103 = vmatprep.subr.mxu0 0.0
      %3104 = vmatpush1.msra.mxu0 0.0
      %3105 = vmatprep.subr.mxu0 0.0
      %3106 = vmatpush1.msra.mxu0 0.0
      %3107 = vmatprep.subr.mxu0 0.0
      %3108 = vmatpush1.msra.mxu0 0.0
      %3109 = vmatprep.subr.mxu0 0.0
      %3110 = vmatpush1.msra.mxu0 0.0
      %3111 = vmatprep.subr.mxu0 0.0
      %3112 = vmatpush1.msra.mxu0 0.0
      %3113 = vmatprep.subr.mxu0 0.0
      %3114 = vmatpush1.msra.mxu0 0.0
      %3115 = vmatprep.subr.mxu0 0.0
      %3116 = vmatpush1.msra.mxu0 0.0
      %3117 = vmatprep.subr.mxu0 0.0
      %3118 = vmatpush1.msra.mxu0 0.0
      %3119 = vmatprep.subr.mxu0 0.0
      %3120 = vmatpush1.msra.mxu0 0.0
      %3121 = vmatprep.subr.mxu0 0.0
      %3122 = vmatpush1.msra.mxu0 0.0
      %3123 = vmatprep.subr.mxu0 0.0
      %3124 = vmatpush1.msra.mxu0 0.0
      %3125 = vmatprep.subr.mxu0 0.0
      %3126 = vmatpush1.msra.mxu0 0.0
      %3127 = vmatprep.subr.mxu0 0.0
      %3128 = vmatpush1.msra.mxu0 0.0
      %3129 = vmatprep.subr.mxu0 0.0
      %3130 = vmatpush1.msra.mxu0 0.0
      %3131 = vmatprep.subr.mxu0 0.0
      %3132 = vmatpush1.msra.mxu0 0.0
      %3133 = vmatprep.subr.mxu0 0.0
      %3134 = vmatpush1.msra.mxu0 0.0
      %3135 = vmatprep.subr.mxu0 0.0
      %3136 = vmatpush1.msra.mxu0 0.0
      %3137 = vmatprep.subr.mxu0 0.0
      %3138 = vmatpush1.msra.mxu0 0.0
      %3139 = vmatprep.subr.mxu0 0.0
      %3140 = vmatpush1.msra.mxu0 0.0
      %3141 = vmatprep.subr.mxu0 0.0
      %3142 = vmatpush1.msra.mxu0 0.0
      %3143 = vmatprep.subr.mxu0 0.0
      %3144 = vmatpush1.msra.mxu0 0.0
      %3145 = vmatprep.subr.mxu0 0.0
      %3146 = vmatpush1.msra.mxu0 0.0
      %3147 = vmatprep.subr.mxu0 0.0
      %3148 = vmatpush1.msra.mxu0 0.0
      %3149 = vmatprep.subr.mxu0 0.0
      %3150 = vmatpush1.msra.mxu0 0.0
      %3151 = vmatprep.subr.mxu0 0.0
      %3152 = vmatpush1.msra.mxu0 0.0
      %3153 = vmatprep.subr.mxu0 0.0
      %3154 = vmatpush1.msra.mxu0 0.0
      %3155 = vmatprep.subr.mxu0 0.0
      %3156 = vmatpush1.msra.mxu0 0.0
      %3157 = vmatprep.subr.mxu0 0.0
      %3158 = vmatpush1.msra.mxu0 0.0
      %3159 = vmatprep.subr.mxu0 0.0
      %3160 = vmatpush1.msra.mxu0 0.0
      %3161 = vmatprep.subr.mxu0 0.0
      %3162 = vmatpush1.msra.mxu0 0.0
      %3163 = vmatprep.mubr.f32.mxu0 0.0
      %3164 = vmatmul.mubr.f32.gmra.mrb[0].mxu0 %v3097
      %v3165 = vpop.f32.mrb[0].mxu0
      %v3166 = vadd.f32 %v3092, %v3165
      %v3167 = vpop.f32.mrb[0].mxu0
      %v3168 = vadd.f32 %v3094, %v3167
      %3169 = vdwg.mxu0
      %s3170 = scalar_lea.vmem %s16, 32
      %v3171 = vld [vmem:[%s3170] sm:$0xf]
      %v3173 = vsel %vm761, %v3171, 0
      %3175 = vmatprep.subr.mxu0 %v2556
      %3176 = vmatpush1.msra.mxu0 %v2555
      %3177 = vmatprep.subr.mxu0 %v2558
      %3178 = vmatpush1.msra.mxu0 %v2557
      %3179 = vmatprep.subr.mxu0 0.0
      %3180 = vmatpush1.msra.mxu0 0.0
      %3181 = vmatprep.subr.mxu0 0.0
      %3182 = vmatpush1.msra.mxu0 0.0
      %3183 = vmatprep.subr.mxu0 0.0
      %3184 = vmatpush1.msra.mxu0 0.0
      %3185 = vmatprep.subr.mxu0 0.0
      %3186 = vmatpush1.msra.mxu0 0.0
      %3187 = vmatprep.subr.mxu0 0.0
      %3188 = vmatpush1.msra.mxu0 0.0
      %3189 = vmatprep.subr.mxu0 0.0
      %3190 = vmatpush1.msra.mxu0 0.0
      %3191 = vmatprep.subr.mxu0 0.0
      %3192 = vmatpush1.msra.mxu0 0.0
      %3193 = vmatprep.subr.mxu0 0.0
      %3194 = vmatpush1.msra.mxu0 0.0
      %3195 = vmatprep.subr.mxu0 0.0
      %3196 = vmatpush1.msra.mxu0 0.0
      %3197 = vmatprep.subr.mxu0 0.0
      %3198 = vmatpush1.msra.mxu0 0.0
      %3199 = vmatprep.subr.mxu0 0.0
      %3200 = vmatpush1.msra.mxu0 0.0
      %3201 = vmatprep.subr.mxu0 0.0
      %3202 = vmatpush1.msra.mxu0 0.0
      %3203 = vmatprep.subr.mxu0 0.0
      %3204 = vmatpush1.msra.mxu0 0.0
      %3205 = vmatprep.subr.mxu0 0.0
      %3206 = vmatpush1.msra.mxu0 0.0
      %3207 = vmatprep.subr.mxu0 0.0
      %3208 = vmatpush1.msra.mxu0 0.0
      %3209 = vmatprep.subr.mxu0 0.0
      %3210 = vmatpush1.msra.mxu0 0.0
      %3211 = vmatprep.subr.mxu0 0.0
      %3212 = vmatpush1.msra.mxu0 0.0
      %3213 = vmatprep.subr.mxu0 0.0
      %3214 = vmatpush1.msra.mxu0 0.0
      %3215 = vmatprep.subr.mxu0 0.0
      %3216 = vmatpush1.msra.mxu0 0.0
      %3217 = vmatprep.subr.mxu0 0.0
      %3218 = vmatpush1.msra.mxu0 0.0
      %3219 = vmatprep.subr.mxu0 0.0
      %3220 = vmatpush1.msra.mxu0 0.0
      %3221 = vmatprep.subr.mxu0 0.0
      %3222 = vmatpush1.msra.mxu0 0.0
      %3223 = vmatprep.subr.mxu0 0.0
      %3224 = vmatpush1.msra.mxu0 0.0
      %3225 = vmatprep.subr.mxu0 0.0
      %3226 = vmatpush1.msra.mxu0 0.0
      %3227 = vmatprep.subr.mxu0 0.0
      %3228 = vmatpush1.msra.mxu0 0.0
      %3229 = vmatprep.subr.mxu0 0.0
      %3230 = vmatpush1.msra.mxu0 0.0
      %3231 = vmatprep.subr.mxu0 0.0
      %3232 = vmatpush1.msra.mxu0 0.0
      %3233 = vmatprep.subr.mxu0 0.0
      %3234 = vmatpush1.msra.mxu0 0.0
      %3235 = vmatprep.subr.mxu0 0.0
      %3236 = vmatpush1.msra.mxu0 0.0
      %3237 = vmatprep.subr.mxu0 0.0
      %3238 = vmatpush1.msra.mxu0 0.0
      %3239 = vmatprep.mubr.f32.mxu0 0.0
      %3240 = vmatmul.mubr.f32.gmra.mrb[0].mxu0 %v3173
      %v3241 = vpop.f32.mrb[0].mxu0
      %v3242 = vadd.f32 0.0, %v3241
      %v3243 = vpop.f32.mrb[0].mxu0
      %v3244 = vadd.f32 0.0, %v3243
      %3245 = vdwg.mxu0
      %v3246 = vadd.f32 %v3166, %v3242
      %v3247 = vadd.f32 %v3168, %v3244
      %3248 = vrot.lane.b32.xlu0 %v2786, 16
      %v3249 = vpop.permute.xlu0 %3248
      %3250 = vrot.lane.b32.xlu0 %v2787, 16
      %v3251 = vpop.permute.xlu0 %3250
      %v3252 = vsel %vm1452, %v3249, %v3251
      %v3253 = vsel %vm1452, %v3251, %v3249
      %v3254 = vmul.f32 %v3253, %v1468
      %v3255 = vmul.f32 %v3252, %v1472
      %v3256 = vadd.f32 %v3254, %v3016
      %v3257 = vadd.f32 %v3255, %v3017
      %3258 = vrot.lane.b32.xlu0 %v3246, 112
      %v3259 = vpop.permute.xlu0 %3258
      %3260 = vrot.lane.b32.xlu0 %v3247, 112
      %v3261 = vpop.permute.xlu0 %3260
      %v3262 = vsel %vm1481, %v3259, %v3261
      %v3263 = vsel %vm1481, %v3261, %v3259
      %v3264 = vmul.f32 %v3262, %v1497
      %v3265 = vmul.f32 %v3263, %v1501
      %v3266 = vadd.f32 %v3256, %v3264
      %v3267 = vadd.f32 %v3257, %v3265
      %v3270 = vrot.slane %v3266, 4
      %v3271 = vrot.slane %v3267, 4
      %3274 = vst [vmem:[%s548 + $0x10] sm:$0xf0] %v3270
      %3275 = vst [vmem:[%s548 + $0x18] sm:$0xf0] %v3271
      %p3276 = scmp.lt.s32.totalorder %s28, 1
      %s3277 = scalar_select %p3276, %s28, 1
      %s3278 = smul.addr %s3277, 4
      %s3279 = smul.addr %s3278, 8
      %s3280 = scalar_lea.vmem %s17, %s3279
      // Predicated region
      $region89: #{dense_block_apply.1} parent=87 // pred_check
        %p3281 = pneg %p408
      $region90: #{dense_block_apply.1} parent=87 // pred_check_branch
        %3283 = sbr.rel (%p3281) target = $region92
      $region91: #{dense_block_apply.1} parent=87 // pred_region
        _
      $region92: #{dense_block_apply.1} parent=87 // pred_fallthru
        _
    $region88: #{dense_block_apply.1} parent=5 // pred_fallthru
      _
    %p3284 = scmp.le.s32.totalorder 2, %s23
    // Predicated region
    $region93: #{dense_block_apply.1} parent=5 // pred_check
      %p3285 = pneg %p3284
    $region94: #{dense_block_apply.1} parent=5 // pred_check_branch
      %3287 = sbr.rel (%p3285) target = $region96
    $region95: #{dense_block_apply.1} parent=5 // pred_region
      %s3288 = ssub.s32 %s23, 2
      // Predicated region
      $region97: #{dense_block_apply.1} parent=95 // pred_check
        %p3289 = pneg %p414
      $region98: #{dense_block_apply.1} parent=95 // pred_check_branch
        %3291 = sbr.rel (%p3289) target = $region100
      $region99: #{dense_block_apply.1} parent=95 // pred_region
        %p3292 = scmp.lt.s32.totalorder %s29, 1
        %s3293 = scalar_select %p3292, %s29, 1
        %s3294 = smul.addr %s3293, 4
        %s3295 = smul.addr %s3294, 8
        %s3296 = scalar_lea.vmem %s17, %s3295
      $region100: #{dense_block_apply.1} parent=95 // pred_fallthru
        _
    $region96: #{dense_block_apply.1} parent=5 // pred_fallthru
      _
  $region6: #{dense_block_apply.1} parent=0 // loop_footer
    %s27 = sadd.s32 1, %s23
  $region7: #{dense_block_apply.1} parent=0 // loop_footer_branch
    %22 = sbr.rel target = $region3
  $region8: #{dense_block_apply.1} parent=0 // loop_exit
    _

</llo_original>
